<compile_context>
chip_gen: v7x
topology: tpu7x:2x2x1
jax: 0.10.0
libtpu: 0.0.40
codegen_flags: <defaults>
</compile_context>

<pallas_src>
import functools

import jax
import jax.numpy as jnp
from jax.experimental import pallas as pl
from jax.experimental.pallas import tpu as pltpu

KSIZE = 5
PAD = 2
LANE = 128
SUBPACK = 16   # bf16 sublane packing granularity; Wpp is a multiple of this


def _round_up(x, m):
    return (x + m - 1) // m * m


def _conn5_kernel(x_ref, w_ref, b_ref, o_ref, *, TH, W, Wpp, Cin, Cp):
    # x_ref : (1, Hp, Wpp, Cin)     zero-padded NHWC image (matmul dtype), Hp = H+5
    # w_ref : (5, Cin, 5*Cp)        BN-folded weights, w[kh, ci, kw*Cp + co]
    # b_ref : (1, 1, Cp)            BN-folded bias (f32, includes conv bias)
    # o_ref : (1, TH, W, Cp)        output tile (f32)
    t = pl.program_id(1)
    row0 = pl.multiple_of(t * TH, TH)

    M = TH * Wpp                 # flattened rows of this tile's output
    Mx = M + SUBPACK             # small over-read so shifted result reads stay in-bounds
                                 # (SUBPACK >= KSIZE-1 and SUBPACK <= Wpp always holds)

    # One dynamic read of the rows this tile needs (leading, untiled dim),
    # then a single layout-preserving flatten (Wpp % 16 == 0 keeps it a view).
    xt = x_ref[0, pl.ds(row0, TH + KSIZE), :, :]            # (TH+5, Wpp, Cin)
    xflat = xt.reshape((TH + KSIZE) * Wpp, Cin)             # view

    # 5 matmuls: for each kh, contract Cin against all 5 kw taps at once.
    # Each LHS is a sublane-aligned view slice (start kh*Wpp % 16 == 0).
    acc = jnp.zeros((Mx, KSIZE * Cp), dtype=jnp.float32)
    for kh in range(KSIZE):
        xs = xflat[kh * Wpp: kh * Wpp + Mx]                 # (Mx, Cin) view
        acc = acc + jnp.dot(xs, w_ref[kh],
                            preferred_element_type=jnp.float32)

    # Combine the 5 kw taps with shifted accumulation on the result:
    # out[h, w] = sum_kw acc[h*Wpp + w + kw, kw*Cp : (kw+1)*Cp]
    out2 = acc[0:M, 0:Cp]
    for kw in range(1, KSIZE):
        slab = acc[:, kw * Cp:(kw + 1) * Cp]                # lane-aligned column slab
        out2 = out2 + slab[kw:kw + M]                       # one sublane realignment per tap

    y = out2.reshape(TH, Wpp, Cp)[:, :W, :]                 # drop right-side pad (aligned slice)
    y = y + b_ref[...]                                      # (1,1,Cp) broadcast
    y = y * jax.nn.sigmoid(y)                               # SiLU (EUP)
    o_ref[0] = y.astype(o_ref.dtype)


def connection5_forward(x_nchw, conv_w, conv_b, gamma, beta,
                        running_mean, running_var, eps=1e-5,
                        tile_h=None, matmul_dtype=jnp.bfloat16):
    """x_nchw: (N, Cin, H, W) float32.  Returns (N, Cout, H, W) float32."""
    N, Cin, H, W = x_nchw.shape
    Cout = conv_w.shape[0]
    Cp = _round_up(Cout, LANE)                  # lane-dense output channels
    Wpp = _round_up(W + 2 * PAD, SUBPACK)       # packing-aligned padded width
    Hp = H + 2 * PAD + 1                        # +1 zero row so halo reads stay in-bounds

    if tile_h is None:
        tile_h = H
        for cand in (64, 32, 16, 8):
            if H > cand and H % cand == 0:
                tile_h = cand
                break
    assert H % tile_h == 0, "tile_h must divide H"
    n_th = H // tile_h

    # --- glue (plain JAX): BN folding, layout, zero padding ------------------
    scale = (gamma / jnp.sqrt(running_var + eps)).astype(jnp.float32)    # (Cout,)
    bias = ((conv_b - running_mean) * scale + beta).astype(jnp.float32)  # (Cout,)

    # Fold BN scale into the conv weights (one-time, wrapper side).
    w_hwio = jnp.transpose(conv_w, (2, 3, 1, 0)).astype(jnp.float32) * scale  # (5,5,Cin,Cout)
    w_p = jnp.pad(w_hwio, ((0, 0), (0, 0), (0, 0), (0, Cp - Cout)))           # (5,5,Cin,Cp)
    # wcat[kh, ci, kw*Cp + co] = scale[co] * w[kh, kw, ci, co]
    wcat = jnp.transpose(w_p, (0, 2, 1, 3)).reshape(KSIZE, Cin, KSIZE * Cp)
    wcat = wcat.astype(matmul_dtype)

    bias_p = jnp.pad(bias, (0, Cp - Cout)).reshape(1, 1, Cp)

    # TODO(synk): accept/emit NHWC end-to-end to drop the two transposes below
    # (kept to match the PyTorch module's NCHW convention).
    x_nhwc = jnp.transpose(x_nchw, (0, 2, 3, 1))
    x_pad = jnp.pad(
        x_nhwc,
        ((0, 0), (PAD, PAD + 1), (PAD, Wpp - W - PAD), (0, 0)),
    ).astype(matmul_dtype)                                    # (N, Hp, Wpp, Cin)

    kernel = functools.partial(_conn5_kernel, TH=tile_h, W=W, Wpp=Wpp,
                               Cin=Cin, Cp=Cp)

    flops = 2 * N * H * W * KSIZE * KSIZE * Cin * Cout
    bytes_accessed = (x_pad.size * x_pad.dtype.itemsize
                      + wcat.size * wcat.dtype.itemsize
                      + N * H * W * Cp * 4)

    out_nhwc = pl.pallas_call(
        kernel,
        out_shape=jax.ShapeDtypeStruct((N, H, W, Cp), jnp.float32),
        grid_spec=pltpu.PrefetchScalarGridSpec(
            num_scalar_prefetch=0,
            grid=(N, n_th),
            in_specs=[
                # Full padded image per batch element; constant block index
                # across the h-tile axis, so it is not re-fetched per tile.
                pl.BlockSpec((1, Hp, Wpp, Cin), lambda n, t: (n, 0, 0, 0)),
                pl.BlockSpec((KSIZE, Cin, KSIZE * Cp), lambda n, t: (0, 0, 0)),
                pl.BlockSpec((1, 1, Cp), lambda n, t: (0, 0, 0)),
            ],
            out_specs=pl.BlockSpec((1, tile_h, W, Cp),
                                   lambda n, t: (n, t, 0, 0)),
        ),
        compiler_params=pltpu.CompilerParams(
            dimension_semantics=("parallel", "parallel")),
        cost_estimate=pl.CostEstimate(
            flops=flops,
            transcendentals=N * H * W * Cout,
            bytes_accessed=bytes_accessed),
    )(x_pad, wcat, bias_p)

    out = out_nhwc[:, :, :, :Cout]                            # drop channel pad
    return jnp.transpose(out, (0, 3, 1, 2))                   # NCHW


def _reference(x_nchw, conv_w, conv_b, gamma, beta, mean, var, eps=1e-5):
    y = jax.lax.conv_general_dilated(
        x_nchw, conv_w, window_strides=(1, 1),
        padding=((PAD, PAD), (PAD, PAD)),
        dimension_numbers=("NCHW", "OIHW", "NCHW"),
        precision=jax.lax.Precision.HIGHEST)
    y = y + conv_b[None, :, None, None]
    y = (y - mean[None, :, None, None]) / jnp.sqrt(var[None, :, None, None] + eps)
    y = y * gamma[None, :, None, None] + beta[None, :, None, None]
    return y * jax.nn.sigmoid(y)


if __name__ == "__main__":
    key = jax.random.PRNGKey(0)
    N, Cin, Cout, H, W = 2, 4, 8, 16, 16

    k = jax.random.split(key, 7)
    x = jax.random.normal(k[0], (N, Cin, H, W), dtype=jnp.float32)
    conv_w = jax.random.normal(k[1], (Cout, Cin, KSIZE, KSIZE),
                               dtype=jnp.float32) * 0.1
    conv_b = jax.random.normal(k[2], (Cout,), dtype=jnp.float32) * 0.1
    gamma = 1.0 + 0.1 * jax.random.normal(k[3], (Cout,), dtype=jnp.float32)
    beta = 0.1 * jax.random.normal(k[4], (Cout,), dtype=jnp.float32)
    running_mean = 0.1 * jax.random.normal(k[5], (Cout,), dtype=jnp.float32)
    running_var = 1.0 + jnp.abs(jax.random.normal(k[6], (Cout,),
                                                  dtype=jnp.float32)) * 0.1

    # tile_h=8 -> grid (2, 2): exercises the halo-tiled path at the toy size.
    out = connection5_forward(x, conv_w, conv_b, gamma, beta,
                              running_mean, running_var, tile_h=8)
    out = jax.block_until_ready(out)

    ref = _reference(x, conv_w, conv_b, gamma, beta, running_mean, running_var)
    assert out.shape == (N, Cout, H, W)
    # bf16 matmul inputs (f32 accumulation) -> looser tolerance than pure f32.
    assert jnp.allclose(out, ref, atol=3e-2, rtol=3e-2), \
        float(jnp.max(jnp.abs(out - ref)))

    print("KERNEL_OK")
</pallas_src>

<mosaic_0001>
module attributes {stable_mosaic.version = 11 : i64} {
  func.func @_conn5_kernel(%arg0: i32, %arg1: i32, %arg2: memref<1x21x32x4xbf16, #tpu.memory_space<vmem>>, %arg3: memref<5x4x640xbf16, #tpu.memory_space<vmem>>, %arg4: memref<1x1x128xf32, #tpu.memory_space<vmem>>, %arg5: memref<1x8x16x128xf32, #tpu.memory_space<vmem>>) attributes {dimension_semantics = [#tpu.dimension_semantics<parallel>, #tpu.dimension_semantics<parallel>], iteration_bounds = array<i64: 2, 2>, scalar_prefetch = 0 : i64, scratch_operands = 0 : i64, tpu.core_type = #tpu.core_type<tc>, window_params = [{transform_indices = @transform_0, window_bounds = array<i64: 1, 21, 32, 4>}, {pipeline_mode = #tpu.pipeline_mode<synchronous>, transform_indices = @transform_1, window_bounds = array<i64: 5, 4, 640>}, {pipeline_mode = #tpu.pipeline_mode<synchronous>, transform_indices = @transform_2, window_bounds = array<i64: 1, 1, 128>}, {transform_indices = @transform_3, window_bounds = array<i64: 1, 8, 16, 128>}]} {
    %c8_i32 = arith.constant 8 : i32
    %0 = arith.muli %arg1, %c8_i32 : i32
    %1 = tpu.assume_multiple %0, 8 : i32
    %c0 = arith.constant 0 : index
    %2 = arith.index_cast %1 : i32 to index
    %c0_0 = arith.constant 0 : index
    %c0_1 = arith.constant 0 : index
    %3 = vector.load %arg2[%c0, %2, %c0_0, %c0_1] : memref<1x21x32x4xbf16, #tpu.memory_space<vmem>>, vector<1x13x32x4xbf16>
    %4 = vector.shape_cast %3 : vector<1x13x32x4xbf16> to vector<13x32x4xbf16>
    %5 = vector.shape_cast %4 : vector<13x32x4xbf16> to vector<416x4xbf16>
    %cst = arith.constant 0.000000e+00 : f32
    %6 = vector.broadcast %cst : f32 to vector<272x640xf32>
    %7 = vector.extract_strided_slice %5 {offsets = [0, 0], sizes = [272, 4], strides = [1, 1]} : vector<416x4xbf16> to vector<272x4xbf16>
    %c0_2 = arith.constant 0 : index
    %c0_3 = arith.constant 0 : index
    %c0_4 = arith.constant 0 : index
    %8 = vector.load %arg3[%c0_2, %c0_3, %c0_4] : memref<5x4x640xbf16, #tpu.memory_space<vmem>>, vector<1x4x640xbf16>
    %9 = vector.shape_cast %8 : vector<1x4x640xbf16> to vector<4x640xbf16>
    %cst_5 = arith.constant dense<0.000000e+00> : vector<272x640xf32>
    %10 = tpu.matmul %7, %9, %cst_5 {dimension_numbers = #tpu.dot_dimension_numbers<[1], [0], [0], [1], [0, 0, 1, 1], [], []>} : vector<272x4xbf16>, vector<4x640xbf16>, vector<272x640xf32> -> vector<272x640xf32>
    %11 = arith.addf %6, %10 : vector<272x640xf32>
    %12 = vector.extract_strided_slice %5 {offsets = [32, 0], sizes = [272, 4], strides = [1, 1]} : vector<416x4xbf16> to vector<272x4xbf16>
    %c1 = arith.constant 1 : index
    %c0_6 = arith.constant 0 : index
    %c0_7 = arith.constant 0 : index
    %13 = vector.load %arg3[%c1, %c0_6, %c0_7] : memref<5x4x640xbf16, #tpu.memory_space<vmem>>, vector<1x4x640xbf16>
    %14 = vector.shape_cast %13 : vector<1x4x640xbf16> to vector<4x640xbf16>
    %cst_8 = arith.constant dense<0.000000e+00> : vector<272x640xf32>
    %15 = tpu.matmul %12, %14, %cst_8 {dimension_numbers = #tpu.dot_dimension_numbers<[1], [0], [0], [1], [0, 0, 1, 1], [], []>} : vector<272x4xbf16>, vector<4x640xbf16>, vector<272x640xf32> -> vector<272x640xf32>
    %16 = arith.addf %11, %15 : vector<272x640xf32>
    %17 = vector.extract_strided_slice %5 {offsets = [64, 0], sizes = [272, 4], strides = [1, 1]} : vector<416x4xbf16> to vector<272x4xbf16>
    %c2 = arith.constant 2 : index
    %c0_9 = arith.constant 0 : index
    %c0_10 = arith.constant 0 : index
    %18 = vector.load %arg3[%c2, %c0_9, %c0_10] : memref<5x4x640xbf16, #tpu.memory_space<vmem>>, vector<1x4x640xbf16>
    %19 = vector.shape_cast %18 : vector<1x4x640xbf16> to vector<4x640xbf16>
    %cst_11 = arith.constant dense<0.000000e+00> : vector<272x640xf32>
    %20 = tpu.matmul %17, %19, %cst_11 {dimension_numbers = #tpu.dot_dimension_numbers<[1], [0], [0], [1], [0, 0, 1, 1], [], []>} : vector<272x4xbf16>, vector<4x640xbf16>, vector<272x640xf32> -> vector<272x640xf32>
    %21 = arith.addf %16, %20 : vector<272x640xf32>
    %22 = vector.extract_strided_slice %5 {offsets = [96, 0], sizes = [272, 4], strides = [1, 1]} : vector<416x4xbf16> to vector<272x4xbf16>
    %c3 = arith.constant 3 : index
    %c0_12 = arith.constant 0 : index
    %c0_13 = arith.constant 0 : index
    %23 = vector.load %arg3[%c3, %c0_12, %c0_13] : memref<5x4x640xbf16, #tpu.memory_space<vmem>>, vector<1x4x640xbf16>
    %24 = vector.shape_cast %23 : vector<1x4x640xbf16> to vector<4x640xbf16>
    %cst_14 = arith.constant dense<0.000000e+00> : vector<272x640xf32>
    %25 = tpu.matmul %22, %24, %cst_14 {dimension_numbers = #tpu.dot_dimension_numbers<[1], [0], [0], [1], [0, 0, 1, 1], [], []>} : vector<272x4xbf16>, vector<4x640xbf16>, vector<272x640xf32> -> vector<272x640xf32>
    %26 = arith.addf %21, %25 : vector<272x640xf32>
    %27 = vector.extract_strided_slice %5 {offsets = [128, 0], sizes = [272, 4], strides = [1, 1]} : vector<416x4xbf16> to vector<272x4xbf16>
    %c4 = arith.constant 4 : index
    %c0_15 = arith.constant 0 : index
    %c0_16 = arith.constant 0 : index
    %28 = vector.load %arg3[%c4, %c0_15, %c0_16] : memref<5x4x640xbf16, #tpu.memory_space<vmem>>, vector<1x4x640xbf16>
    %29 = vector.shape_cast %28 : vector<1x4x640xbf16> to vector<4x640xbf16>
    %cst_17 = arith.constant dense<0.000000e+00> : vector<272x640xf32>
    %30 = tpu.matmul %27, %29, %cst_17 {dimension_numbers = #tpu.dot_dimension_numbers<[1], [0], [0], [1], [0, 0, 1, 1], [], []>} : vector<272x4xbf16>, vector<4x640xbf16>, vector<272x640xf32> -> vector<272x640xf32>
    %31 = arith.addf %26, %30 : vector<272x640xf32>
    %32 = vector.extract_strided_slice %31 {offsets = [0, 0], sizes = [256, 128], strides = [1, 1]} : vector<272x640xf32> to vector<256x128xf32>
    %33 = vector.extract_strided_slice %31 {offsets = [0, 128], sizes = [272, 128], strides = [1, 1]} : vector<272x640xf32> to vector<272x128xf32>
    %34 = vector.extract_strided_slice %33 {offsets = [1, 0], sizes = [256, 128], strides = [1, 1]} : vector<272x128xf32> to vector<256x128xf32>
    %35 = arith.addf %32, %34 : vector<256x128xf32>
    %36 = vector.extract_strided_slice %31 {offsets = [0, 256], sizes = [272, 128], strides = [1, 1]} : vector<272x640xf32> to vector<272x128xf32>
    %37 = vector.extract_strided_slice %36 {offsets = [2, 0], sizes = [256, 128], strides = [1, 1]} : vector<272x128xf32> to vector<256x128xf32>
    %38 = arith.addf %35, %37 : vector<256x128xf32>
    %39 = vector.extract_strided_slice %31 {offsets = [0, 384], sizes = [272, 128], strides = [1, 1]} : vector<272x640xf32> to vector<272x128xf32>
    %40 = vector.extract_strided_slice %39 {offsets = [3, 0], sizes = [256, 128], strides = [1, 1]} : vector<272x128xf32> to vector<256x128xf32>
    %41 = arith.addf %38, %40 : vector<256x128xf32>
    %42 = vector.extract_strided_slice %31 {offsets = [0, 512], sizes = [272, 128], strides = [1, 1]} : vector<272x640xf32> to vector<272x128xf32>
    %43 = vector.extract_strided_slice %42 {offsets = [4, 0], sizes = [256, 128], strides = [1, 1]} : vector<272x128xf32> to vector<256x128xf32>
    %44 = arith.addf %41, %43 : vector<256x128xf32>
    %45 = vector.shape_cast %44 : vector<256x128xf32> to vector<8x32x128xf32>
    %46 = vector.extract_strided_slice %45 {offsets = [0, 0, 0], sizes = [8, 16, 128], strides = [1, 1, 1]} : vector<8x32x128xf32> to vector<8x16x128xf32>
    %c0_18 = arith.constant 0 : index
    %c0_19 = arith.constant 0 : index
    %c0_20 = arith.constant 0 : index
    %47 = vector.load %arg4[%c0_18, %c0_19, %c0_20] : memref<1x1x128xf32, #tpu.memory_space<vmem>>, vector<1x1x128xf32>
    %48 = vector.broadcast %47 : vector<1x1x128xf32> to vector<8x16x128xf32>
    %49 = arith.addf %46, %48 : vector<8x16x128xf32>
    %50 = arith.negf %49 : vector<8x16x128xf32>
    %51 = math.exp %50 : vector<8x16x128xf32>
    %cst_21 = arith.constant 1.000000e+00 : f32
    %52 = vector.broadcast %cst_21 : f32 to vector<8x16x128xf32>
    %53 = arith.addf %52, %51 : vector<8x16x128xf32>
    %54 = arith.divf %52, %53 : vector<8x16x128xf32>
    %55 = arith.mulf %49, %54 : vector<8x16x128xf32>
    %c0_22 = arith.constant 0 : index
    %c0_23 = arith.constant 0 : index
    %c0_24 = arith.constant 0 : index
    %c0_25 = arith.constant 0 : index
    %56 = vector.load %arg5[%c0_22, %c0_23, %c0_24, %c0_25] : memref<1x8x16x128xf32, #tpu.memory_space<vmem>>, vector<1x8x16x128xf32>
    %57 = vector.shape_cast %56 : vector<1x8x16x128xf32> to vector<8x16x128xf32>
    %58 = vector.shape_cast %55 : vector<8x16x128xf32> to vector<1x8x16x128xf32>
    tpu.vector_store %arg5[%c0_22, %c0_23, %c0_24, %c0_25], %58 {strides = array<i32>} : memref<1x8x16x128xf32, #tpu.memory_space<vmem>>, vector<1x8x16x128xf32>,
    return
  }
  func.func @transform_0(%arg0: i32, %arg1: i32) -> (i32, i32, i32, i32) {
    %c0_i32 = arith.constant 0 : i32
    %c0_i32_0 = arith.constant 0 : i32
    %c0_i32_1 = arith.constant 0 : i32
    %c0_i32_2 = arith.constant 0 : i32
    return %arg0, %c0_i32, %c0_i32_0, %c0_i32_1 : i32, i32, i32, i32
  }
  func.func @transform_1(%arg0: i32, %arg1: i32) -> (i32, i32, i32) {
    %c0_i32 = arith.constant 0 : i32
    %c0_i32_0 = arith.constant 0 : i32
    %c0_i32_1 = arith.constant 0 : i32
    %c0_i32_2 = arith.constant 0 : i32
    return %c0_i32, %c0_i32_0, %c0_i32_1 : i32, i32, i32
  }
  func.func @transform_2(%arg0: i32, %arg1: i32) -> (i32, i32, i32) {
    %c0_i32 = arith.constant 0 : i32
    %c0_i32_0 = arith.constant 0 : i32
    %c0_i32_1 = arith.constant 0 : i32
    %c0_i32_2 = arith.constant 0 : i32
    return %c0_i32, %c0_i32_0, %c0_i32_1 : i32, i32, i32
  }
  func.func @transform_3(%arg0: i32, %arg1: i32) -> (i32, i32, i32, i32) {
    %c0_i32 = arith.constant 0 : i32
    %c0_i32_0 = arith.constant 0 : i32
    %c0_i32_1 = arith.constant 0 : i32
    return %arg0, %arg1, %c0_i32, %c0_i32_0 : i32, i32, i32, i32
  }
}

</mosaic_0001>

<llo_original>
// kernel: tpu_custom_call.1
$region0: #{tpu_custom_call.1}
  #allocation0 [shape = 'u32[]', space=smem, size = 0x4, offset = 0x4, fixed_abs, tag = 'smem constant byte address 0x4 - core index']
  #allocation1 [shape = 'u32[144,128]{1,0:T(1,128)}', space=vmem, size = 0x12000, scoped, tag = 'internal scratch']
  %s0 = inlined_call_operand.vmem [shape: bf16[2,21,32,4], index: 0, kind: input, shape index: {}]
  %s1 = inlined_call_operand.vmem [shape: bf16[5,4,640], index: 1, kind: input, shape index: {}]
  %s2 = inlined_call_operand.vmem [shape: f32[1,1,128], index: 2, kind: input, shape index: {}]
  %s3 = inlined_call_operand.hbm [shape: f32[2,16,16,128], index: 3, kind: output, shape index: {}]
  %s4 = sld [smem:[#allocation0]]
  $region45: #{tpu_custom_call.1} parent=0
    _
  %s6 = ssub.s32 1, %s4
  %s7 = scalar_select 0, %s6, %s4
  $region1: #{tpu_custom_call.1} parent=0
    #allocation2 [shape = 'u8[131072]{0}', space=vmem, size = 0x20000, scoped, tag = 'output window, operand 0']
    #allocation3 [shape = 's32[2]{0}', space=sflag, size = 0x8, scoped, tag = 'scoped memory for tpu_custom_call.1']
    %8 = vsyncpa [#allocation3], 0
    %s9 = scalar_lea.sflag [#allocation3], 1
    %10 = vsyncpa %s9, 0
    loop: start=0, step=1, limit=6
    $region2: #{tpu_custom_call.1} parent=1 // loop_pre_header
      _
    $region3: #{tpu_custom_call.1} parent=1 // loop_header
      %s12 = sphi 0, %s16
      %p13 = scmp.ge.s32.totalorder %s12, 6
      %s19 = sphi 0, %s31
      %s20 = sphi 0, %s27
      %s21 = sphi 0, %s19
      %s22 = sphi 0, %s20
      %s23 = sphi 0, %s21
      %s24 = sphi 0, %s22
      %s34 = sphi 0, %s36
      %s37 = sphi 0, %s34
      %s38 = sphi 0, %s37
      %s54 = sphi 0, %s38
      %s58 = sphi 0, %s58
      %s60 = sphi 0, %s58
      %s61 = sphi 0, %s60
      %s75 = sphi 0, %s61
      %s79 = sphi 0, %s79
      %s81 = sphi 0, %s79
      %s82 = sphi 0, %s81
      %s96 = sphi 0, %s82
      %s104 = sphi 0, %s106
      %s107 = sphi 0, %s104
      %s108 = sphi 0, %s107
      %s124 = sphi 0, %s108
    $region4: #{tpu_custom_call.1} parent=1 // loop_header_branch
      %15 = sbr.rel (%p13) target = $region8
    $region5: #{tpu_custom_call.1} parent=1 // loop_body
      %s17 = ssub.s32 %s12, 1
      %s18 = ssub.s32 %s12, 2
      %s25 = sadd.s32 1, %s20
      %p26 = scmp.ge.s32.totalorder %s25, 2
      %s27 = scalar_select %p26, 0, %s25
      %s28 = sadd.s32 1, %s19
      %s29 = scalar_select %p26, %s28, %s19
      %p30 = scmp.ge.s32.totalorder %s29, 2
      %s31 = scalar_select %p30, 0, %s29
      %s32 = ssub.s32 %s19, %s31
      %p33 = scmp.eq.s32.totalorder %s32, 0
      %s35 = sadd.s32 %s34, 1
      %s36 = scalar_select %p33, %s34, %s35
      %p39 = pneg %p33
      %p40 = scmp.eq.s32.totalorder %s12, 3
      %p41 = por %p39, %p40
      %p42 = scmp.ne.s32.totalorder %s34, %s37
      %p43 = scmp.eq.s32.totalorder %s12, 0
      %p44 = por %p42, %p43
      %p45 = scmp.ne.s32.totalorder %s34, %s37
      %p46 = scmp.eq.s32.totalorder %s17, 3
      %p47 = por %p45, %p46
      %p48 = scmp.ne.s32.totalorder %s37, %s38
      %p49 = scmp.eq.s32.totalorder %s17, 0
      %p50 = por %p48, %p49
      %p51 = scmp.ne.s32.totalorder %s37, %s38
      %p52 = scmp.eq.s32.totalorder %s18, 3
      %p53 = por %p51, %p52
      %p55 = scmp.ne.s32.totalorder %s38, %s54
      %p56 = scmp.eq.s32.totalorder %s18, 0
      %p57 = por %p55, %p56
      %s59 = sadd.s32 %s58, 1
      %p62 = scmp.eq.s32.totalorder %s12, 3
      %p63 = scmp.ne.s32.totalorder %s58, %s60
      %p64 = scmp.eq.s32.totalorder %s12, 0
      %p65 = por %p63, %p64
      %p66 = scmp.ne.s32.totalorder %s58, %s60
      %p67 = scmp.eq.s32.totalorder %s17, 3
      %p68 = por %p66, %p67
      %p69 = scmp.ne.s32.totalorder %s60, %s61
      %p70 = scmp.eq.s32.totalorder %s17, 0
      %p71 = por %p69, %p70
      %p72 = scmp.ne.s32.totalorder %s60, %s61
      %p73 = scmp.eq.s32.totalorder %s18, 3
      %p74 = por %p72, %p73
      %p76 = scmp.ne.s32.totalorder %s61, %s75
      %p77 = scmp.eq.s32.totalorder %s18, 0
      %p78 = por %p76, %p77
      %s80 = sadd.s32 %s79, 1
      %p83 = scmp.eq.s32.totalorder %s12, 3
      %p84 = scmp.ne.s32.totalorder %s79, %s81
      %p85 = scmp.eq.s32.totalorder %s12, 0
      %p86 = por %p84, %p85
      %p87 = scmp.ne.s32.totalorder %s79, %s81
      %p88 = scmp.eq.s32.totalorder %s17, 3
      %p89 = por %p87, %p88
      %p90 = scmp.ne.s32.totalorder %s81, %s82
      %p91 = scmp.eq.s32.totalorder %s17, 0
      %p92 = por %p90, %p91
      %p93 = scmp.ne.s32.totalorder %s81, %s82
      %p94 = scmp.eq.s32.totalorder %s18, 3
      %p95 = por %p93, %p94
      %p97 = scmp.ne.s32.totalorder %s82, %s96
      %p98 = scmp.eq.s32.totalorder %s18, 0
      %p99 = por %p97, %p98
      %s100 = ssub.s32 %s19, %s31
      %s101 = ssub.s32 %s20, %s27
      %s102 = sor.u32 %s100, %s101
      %p103 = scmp.eq.s32.totalorder %s102, 0
      %s105 = sadd.s32 %s104, 1
      %s106 = scalar_select %p103, %s104, %s105
      %p109 = pneg %p103
      %p110 = scmp.eq.s32.totalorder %s12, 3
      %p111 = por %p109, %p110
      %p112 = scmp.ne.s32.totalorder %s104, %s107
      %p113 = scmp.eq.s32.totalorder %s12, 0
      %p114 = por %p112, %p113
      %p115 = scmp.ne.s32.totalorder %s104, %s107
      %p116 = scmp.eq.s32.totalorder %s17, 3
      %p117 = por %p115, %p116
      %p118 = scmp.ne.s32.totalorder %s107, %s108
      %p119 = scmp.eq.s32.totalorder %s17, 0
      %p120 = por %p118, %p119
      %p121 = scmp.ne.s32.totalorder %s107, %s108
      %p122 = scmp.eq.s32.totalorder %s18, 3
      %p123 = por %p121, %p122
      %p125 = scmp.ne.s32.totalorder %s108, %s124
      %p126 = scmp.eq.s32.totalorder %s18, 0
      %p127 = por %p125, %p126
      %p128 = scmp.le.s32.totalorder 1, %s12
      %p129 = scmp.lt.s32.totalorder %s12, 5
      %p130 = pnand %p128, %p129
      %p131 = pneg %p130
      // Predicated region
      $region9: #{tpu_custom_call.1} parent=5 // pred_check
        _
      $region10: #{tpu_custom_call.1} parent=5 // pred_check_branch
        %133 = sbr.rel (%p130) target = $region12
      $region11: #{tpu_custom_call.1} parent=5 // pred_region
        %s134 = ssub.s32 %s12, 1
        // Predicated region
        $region13: #{tpu_custom_call.1} parent=11 // pred_check
          %p135 = pneg %p71
        $region14: #{tpu_custom_call.1} parent=11 // pred_check_branch
          %137 = sbr.rel (%p135) target = $region16
        $region15: #{tpu_custom_call.1} parent=11 // pred_region
          _
        $region16: #{tpu_custom_call.1} parent=11 // pred_fallthru
          _
        // Predicated region
        $region17: #{tpu_custom_call.1} parent=11 // pred_check
          %p138 = pneg %p92
        $region18: #{tpu_custom_call.1} parent=11 // pred_check_branch
          %140 = sbr.rel (%p138) target = $region20
        $region19: #{tpu_custom_call.1} parent=11 // pred_region
          _
        $region20: #{tpu_custom_call.1} parent=11 // pred_fallthru
          _
      $region12: #{tpu_custom_call.1} parent=5 // pred_fallthru
        _
      %p141 = scmp.lt.s32.totalorder %s12, 4
      // Predicated region
      $region21: #{tpu_custom_call.1} parent=5 // pred_check
        %p142 = pneg %p141
      $region22: #{tpu_custom_call.1} parent=5 // pred_check_branch
        %144 = sbr.rel (%p142) target = $region24
      $region23: #{tpu_custom_call.1} parent=5 // pred_region
        // Predicated region
        $region25: #{tpu_custom_call.1} parent=23 // pred_check
          %p145 = pneg %p44
        $region26: #{tpu_custom_call.1} parent=23 // pred_check_branch
          %147 = sbr.rel (%p145) target = $region28
        $region27: #{tpu_custom_call.1} parent=23 // pred_region
          %p148 = scmp.lt.s32.totalorder %s19, 1
          %s149 = scalar_select %p148, %s19, 1
          %s150 = smul.addr %s149, 84
          %s151 = smul.addr %s150, 4
          %s152 = scalar_lea.vmem %s0, %s151
        $region28: #{tpu_custom_call.1} parent=23 // pred_fallthru
          _
      $region24: #{tpu_custom_call.1} parent=5 // pred_fallthru
        _
      %p153 = scmp.le.s32.totalorder 1, %s12
      %p154 = scmp.lt.s32.totalorder %s12, 5
      %p155 = pnand %p153, %p154
      %p156 = pneg %p155
      // Predicated region
      $region29: #{tpu_custom_call.1} parent=5 // pred_check
        _
      $region30: #{tpu_custom_call.1} parent=5 // pred_check_branch
        %158 = sbr.rel (%p155) target = $region32
      $region31: #{tpu_custom_call.1} parent=5 // pred_region
        %s159 = ssub.s32 %s12, 1
        %p160 = scmp.lt.s32.totalorder %s21, 1
        %s161 = scalar_select %p160, %s21, 1
        %s162 = smul.addr %s161, 84
        %s163 = smul.addr %s162, 4
        %s164 = scalar_lea.vmem %s0, %s163
        %p165 = pneg %p50
        %p166 = pneg %p47
        %p167 = pneg %p71
        %p168 = pneg %p68
        %p169 = pneg %p92
        %p170 = pneg %p89
        %p171 = pneg %p120
        %p172 = pneg %p117
        %s173 = sand.u32 %s107, 1
        %s174 = scalar_lea.sflag [#allocation3], %s173
        %s175 = sand.u32 %s107, 1
        %s176 = smul.addr %s175, 128
        %s177 = scalar_lea.vmem [#allocation2], %s176
        %p178 = scmp.lt.s32.totalorder %s21, 1
        %s179 = scalar_select %p178, %s21, 1
        %s180 = smul.addr %s179, 84
        %s181 = smul.addr %s180, 4
        %s182 = scalar_lea.vmem %s0, %s181
        %s183 = smul.u32 8, %s22
        %s185 = smul.u32 %s22, 8
        %s186 = smul.u32 %s185, 4
        %s187 = smul.addr %s186, 4
        %s188 = scalar_lea.vmem %s182, %s187
        %v189 = vld [vmem:[%s188] sm:$0xf]
        %v190 = vld [vmem:[%s188 + $0x4] sm:$0xf]
        %v191 = vld [vmem:[%s188 + $0x8] sm:$0xf]
        %v192 = vld [vmem:[%s188 + $0xc] sm:$0xf]
        %v193 = vld [vmem:[%s188 + $0x10] sm:$0xf]
        %v194 = vld [vmem:[%s188 + $0x14] sm:$0xf]
        %v195 = vld [vmem:[%s188 + $0x18] sm:$0xf]
        %v196 = vld [vmem:[%s188 + $0x1c] sm:$0xf]
        %v197 = vld [vmem:[%s188 + $0x20] sm:$0xf]
        %v198 = vld [vmem:[%s188 + $0x24] sm:$0xf]
        %v199 = vld [vmem:[%s188 + $0x28] sm:$0xf]
        %v200 = vld [vmem:[%s188 + $0x2c] sm:$0xf]
        %v201 = vld [vmem:[%s188 + $0x30] sm:$0xf]
        %v202 = vld [vmem:[%s188 + $0x34] sm:$0xf]
        %v203 = vld [vmem:[%s188 + $0x38] sm:$0xf]
        %v204 = vld [vmem:[%s188 + $0x3c] sm:$0xf]
        %v205 = vld [vmem:[%s188 + $0x40] sm:$0xf]
        %v206 = vld [vmem:[%s188 + $0x44] sm:$0xf]
        %v207 = vld [vmem:[%s188 + $0x48] sm:$0xf]
        %v208 = vld [vmem:[%s188 + $0x4c] sm:$0xf]
        %v209 = vld [vmem:[%s188 + $0x50] sm:$0xf]
        %v210 = vld [vmem:[%s188 + $0x54] sm:$0xf]
        %v211 = vld [vmem:[%s188 + $0x58] sm:$0xf]
        %v212 = vld [vmem:[%s188 + $0x5c] sm:$0xf]
        %v213 = vld [vmem:[%s188 + $0x60] sm:$0xf]
        %v214 = vld [vmem:[%s188 + $0x64] sm:$0xf]
        %v215 = vld [vmem:[%s188 + $0x68] sm:$0xf]
        %v216 = vld [vmem:[%s188 + $0x6c] sm:$0xf]
        %v217 = vld [vmem:[%s188 + $0x70] sm:$0xf]
        %v218 = vld [vmem:[%s188 + $0x74] sm:$0xf]
        %v219 = vld [vmem:[%s188 + $0x78] sm:$0xf]
        %v220 = vld [vmem:[%s188 + $0x7c] sm:$0xf]
        %v221 = vld [vmem:[%s188 + $0x80] sm:$0xf]
        %v222 = vld [vmem:[%s188 + $0x84] sm:$0xf]
        %v223 = vld [vmem:[%s188 + $0x88] sm:$0xf]
        %v224 = vld [vmem:[%s188 + $0x8c] sm:$0xf]
        %v225 = vld [vmem:[%s188 + $0x90] sm:$0xf]
        %v226 = vld [vmem:[%s188 + $0x94] sm:$0xf]
        %v227 = vld [vmem:[%s188 + $0x98] sm:$0xf]
        %v228 = vld [vmem:[%s188 + $0x9c] sm:$0xf]
        %v229 = vld [vmem:[%s188 + $0xa0] sm:$0xf]
        %v230 = vld [vmem:[%s188 + $0xa4] sm:$0xf]
        %v231 = vld [vmem:[%s188 + $0xa8] sm:$0xf]
        %v232 = vld [vmem:[%s188 + $0xac] sm:$0xf]
        %v233 = vld [vmem:[%s188 + $0xb0] sm:$0xf]
        %v234 = vld [vmem:[%s188 + $0xb4] sm:$0xf]
        %v235 = vld [vmem:[%s188 + $0xb8] sm:$0xf]
        %v236 = vld [vmem:[%s188 + $0xbc] sm:$0xf]
        %v237 = vld [vmem:[%s188 + $0xc0] sm:$0xf]
        %v238 = vld [vmem:[%s188 + $0xc4] sm:$0xf]
        %v239 = vld [vmem:[%s1] sm:$0xff]
        %v240 = vld [vmem:[%s1 + $0x8] sm:$0x3]
        %s241 = scalar_lea.vmem %s1, 10
        %v242 = vld [vmem:[%s241] sm:$0xff]
        %v243 = vld [vmem:[%s241 + $0x8] sm:$0x3]
        %v278 = vunpack.c.l.b16 %v193
        %v279 = vunpack.c.l.b16 %v194
        %v280 = vunpack.c.l.b16 %v195
        %v281 = vunpack.c.l.b16 %v196
        %v282 = vunpack.c.l.b16 %v197
        %v283 = vunpack.c.l.b16 %v198
        %v284 = vunpack.c.l.b16 %v199
        %v285 = vunpack.c.l.b16 %v200
        %v286 = vunpack.c.l.b16 %v201
        %v287 = vunpack.c.l.b16 %v202
        %v288 = vunpack.c.l.b16 %v203
        %v289 = vunpack.c.l.b16 %v204
        %v290 = vunpack.c.l.b16 %v205
        %v291 = vunpack.c.l.b16 %v206
        %v292 = vunpack.c.l.b16 %v207
        %v293 = vunpack.c.l.b16 %v208
        %v294 = vunpack.c.l.b16 %v209
        %v295 = vunpack.c.l.b16 %v210
        %v296 = vunpack.c.l.b16 %v211
        %v297 = vunpack.c.l.b16 %v212
        %v298 = vunpack.c.l.b16 %v213
        %v299 = vunpack.c.l.b16 %v214
        %v300 = vunpack.c.l.b16 %v215
        %v301 = vunpack.c.l.b16 %v216
        %v302 = vunpack.c.l.b16 %v217
        %v303 = vunpack.c.l.b16 %v218
        %v304 = vunpack.c.l.b16 %v219
        %v305 = vunpack.c.l.b16 %v220
        %v306 = vunpack.c.l.b16 %v221
        %v307 = vunpack.c.l.b16 %v222
        %v308 = vunpack.c.l.b16 %v223
        %v309 = vunpack.c.l.b16 %v224
        %v310 = vunpack.c.l.b16 %v225
        %v311 = vunpack.c.l.b16 %v226
        %v312 = vpack.c.b16 %v279, %v278
        %v313 = vpack.c.b16 %v281, %v280
        %v314 = vpack.c.b16 %v283, %v282
        %v315 = vpack.c.b16 %v285, %v284
        %v316 = vpack.c.b16 %v287, %v286
        %v317 = vpack.c.b16 %v289, %v288
        %v318 = vpack.c.b16 %v291, %v290
        %v319 = vpack.c.b16 %v293, %v292
        %v320 = vpack.c.b16 %v295, %v294
        %v321 = vpack.c.b16 %v297, %v296
        %v322 = vpack.c.b16 %v299, %v298
        %v323 = vpack.c.b16 %v301, %v300
        %v324 = vpack.c.b16 %v303, %v302
        %v325 = vpack.c.b16 %v305, %v304
        %v326 = vpack.c.b16 %v307, %v306
        %v327 = vpack.c.b16 %v309, %v308
        %v328 = vpack.c.b16 %v311, %v310
        %v331 = vcombine.high %v242, %v242
        %v333 = vunpack.c.l.s4 1983009808
        %v334 = vunpack.c.0.s8 %v333
        %v335 = vlaneseq
        %v336 = vshrl.u32 %v335, 7
        %v337 = vsub.s32 %v334, %v336
        %v338 = vrot.slane %v242, %v337
        %v340 = vunpack.c.l.s4 1983009808
        %v341 = vunpack.c.0.s8 %v340
        %v342 = vlaneseq
        %v343 = vshrl.u32 %v342, 7
        %v344 = vsub.s32 %v341, %v343
        %v345 = vrot.slane %v331, %v344
        %v346 = vcombine.high %v338, %v338
        %v347 = vcombine.high %v345, %v345
        %v349 = vunpack.c.l.s4 1983009808
        %v350 = vunpack.c.0.s8 %v349
        %v351 = vlaneseq
        %v352 = vshrl.u32 %v351, 7
        %v353 = vsub.s32 %v350, %v352
        %v354 = vrot.slane %v243, %v353
        %vm355 = vcmask 31744
        %v357 = vsel %vm355, %v312, 0
        %v360 = vsel %vm355, %v313, 0
        %v363 = vsel %vm355, %v314, 0
        %v366 = vsel %vm355, %v315, 0
        %v369 = vsel %vm355, %v316, 0
        %v372 = vsel %vm355, %v317, 0
        %v375 = vsel %vm355, %v318, 0
        %v378 = vsel %vm355, %v319, 0
        %v381 = vsel %vm355, %v320, 0
        %v384 = vsel %vm355, %v321, 0
        %v387 = vsel %vm355, %v322, 0
        %v390 = vsel %vm355, %v323, 0
        %v393 = vsel %vm355, %v324, 0
        %v396 = vsel %vm355, %v325, 0
        %v399 = vsel %vm355, %v326, 0
        %v402 = vsel %vm355, %v327, 0
        %v405 = vsel %vm355, %v328, 0
        %vm407 = vcmask 1041408
        %v409 = vsel %vm407, %v338, 0
        %v412 = vsel %vm407, %v346, 0
        %v415 = vsel %vm407, %v345, 0
        %v418 = vsel %vm407, %v347, 0
        %v421 = vsel %vm407, %v354, 0
        %423 = vmatprep.subr.bf16.mxu0 %v412
        %424 = vmatpush1.bf16.msra.mxu0 %v409
        %425 = vmatprep.subr.bf16.mxu0 0
        %426 = vmatpush1.bf16.msra.mxu0 0
        %427 = vmatprep.subr.bf16.mxu0 0
        %428 = vmatpush1.bf16.msra.mxu0 0
        %429 = vmatprep.subr.bf16.mxu0 0
        %430 = vmatpush1.bf16.msra.mxu0 0
        %431 = vmatprep.subr.bf16.mxu0 0
        %432 = vmatpush1.bf16.msra.mxu0 0
        %433 = vmatprep.subr.bf16.mxu0 0
        %434 = vmatpush1.bf16.msra.mxu0 0
        %435 = vmatprep.subr.bf16.mxu0 0
        %436 = vmatpush1.bf16.msra.mxu0 0
        %437 = vmatprep.subr.bf16.mxu0 0
        %438 = vmatpush1.bf16.msra.mxu0 0
        %439 = vmatprep.subr.bf16.mxu0 0
        %440 = vmatpush1.bf16.msra.mxu0 0
        %441 = vmatprep.subr.bf16.mxu0 0
        %442 = vmatpush1.bf16.msra.mxu0 0
        %443 = vmatprep.subr.bf16.mxu0 0
        %444 = vmatpush1.bf16.msra.mxu0 0
        %445 = vmatprep.subr.bf16.mxu0 0
        %446 = vmatpush1.bf16.msra.mxu0 0
        %447 = vmatprep.subr.bf16.mxu0 0
        %448 = vmatpush1.bf16.msra.mxu0 0
        %449 = vmatprep.subr.bf16.mxu0 0
        %450 = vmatpush1.bf16.msra.mxu0 0
        %451 = vmatprep.subr.bf16.mxu0 0
        %452 = vmatpush1.bf16.msra.mxu0 0
        %453 = vmatprep.subr.bf16.mxu0 0
        %454 = vmatpush1.bf16.msra.mxu0 0
        %455 = vmatprep.mubr.bf16.mxu0 0
        %456 = vmatmul.mubr.bf16.gmra.mrb[0].mxu0 %v357
        %v457 = vpop.f32.mrb[0].mxu0
        %v458 = vadd.f32 0.0, %v457
        %v459 = vpop.f32.mrb[0].mxu0
        %v460 = vadd.f32 0.0, %v459
        %v461 = vpop.f32.mrb[0].mxu0
        %v462 = vadd.f32 0.0, %v461
        %v463 = vpop.f32.mrb[0].mxu0
        %v464 = vadd.f32 0.0, %v463
        %465 = vmatprep.mubr.bf16.mxu0 0
        %466 = vmatmul.mubr.bf16.gmra.mrb[0].mxu0 %v360
        %v467 = vpop.f32.mrb[0].mxu0
        %v468 = vpop.f32.mrb[0].mxu0
        %v469 = vadd.f32 0.0, %v468
        %v470 = vpop.f32.mrb[0].mxu0
        %v471 = vpop.f32.mrb[0].mxu0
        %472 = vmatprep.mubr.bf16.mxu0 0
        %473 = vmatmul.mubr.bf16.gmra.mrb[0].mxu0 %v363
        %v474 = vpop.f32.mrb[0].mxu0
        %v475 = vadd.f32 0.0, %v474
        %v476 = vpop.f32.mrb[0].mxu0
        %v477 = vadd.f32 0.0, %v476
        %v478 = vpop.f32.mrb[0].mxu0
        %v479 = vadd.f32 0.0, %v478
        %v480 = vpop.f32.mrb[0].mxu0
        %v481 = vadd.f32 0.0, %v480
        %482 = vmatprep.mubr.bf16.mxu0 0
        %483 = vmatmul.mubr.bf16.gmra.mrb[0].mxu0 %v366
        %v484 = vpop.f32.mrb[0].mxu0
        %v485 = vpop.f32.mrb[0].mxu0
        %v486 = vadd.f32 0.0, %v485
        %v487 = vpop.f32.mrb[0].mxu0
        %v488 = vpop.f32.mrb[0].mxu0
        %489 = vmatprep.mubr.bf16.mxu0 0
        %490 = vmatmul.mubr.bf16.gmra.mrb[0].mxu0 %v369
        %v491 = vpop.f32.mrb[0].mxu0
        %v492 = vadd.f32 0.0, %v491
        %v493 = vpop.f32.mrb[0].mxu0
        %v494 = vadd.f32 0.0, %v493
        %v495 = vpop.f32.mrb[0].mxu0
        %v496 = vadd.f32 0.0, %v495
        %v497 = vpop.f32.mrb[0].mxu0
        %v498 = vadd.f32 0.0, %v497
        %499 = vmatprep.mubr.bf16.mxu0 0
        %500 = vmatmul.mubr.bf16.gmra.mrb[0].mxu0 %v372
        %v501 = vpop.f32.mrb[0].mxu0
        %v502 = vpop.f32.mrb[0].mxu0
        %v503 = vadd.f32 0.0, %v502
        %v504 = vpop.f32.mrb[0].mxu0
        %v505 = vpop.f32.mrb[0].mxu0
        %506 = vmatprep.mubr.bf16.mxu0 0
        %507 = vmatmul.mubr.bf16.gmra.mrb[0].mxu0 %v375
        %v508 = vpop.f32.mrb[0].mxu0
        %v509 = vadd.f32 0.0, %v508
        %v510 = vpop.f32.mrb[0].mxu0
        %v511 = vadd.f32 0.0, %v510
        %v512 = vpop.f32.mrb[0].mxu0
        %v513 = vadd.f32 0.0, %v512
        %v514 = vpop.f32.mrb[0].mxu0
        %v515 = vadd.f32 0.0, %v514
        %516 = vmatprep.mubr.bf16.mxu0 0
        %517 = vmatmul.mubr.bf16.gmra.mrb[0].mxu0 %v378
        %v518 = vpop.f32.mrb[0].mxu0
        %v519 = vpop.f32.mrb[0].mxu0
        %v520 = vadd.f32 0.0, %v519
        %v521 = vpop.f32.mrb[0].mxu0
        %v522 = vpop.f32.mrb[0].mxu0
        %523 = vmatprep.mubr.bf16.mxu0 0
        %524 = vmatmul.mubr.bf16.gmra.mrb[0].mxu0 %v381
        %v525 = vpop.f32.mrb[0].mxu0
        %v526 = vadd.f32 0.0, %v525
        %v527 = vpop.f32.mrb[0].mxu0
        %v528 = vadd.f32 0.0, %v527
        %v529 = vpop.f32.mrb[0].mxu0
        %v530 = vadd.f32 0.0, %v529
        %v531 = vpop.f32.mrb[0].mxu0
        %v532 = vadd.f32 0.0, %v531
        %533 = vmatprep.mubr.bf16.mxu0 0
        %534 = vmatmul.mubr.bf16.gmra.mrb[0].mxu0 %v384
        %v535 = vpop.f32.mrb[0].mxu0
        %v536 = vpop.f32.mrb[0].mxu0
        %v537 = vadd.f32 0.0, %v536
        %v538 = vpop.f32.mrb[0].mxu0
        %v539 = vpop.f32.mrb[0].mxu0
        %540 = vmatprep.mubr.bf16.mxu0 0
        %541 = vmatmul.mubr.bf16.gmra.mrb[0].mxu0 %v387
        %v542 = vpop.f32.mrb[0].mxu0
        %v543 = vadd.f32 0.0, %v542
        %v544 = vpop.f32.mrb[0].mxu0
        %v545 = vadd.f32 0.0, %v544
        %v546 = vpop.f32.mrb[0].mxu0
        %v547 = vadd.f32 0.0, %v546
        %v548 = vpop.f32.mrb[0].mxu0
        %v549 = vadd.f32 0.0, %v548
        %550 = vmatprep.mubr.bf16.mxu0 0
        %551 = vmatmul.mubr.bf16.gmra.mrb[0].mxu0 %v390
        %v552 = vpop.f32.mrb[0].mxu0
        %v553 = vpop.f32.mrb[0].mxu0
        %v554 = vadd.f32 0.0, %v553
        %v555 = vpop.f32.mrb[0].mxu0
        %v556 = vpop.f32.mrb[0].mxu0
        %557 = vmatprep.mubr.bf16.mxu0 0
        %558 = vmatmul.mubr.bf16.gmra.mrb[0].mxu0 %v393
        %v559 = vpop.f32.mrb[0].mxu0
        %v560 = vadd.f32 0.0, %v559
        %v561 = vpop.f32.mrb[0].mxu0
        %v562 = vadd.f32 0.0, %v561
        %v563 = vpop.f32.mrb[0].mxu0
        %v564 = vadd.f32 0.0, %v563
        %v565 = vpop.f32.mrb[0].mxu0
        %v566 = vadd.f32 0.0, %v565
        %567 = vmatprep.mubr.bf16.mxu0 0
        %568 = vmatmul.mubr.bf16.gmra.mrb[0].mxu0 %v396
        %v569 = vpop.f32.mrb[0].mxu0
        %v570 = vpop.f32.mrb[0].mxu0
        %v571 = vadd.f32 0.0, %v570
        %v572 = vpop.f32.mrb[0].mxu0
        %v573 = vpop.f32.mrb[0].mxu0
        %574 = vmatprep.mubr.bf16.mxu0 0
        %575 = vmatmul.mubr.bf16.gmra.mrb[0].mxu0 %v399
        %v576 = vpop.f32.mrb[0].mxu0
        %v577 = vadd.f32 0.0, %v576
        %v578 = vpop.f32.mrb[0].mxu0
        %v579 = vadd.f32 0.0, %v578
        %v580 = vpop.f32.mrb[0].mxu0
        %v581 = vadd.f32 0.0, %v580
        %v582 = vpop.f32.mrb[0].mxu0
        %v583 = vadd.f32 0.0, %v582
        %584 = vmatprep.mubr.bf16.mxu0 0
        %585 = vmatmul.mubr.bf16.gmra.mrb[0].mxu0 %v402
        %v586 = vpop.f32.mrb[0].mxu0
        %v587 = vpop.f32.mrb[0].mxu0
        %v588 = vadd.f32 0.0, %v587
        %v589 = vpop.f32.mrb[0].mxu0
        %v590 = vpop.f32.mrb[0].mxu0
        %591 = vmatprep.mubr.bf16.mxu0 0
        %592 = vmatmul.mubr.bf16.gmra.mrb[0].mxu0 %v405
        %v593 = vpop.f32.mrb[0].mxu0
        %v594 = vpop.f32.mrb[0].mxu0
        %v595 = vpop.f32.mrb[0].mxu0
        %v596 = vpop.f32.mrb[0].mxu0
        %597 = vdwg.mxu0
        %598 = vmatprep.subr.bf16.mxu0 %v418
        %599 = vmatpush1.bf16.msra.mxu0 %v415
        %600 = vmatprep.subr.bf16.mxu0 0
        %601 = vmatpush1.bf16.msra.mxu0 0
        %602 = vmatprep.subr.bf16.mxu0 0
        %603 = vmatpush1.bf16.msra.mxu0 0
        %604 = vmatprep.subr.bf16.mxu0 0
        %605 = vmatpush1.bf16.msra.mxu0 0
        %606 = vmatprep.subr.bf16.mxu0 0
        %607 = vmatpush1.bf16.msra.mxu0 0
        %608 = vmatprep.subr.bf16.mxu0 0
        %609 = vmatpush1.bf16.msra.mxu0 0
        %610 = vmatprep.subr.bf16.mxu0 0
        %611 = vmatpush1.bf16.msra.mxu0 0
        %612 = vmatprep.subr.bf16.mxu0 0
        %613 = vmatpush1.bf16.msra.mxu0 0
        %614 = vmatprep.subr.bf16.mxu0 0
        %615 = vmatpush1.bf16.msra.mxu0 0
        %616 = vmatprep.subr.bf16.mxu0 0
        %617 = vmatpush1.bf16.msra.mxu0 0
        %618 = vmatprep.subr.bf16.mxu0 0
        %619 = vmatpush1.bf16.msra.mxu0 0
        %620 = vmatprep.subr.bf16.mxu0 0
        %621 = vmatpush1.bf16.msra.mxu0 0
        %622 = vmatprep.subr.bf16.mxu0 0
        %623 = vmatpush1.bf16.msra.mxu0 0
        %624 = vmatprep.subr.bf16.mxu0 0
        %625 = vmatpush1.bf16.msra.mxu0 0
        %626 = vmatprep.subr.bf16.mxu0 0
        %627 = vmatpush1.bf16.msra.mxu0 0
        %628 = vmatprep.subr.bf16.mxu0 0
        %629 = vmatpush1.bf16.msra.mxu0 0
        %630 = vmatprep.mubr.bf16.mxu0 0
        %631 = vmatmul.mubr.bf16.gmra.mrb[0].mxu0 %v357
        %v632 = vpop.f32.mrb[0].mxu0
        %v633 = vadd.f32 0.0, %v632
        %v634 = vpop.f32.mrb[0].mxu0
        %v635 = vadd.f32 0.0, %v634
        %v636 = vpop.f32.mrb[0].mxu0
        %v637 = vadd.f32 0.0, %v636
        %v638 = vpop.f32.mrb[0].mxu0
        %v639 = vadd.f32 0.0, %v638
        %640 = vmatprep.mubr.bf16.mxu0 0
        %641 = vmatmul.mubr.bf16.gmra.mrb[0].mxu0 %v360
        %v642 = vpop.f32.mrb[0].mxu0
        %v643 = vadd.f32 0.0, %v642
        %v644 = vpop.f32.mrb[0].mxu0
        %v645 = vadd.f32 0.0, %v644
        %v646 = vpop.f32.mrb[0].mxu0
        %v647 = vpop.f32.mrb[0].mxu0
        %648 = vmatprep.mubr.bf16.mxu0 0
        %649 = vmatmul.mubr.bf16.gmra.mrb[0].mxu0 %v363
        %v650 = vpop.f32.mrb[0].mxu0
        %v651 = vadd.f32 0.0, %v650
        %v652 = vpop.f32.mrb[0].mxu0
        %v653 = vadd.f32 0.0, %v652
        %v654 = vpop.f32.mrb[0].mxu0
        %v655 = vadd.f32 0.0, %v654
        %v656 = vpop.f32.mrb[0].mxu0
        %v657 = vadd.f32 0.0, %v656
        %658 = vmatprep.mubr.bf16.mxu0 0
        %659 = vmatmul.mubr.bf16.gmra.mrb[0].mxu0 %v366
        %v660 = vpop.f32.mrb[0].mxu0
        %v661 = vadd.f32 0.0, %v660
        %v662 = vpop.f32.mrb[0].mxu0
        %v663 = vadd.f32 0.0, %v662
        %v664 = vpop.f32.mrb[0].mxu0
        %v665 = vpop.f32.mrb[0].mxu0
        %666 = vmatprep.mubr.bf16.mxu0 0
        %667 = vmatmul.mubr.bf16.gmra.mrb[0].mxu0 %v369
        %v668 = vpop.f32.mrb[0].mxu0
        %v669 = vadd.f32 0.0, %v668
        %v670 = vpop.f32.mrb[0].mxu0
        %v671 = vadd.f32 0.0, %v670
        %v672 = vpop.f32.mrb[0].mxu0
        %v673 = vadd.f32 0.0, %v672
        %v674 = vpop.f32.mrb[0].mxu0
        %v675 = vadd.f32 0.0, %v674
        %676 = vmatprep.mubr.bf16.mxu0 0
        %677 = vmatmul.mubr.bf16.gmra.mrb[0].mxu0 %v372
        %v678 = vpop.f32.mrb[0].mxu0
        %v679 = vadd.f32 0.0, %v678
        %v680 = vpop.f32.mrb[0].mxu0
        %v681 = vadd.f32 0.0, %v680
        %v682 = vpop.f32.mrb[0].mxu0
        %v683 = vpop.f32.mrb[0].mxu0
        %684 = vmatprep.mubr.bf16.mxu0 0
        %685 = vmatmul.mubr.bf16.gmra.mrb[0].mxu0 %v375
        %v686 = vpop.f32.mrb[0].mxu0
        %v687 = vadd.f32 0.0, %v686
        %v688 = vpop.f32.mrb[0].mxu0
        %v689 = vadd.f32 0.0, %v688
        %v690 = vpop.f32.mrb[0].mxu0
        %v691 = vadd.f32 0.0, %v690
        %v692 = vpop.f32.mrb[0].mxu0
        %v693 = vadd.f32 0.0, %v692
        %694 = vmatprep.mubr.bf16.mxu0 0
        %695 = vmatmul.mubr.bf16.gmra.mrb[0].mxu0 %v378
        %v696 = vpop.f32.mrb[0].mxu0
        %v697 = vadd.f32 0.0, %v696
        %v698 = vpop.f32.mrb[0].mxu0
        %v699 = vadd.f32 0.0, %v698
        %v700 = vpop.f32.mrb[0].mxu0
        %v701 = vpop.f32.mrb[0].mxu0
        %702 = vmatprep.mubr.bf16.mxu0 0
        %703 = vmatmul.mubr.bf16.gmra.mrb[0].mxu0 %v381
        %v704 = vpop.f32.mrb[0].mxu0
        %v705 = vadd.f32 0.0, %v704
        %v706 = vpop.f32.mrb[0].mxu0
        %v707 = vadd.f32 0.0, %v706
        %v708 = vpop.f32.mrb[0].mxu0
        %v709 = vadd.f32 0.0, %v708
        %v710 = vpop.f32.mrb[0].mxu0
        %v711 = vadd.f32 0.0, %v710
        %712 = vmatprep.mubr.bf16.mxu0 0
        %713 = vmatmul.mubr.bf16.gmra.mrb[0].mxu0 %v384
        %v714 = vpop.f32.mrb[0].mxu0
        %v715 = vadd.f32 0.0, %v714
        %v716 = vpop.f32.mrb[0].mxu0
        %v717 = vadd.f32 0.0, %v716
        %v718 = vpop.f32.mrb[0].mxu0
        %v719 = vpop.f32.mrb[0].mxu0
        %720 = vmatprep.mubr.bf16.mxu0 0
        %721 = vmatmul.mubr.bf16.gmra.mrb[0].mxu0 %v387
        %v722 = vpop.f32.mrb[0].mxu0
        %v723 = vadd.f32 0.0, %v722
        %v724 = vpop.f32.mrb[0].mxu0
        %v725 = vadd.f32 0.0, %v724
        %v726 = vpop.f32.mrb[0].mxu0
        %v727 = vadd.f32 0.0, %v726
        %v728 = vpop.f32.mrb[0].mxu0
        %v729 = vadd.f32 0.0, %v728
        %730 = vmatprep.mubr.bf16.mxu0 0
        %731 = vmatmul.mubr.bf16.gmra.mrb[0].mxu0 %v390
        %v732 = vpop.f32.mrb[0].mxu0
        %v733 = vadd.f32 0.0, %v732
        %v734 = vpop.f32.mrb[0].mxu0
        %v735 = vadd.f32 0.0, %v734
        %v736 = vpop.f32.mrb[0].mxu0
        %v737 = vpop.f32.mrb[0].mxu0
        %738 = vmatprep.mubr.bf16.mxu0 0
        %739 = vmatmul.mubr.bf16.gmra.mrb[0].mxu0 %v393
        %v740 = vpop.f32.mrb[0].mxu0
        %v741 = vadd.f32 0.0, %v740
        %v742 = vpop.f32.mrb[0].mxu0
        %v743 = vadd.f32 0.0, %v742
        %v744 = vpop.f32.mrb[0].mxu0
        %v745 = vadd.f32 0.0, %v744
        %v746 = vpop.f32.mrb[0].mxu0
        %v747 = vadd.f32 0.0, %v746
        %748 = vmatprep.mubr.bf16.mxu0 0
        %749 = vmatmul.mubr.bf16.gmra.mrb[0].mxu0 %v396
        %v750 = vpop.f32.mrb[0].mxu0
        %v751 = vadd.f32 0.0, %v750
        %v752 = vpop.f32.mrb[0].mxu0
        %v753 = vadd.f32 0.0, %v752
        %v754 = vpop.f32.mrb[0].mxu0
        %v755 = vpop.f32.mrb[0].mxu0
        %756 = vmatprep.mubr.bf16.mxu0 0
        %757 = vmatmul.mubr.bf16.gmra.mrb[0].mxu0 %v399
        %v758 = vpop.f32.mrb[0].mxu0
        %v759 = vadd.f32 0.0, %v758
        %v760 = vpop.f32.mrb[0].mxu0
        %v761 = vadd.f32 0.0, %v760
        %v762 = vpop.f32.mrb[0].mxu0
        %v763 = vadd.f32 0.0, %v762
        %v764 = vpop.f32.mrb[0].mxu0
        %v765 = vadd.f32 0.0, %v764
        %766 = vmatprep.mubr.bf16.mxu0 0
        %767 = vmatmul.mubr.bf16.gmra.mrb[0].mxu0 %v402
        %v768 = vpop.f32.mrb[0].mxu0
        %v769 = vadd.f32 0.0, %v768
        %v770 = vpop.f32.mrb[0].mxu0
        %v771 = vadd.f32 0.0, %v770
        %v772 = vpop.f32.mrb[0].mxu0
        %v773 = vpop.f32.mrb[0].mxu0
        %774 = vmatprep.mubr.bf16.mxu0 0
        %775 = vmatmul.mubr.bf16.gmra.mrb[0].mxu0 %v405
        %v776 = vpop.f32.mrb[0].mxu0
        %v777 = vpop.f32.mrb[0].mxu0
        %v778 = vpop.f32.mrb[0].mxu0
        %v779 = vpop.f32.mrb[0].mxu0
        %780 = vdwg.mxu0
        %781 = vmatprep.subr.bf16.mxu0 0
        %782 = vmatpush1.bf16.msra.mxu0 %v421
        %783 = vmatprep.subr.bf16.mxu0 0
        %784 = vmatpush1.bf16.msra.mxu0 0
        %785 = vmatprep.subr.bf16.mxu0 0
        %786 = vmatpush1.bf16.msra.mxu0 0
        %787 = vmatprep.subr.bf16.mxu0 0
        %788 = vmatpush1.bf16.msra.mxu0 0
        %789 = vmatprep.subr.bf16.mxu0 0
        %790 = vmatpush1.bf16.msra.mxu0 0
        %791 = vmatprep.subr.bf16.mxu0 0
        %792 = vmatpush1.bf16.msra.mxu0 0
        %793 = vmatprep.subr.bf16.mxu0 0
        %794 = vmatpush1.bf16.msra.mxu0 0
        %795 = vmatprep.subr.bf16.mxu0 0
        %796 = vmatpush1.bf16.msra.mxu0 0
        %797 = vmatprep.subr.bf16.mxu0 0
        %798 = vmatpush1.bf16.msra.mxu0 0
        %799 = vmatprep.subr.bf16.mxu0 0
        %800 = vmatpush1.bf16.msra.mxu0 0
        %801 = vmatprep.subr.bf16.mxu0 0
        %802 = vmatpush1.bf16.msra.mxu0 0
        %803 = vmatprep.subr.bf16.mxu0 0
        %804 = vmatpush1.bf16.msra.mxu0 0
        %805 = vmatprep.subr.bf16.mxu0 0
        %806 = vmatpush1.bf16.msra.mxu0 0
        %807 = vmatprep.subr.bf16.mxu0 0
        %808 = vmatpush1.bf16.msra.mxu0 0
        %809 = vmatprep.subr.bf16.mxu0 0
        %810 = vmatpush1.bf16.msra.mxu0 0
        %811 = vmatprep.subr.bf16.mxu0 0
        %812 = vmatpush1.bf16.msra.mxu0 0
        %813 = vmatprep.mubr.bf16.mxu0 0
        %814 = vmatmul.mubr.bf16.gmra.mrb[0].mxu0 %v357
        %v815 = vpop.f32.mrb[0].mxu0
        %v816 = vadd.f32 0.0, %v815
        %v817 = vpop.f32.mrb[0].mxu0
        %v818 = vpop.f32.mrb[0].mxu0
        %v819 = vadd.f32 0.0, %v818
        %v820 = vpop.f32.mrb[0].mxu0
        %821 = vmatprep.mubr.bf16.mxu0 0
        %822 = vmatmul.mubr.bf16.gmra.mrb[0].mxu0 %v360
        %v823 = vpop.f32.mrb[0].mxu0
        %v824 = vadd.f32 0.0, %v823
        %v825 = vpop.f32.mrb[0].mxu0
        %v826 = vpop.f32.mrb[0].mxu0
        %v827 = vpop.f32.mrb[0].mxu0
        %828 = vmatprep.mubr.bf16.mxu0 0
        %829 = vmatmul.mubr.bf16.gmra.mrb[0].mxu0 %v363
        %v830 = vpop.f32.mrb[0].mxu0
        %v831 = vadd.f32 0.0, %v830
        %v832 = vpop.f32.mrb[0].mxu0
        %v833 = vpop.f32.mrb[0].mxu0
        %v834 = vadd.f32 0.0, %v833
        %v835 = vpop.f32.mrb[0].mxu0
        %836 = vmatprep.mubr.bf16.mxu0 0
        %837 = vmatmul.mubr.bf16.gmra.mrb[0].mxu0 %v366
        %v838 = vpop.f32.mrb[0].mxu0
        %v839 = vadd.f32 0.0, %v838
        %v840 = vpop.f32.mrb[0].mxu0
        %v841 = vpop.f32.mrb[0].mxu0
        %v842 = vpop.f32.mrb[0].mxu0
        %843 = vmatprep.mubr.bf16.mxu0 0
        %844 = vmatmul.mubr.bf16.gmra.mrb[0].mxu0 %v369
        %v845 = vpop.f32.mrb[0].mxu0
        %v846 = vadd.f32 0.0, %v845
        %v847 = vpop.f32.mrb[0].mxu0
        %v848 = vpop.f32.mrb[0].mxu0
        %v849 = vadd.f32 0.0, %v848
        %v850 = vpop.f32.mrb[0].mxu0
        %851 = vmatprep.mubr.bf16.mxu0 0
        %852 = vmatmul.mubr.bf16.gmra.mrb[0].mxu0 %v372
        %v853 = vpop.f32.mrb[0].mxu0
        %v854 = vadd.f32 0.0, %v853
        %v855 = vpop.f32.mrb[0].mxu0
        %v856 = vpop.f32.mrb[0].mxu0
        %v857 = vpop.f32.mrb[0].mxu0
        %858 = vmatprep.mubr.bf16.mxu0 0
        %859 = vmatmul.mubr.bf16.gmra.mrb[0].mxu0 %v375
        %v860 = vpop.f32.mrb[0].mxu0
        %v861 = vadd.f32 0.0, %v860
        %v862 = vpop.f32.mrb[0].mxu0
        %v863 = vpop.f32.mrb[0].mxu0
        %v864 = vadd.f32 0.0, %v863
        %v865 = vpop.f32.mrb[0].mxu0
        %866 = vmatprep.mubr.bf16.mxu0 0
        %867 = vmatmul.mubr.bf16.gmra.mrb[0].mxu0 %v378
        %v868 = vpop.f32.mrb[0].mxu0
        %v869 = vadd.f32 0.0, %v868
        %v870 = vpop.f32.mrb[0].mxu0
        %v871 = vpop.f32.mrb[0].mxu0
        %v872 = vpop.f32.mrb[0].mxu0
        %873 = vmatprep.mubr.bf16.mxu0 0
        %874 = vmatmul.mubr.bf16.gmra.mrb[0].mxu0 %v381
        %v875 = vpop.f32.mrb[0].mxu0
        %v876 = vadd.f32 0.0, %v875
        %v877 = vpop.f32.mrb[0].mxu0
        %v878 = vpop.f32.mrb[0].mxu0
        %v879 = vadd.f32 0.0, %v878
        %v880 = vpop.f32.mrb[0].mxu0
        %881 = vmatprep.mubr.bf16.mxu0 0
        %882 = vmatmul.mubr.bf16.gmra.mrb[0].mxu0 %v384
        %v883 = vpop.f32.mrb[0].mxu0
        %v884 = vadd.f32 0.0, %v883
        %v885 = vpop.f32.mrb[0].mxu0
        %v886 = vpop.f32.mrb[0].mxu0
        %v887 = vpop.f32.mrb[0].mxu0
        %888 = vmatprep.mubr.bf16.mxu0 0
        %889 = vmatmul.mubr.bf16.gmra.mrb[0].mxu0 %v387
        %v890 = vpop.f32.mrb[0].mxu0
        %v891 = vadd.f32 0.0, %v890
        %v892 = vpop.f32.mrb[0].mxu0
        %v893 = vpop.f32.mrb[0].mxu0
        %v894 = vadd.f32 0.0, %v893
        %v895 = vpop.f32.mrb[0].mxu0
        %896 = vmatprep.mubr.bf16.mxu0 0
        %897 = vmatmul.mubr.bf16.gmra.mrb[0].mxu0 %v390
        %v898 = vpop.f32.mrb[0].mxu0
        %v899 = vadd.f32 0.0, %v898
        %v900 = vpop.f32.mrb[0].mxu0
        %v901 = vpop.f32.mrb[0].mxu0
        %v902 = vpop.f32.mrb[0].mxu0
        %903 = vmatprep.mubr.bf16.mxu0 0
        %904 = vmatmul.mubr.bf16.gmra.mrb[0].mxu0 %v393
        %v905 = vpop.f32.mrb[0].mxu0
        %v906 = vadd.f32 0.0, %v905
        %v907 = vpop.f32.mrb[0].mxu0
        %v908 = vpop.f32.mrb[0].mxu0
        %v909 = vadd.f32 0.0, %v908
        %v910 = vpop.f32.mrb[0].mxu0
        %911 = vmatprep.mubr.bf16.mxu0 0
        %912 = vmatmul.mubr.bf16.gmra.mrb[0].mxu0 %v396
        %v913 = vpop.f32.mrb[0].mxu0
        %v914 = vadd.f32 0.0, %v913
        %v915 = vpop.f32.mrb[0].mxu0
        %v916 = vpop.f32.mrb[0].mxu0
        %v917 = vpop.f32.mrb[0].mxu0
        %918 = vmatprep.mubr.bf16.mxu0 0
        %919 = vmatmul.mubr.bf16.gmra.mrb[0].mxu0 %v399
        %v920 = vpop.f32.mrb[0].mxu0
        %v921 = vadd.f32 0.0, %v920
        %v922 = vpop.f32.mrb[0].mxu0
        %v923 = vpop.f32.mrb[0].mxu0
        %v924 = vadd.f32 0.0, %v923
        %v925 = vpop.f32.mrb[0].mxu0
        %926 = vmatprep.mubr.bf16.mxu0 0
        %927 = vmatmul.mubr.bf16.gmra.mrb[0].mxu0 %v402
        %v928 = vpop.f32.mrb[0].mxu0
        %v929 = vadd.f32 0.0, %v928
        %v930 = vpop.f32.mrb[0].mxu0
        %v931 = vpop.f32.mrb[0].mxu0
        %v932 = vpop.f32.mrb[0].mxu0
        %933 = vmatprep.mubr.bf16.mxu0 0
        %934 = vmatmul.mubr.bf16.gmra.mrb[0].mxu0 %v405
        %v935 = vpop.f32.mrb[0].mxu0
        %v936 = vpop.f32.mrb[0].mxu0
        %v937 = vpop.f32.mrb[0].mxu0
        %v938 = vpop.f32.mrb[0].mxu0
        %939 = vdwg.mxu0
        %v944 = vunpack.c.l.b16 %v189
        %v945 = vunpack.c.l.b16 %v190
        %v946 = vunpack.c.l.b16 %v191
        %v947 = vunpack.c.l.b16 %v192
        %v948 = vpack.c.b16 %v945, %v944
        %v949 = vpack.c.b16 %v947, %v946
        %v952 = vcombine.high %v239, %v239
        %v954 = vunpack.c.l.s4 1983009808
        %v955 = vunpack.c.0.s8 %v954
        %v956 = vlaneseq
        %v957 = vshrl.u32 %v956, 7
        %v958 = vsub.s32 %v955, %v957
        %v959 = vrot.slane %v239, %v958
        %v961 = vunpack.c.l.s4 1983009808
        %v962 = vunpack.c.0.s8 %v961
        %v963 = vlaneseq
        %v964 = vshrl.u32 %v963, 7
        %v965 = vsub.s32 %v962, %v964
        %v966 = vrot.slane %v952, %v965
        %v967 = vcombine.high %v959, %v959
        %v968 = vcombine.high %v966, %v966
        %v970 = vunpack.c.l.s4 1983009808
        %v971 = vunpack.c.0.s8 %v970
        %v972 = vlaneseq
        %v973 = vshrl.u32 %v972, 7
        %v974 = vsub.s32 %v971, %v973
        %v975 = vrot.slane %v240, %v974
        %v977 = vsel %vm355, %v948, 0
        %v980 = vsel %vm355, %v949, 0
        %v983 = vsel %vm407, %v959, 0
        %v986 = vsel %vm407, %v967, 0
        %v989 = vsel %vm407, %v966, 0
        %v992 = vsel %vm407, %v968, 0
        %v995 = vsel %vm407, %v975, 0
        %997 = vmatprep.subr.bf16.mxu0 %v986
        %998 = vmatpush1.bf16.msra.mxu0 %v983
        %999 = vmatprep.subr.bf16.mxu0 0
        %1000 = vmatpush1.bf16.msra.mxu0 0
        %1001 = vmatprep.subr.bf16.mxu0 0
        %1002 = vmatpush1.bf16.msra.mxu0 0
        %1003 = vmatprep.subr.bf16.mxu0 0
        %1004 = vmatpush1.bf16.msra.mxu0 0
        %1005 = vmatprep.subr.bf16.mxu0 0
        %1006 = vmatpush1.bf16.msra.mxu0 0
        %1007 = vmatprep.subr.bf16.mxu0 0
        %1008 = vmatpush1.bf16.msra.mxu0 0
        %1009 = vmatprep.subr.bf16.mxu0 0
        %1010 = vmatpush1.bf16.msra.mxu0 0
        %1011 = vmatprep.subr.bf16.mxu0 0
        %1012 = vmatpush1.bf16.msra.mxu0 0
        %1013 = vmatprep.subr.bf16.mxu0 0
        %1014 = vmatpush1.bf16.msra.mxu0 0
        %1015 = vmatprep.subr.bf16.mxu0 0
        %1016 = vmatpush1.bf16.msra.mxu0 0
        %1017 = vmatprep.subr.bf16.mxu0 0
        %1018 = vmatpush1.bf16.msra.mxu0 0
        %1019 = vmatprep.subr.bf16.mxu0 0
        %1020 = vmatpush1.bf16.msra.mxu0 0
        %1021 = vmatprep.subr.bf16.mxu0 0
        %1022 = vmatpush1.bf16.msra.mxu0 0
        %1023 = vmatprep.subr.bf16.mxu0 0
        %1024 = vmatpush1.bf16.msra.mxu0 0
        %1025 = vmatprep.subr.bf16.mxu0 0
        %1026 = vmatpush1.bf16.msra.mxu0 0
        %1027 = vmatprep.subr.bf16.mxu0 0
        %1028 = vmatpush1.bf16.msra.mxu0 0
        %1029 = vmatprep.mubr.bf16.mxu0 0
        %1030 = vmatmul.mubr.bf16.gmra.mrb[0].mxu0 %v977
        %v1031 = vpop.f32.mrb[0].mxu0
        %v1032 = vadd.f32 %v458, %v1031
        %v1033 = vpop.f32.mrb[0].mxu0
        %v1034 = vadd.f32 %v460, %v1033
        %v1035 = vpop.f32.mrb[0].mxu0
        %v1036 = vadd.f32 %v462, %v1035
        %v1037 = vpop.f32.mrb[0].mxu0
        %v1038 = vadd.f32 %v464, %v1037
        %1039 = vmatprep.mubr.bf16.mxu0 0
        %1040 = vmatmul.mubr.bf16.gmra.mrb[0].mxu0 %v980
        %v1041 = vpop.f32.mrb[0].mxu0
        %v1042 = vpop.f32.mrb[0].mxu0
        %v1043 = vadd.f32 %v469, %v1042
        %v1044 = vpop.f32.mrb[0].mxu0
        %v1045 = vpop.f32.mrb[0].mxu0
        %1046 = vmatprep.mubr.bf16.mxu0 0
        %1047 = vmatmul.mubr.bf16.gmra.mrb[0].mxu0 %v357
        %v1048 = vpop.f32.mrb[0].mxu0
        %v1049 = vadd.f32 %v475, %v1048
        %v1050 = vpop.f32.mrb[0].mxu0
        %v1051 = vadd.f32 %v477, %v1050
        %v1052 = vpop.f32.mrb[0].mxu0
        %v1053 = vadd.f32 %v479, %v1052
        %v1054 = vpop.f32.mrb[0].mxu0
        %v1055 = vadd.f32 %v481, %v1054
        %1056 = vmatprep.mubr.bf16.mxu0 0
        %1057 = vmatmul.mubr.bf16.gmra.mrb[0].mxu0 %v360
        %v1058 = vpop.f32.mrb[0].mxu0
        %v1059 = vpop.f32.mrb[0].mxu0
        %v1060 = vadd.f32 %v486, %v1059
        %v1061 = vpop.f32.mrb[0].mxu0
        %v1062 = vpop.f32.mrb[0].mxu0
        %1063 = vmatprep.mubr.bf16.mxu0 0
        %1064 = vmatmul.mubr.bf16.gmra.mrb[0].mxu0 %v363
        %v1065 = vpop.f32.mrb[0].mxu0
        %v1066 = vadd.f32 %v492, %v1065
        %v1067 = vpop.f32.mrb[0].mxu0
        %v1068 = vadd.f32 %v494, %v1067
        %v1069 = vpop.f32.mrb[0].mxu0
        %v1070 = vadd.f32 %v496, %v1069
        %v1071 = vpop.f32.mrb[0].mxu0
        %v1072 = vadd.f32 %v498, %v1071
        %1073 = vmatprep.mubr.bf16.mxu0 0
        %1074 = vmatmul.mubr.bf16.gmra.mrb[0].mxu0 %v366
        %v1075 = vpop.f32.mrb[0].mxu0
        %v1076 = vpop.f32.mrb[0].mxu0
        %v1077 = vadd.f32 %v503, %v1076
        %v1078 = vpop.f32.mrb[0].mxu0
        %v1079 = vpop.f32.mrb[0].mxu0
        %1080 = vmatprep.mubr.bf16.mxu0 0
        %1081 = vmatmul.mubr.bf16.gmra.mrb[0].mxu0 %v369
        %v1082 = vpop.f32.mrb[0].mxu0
        %v1083 = vadd.f32 %v509, %v1082
        %v1084 = vpop.f32.mrb[0].mxu0
        %v1085 = vadd.f32 %v511, %v1084
        %v1086 = vpop.f32.mrb[0].mxu0
        %v1087 = vadd.f32 %v513, %v1086
        %v1088 = vpop.f32.mrb[0].mxu0
        %v1089 = vadd.f32 %v515, %v1088
        %1090 = vmatprep.mubr.bf16.mxu0 0
        %1091 = vmatmul.mubr.bf16.gmra.mrb[0].mxu0 %v372
        %v1092 = vpop.f32.mrb[0].mxu0
        %v1093 = vpop.f32.mrb[0].mxu0
        %v1094 = vadd.f32 %v520, %v1093
        %v1095 = vpop.f32.mrb[0].mxu0
        %v1096 = vpop.f32.mrb[0].mxu0
        %1097 = vmatprep.mubr.bf16.mxu0 0
        %1098 = vmatmul.mubr.bf16.gmra.mrb[0].mxu0 %v375
        %v1099 = vpop.f32.mrb[0].mxu0
        %v1100 = vadd.f32 %v526, %v1099
        %v1101 = vpop.f32.mrb[0].mxu0
        %v1102 = vadd.f32 %v528, %v1101
        %v1103 = vpop.f32.mrb[0].mxu0
        %v1104 = vadd.f32 %v530, %v1103
        %v1105 = vpop.f32.mrb[0].mxu0
        %v1106 = vadd.f32 %v532, %v1105
        %1107 = vmatprep.mubr.bf16.mxu0 0
        %1108 = vmatmul.mubr.bf16.gmra.mrb[0].mxu0 %v378
        %v1109 = vpop.f32.mrb[0].mxu0
        %v1110 = vpop.f32.mrb[0].mxu0
        %v1111 = vadd.f32 %v537, %v1110
        %v1112 = vpop.f32.mrb[0].mxu0
        %v1113 = vpop.f32.mrb[0].mxu0
        %1114 = vmatprep.mubr.bf16.mxu0 0
        %1115 = vmatmul.mubr.bf16.gmra.mrb[0].mxu0 %v381
        %v1116 = vpop.f32.mrb[0].mxu0
        %v1117 = vadd.f32 %v543, %v1116
        %v1118 = vpop.f32.mrb[0].mxu0
        %v1119 = vadd.f32 %v545, %v1118
        %v1120 = vpop.f32.mrb[0].mxu0
        %v1121 = vadd.f32 %v547, %v1120
        %v1122 = vpop.f32.mrb[0].mxu0
        %v1123 = vadd.f32 %v549, %v1122
        %1124 = vmatprep.mubr.bf16.mxu0 0
        %1125 = vmatmul.mubr.bf16.gmra.mrb[0].mxu0 %v384
        %v1126 = vpop.f32.mrb[0].mxu0
        %v1127 = vpop.f32.mrb[0].mxu0
        %v1128 = vadd.f32 %v554, %v1127
        %v1129 = vpop.f32.mrb[0].mxu0
        %v1130 = vpop.f32.mrb[0].mxu0
        %1131 = vmatprep.mubr.bf16.mxu0 0
        %1132 = vmatmul.mubr.bf16.gmra.mrb[0].mxu0 %v387
        %v1133 = vpop.f32.mrb[0].mxu0
        %v1134 = vadd.f32 %v560, %v1133
        %v1135 = vpop.f32.mrb[0].mxu0
        %v1136 = vadd.f32 %v562, %v1135
        %v1137 = vpop.f32.mrb[0].mxu0
        %v1138 = vadd.f32 %v564, %v1137
        %v1139 = vpop.f32.mrb[0].mxu0
        %v1140 = vadd.f32 %v566, %v1139
        %1141 = vmatprep.mubr.bf16.mxu0 0
        %1142 = vmatmul.mubr.bf16.gmra.mrb[0].mxu0 %v390
        %v1143 = vpop.f32.mrb[0].mxu0
        %v1144 = vpop.f32.mrb[0].mxu0
        %v1145 = vadd.f32 %v571, %v1144
        %v1146 = vpop.f32.mrb[0].mxu0
        %v1147 = vpop.f32.mrb[0].mxu0
        %1148 = vmatprep.mubr.bf16.mxu0 0
        %1149 = vmatmul.mubr.bf16.gmra.mrb[0].mxu0 %v393
        %v1150 = vpop.f32.mrb[0].mxu0
        %v1151 = vadd.f32 %v577, %v1150
        %v1152 = vpop.f32.mrb[0].mxu0
        %v1153 = vadd.f32 %v579, %v1152
        %v1154 = vpop.f32.mrb[0].mxu0
        %v1155 = vadd.f32 %v581, %v1154
        %v1156 = vpop.f32.mrb[0].mxu0
        %v1157 = vadd.f32 %v583, %v1156
        %1158 = vmatprep.mubr.bf16.mxu0 0
        %1159 = vmatmul.mubr.bf16.gmra.mrb[0].mxu0 %v396
        %v1160 = vpop.f32.mrb[0].mxu0
        %v1161 = vpop.f32.mrb[0].mxu0
        %v1162 = vadd.f32 %v588, %v1161
        %v1163 = vpop.f32.mrb[0].mxu0
        %v1164 = vpop.f32.mrb[0].mxu0
        %1165 = vmatprep.mubr.bf16.mxu0 0
        %1166 = vmatmul.mubr.bf16.gmra.mrb[0].mxu0 %v399
        %v1167 = vpop.f32.mrb[0].mxu0
        %v1168 = vpop.f32.mrb[0].mxu0
        %v1169 = vpop.f32.mrb[0].mxu0
        %v1170 = vpop.f32.mrb[0].mxu0
        %1171 = vdwg.mxu0
        %1172 = vmatprep.subr.bf16.mxu0 %v992
        %1173 = vmatpush1.bf16.msra.mxu0 %v989
        %1174 = vmatprep.subr.bf16.mxu0 0
        %1175 = vmatpush1.bf16.msra.mxu0 0
        %1176 = vmatprep.subr.bf16.mxu0 0
        %1177 = vmatpush1.bf16.msra.mxu0 0
        %1178 = vmatprep.subr.bf16.mxu0 0
        %1179 = vmatpush1.bf16.msra.mxu0 0
        %1180 = vmatprep.subr.bf16.mxu0 0
        %1181 = vmatpush1.bf16.msra.mxu0 0
        %1182 = vmatprep.subr.bf16.mxu0 0
        %1183 = vmatpush1.bf16.msra.mxu0 0
        %1184 = vmatprep.subr.bf16.mxu0 0
        %1185 = vmatpush1.bf16.msra.mxu0 0
        %1186 = vmatprep.subr.bf16.mxu0 0
        %1187 = vmatpush1.bf16.msra.mxu0 0
        %1188 = vmatprep.subr.bf16.mxu0 0
        %1189 = vmatpush1.bf16.msra.mxu0 0
        %1190 = vmatprep.subr.bf16.mxu0 0
        %1191 = vmatpush1.bf16.msra.mxu0 0
        %1192 = vmatprep.subr.bf16.mxu0 0
        %1193 = vmatpush1.bf16.msra.mxu0 0
        %1194 = vmatprep.subr.bf16.mxu0 0
        %1195 = vmatpush1.bf16.msra.mxu0 0
        %1196 = vmatprep.subr.bf16.mxu0 0
        %1197 = vmatpush1.bf16.msra.mxu0 0
        %1198 = vmatprep.subr.bf16.mxu0 0
        %1199 = vmatpush1.bf16.msra.mxu0 0
        %1200 = vmatprep.subr.bf16.mxu0 0
        %1201 = vmatpush1.bf16.msra.mxu0 0
        %1202 = vmatprep.subr.bf16.mxu0 0
        %1203 = vmatpush1.bf16.msra.mxu0 0
        %1204 = vmatprep.mubr.bf16.mxu0 0
        %1205 = vmatmul.mubr.bf16.gmra.mrb[0].mxu0 %v977
        %v1206 = vpop.f32.mrb[0].mxu0
        %v1207 = vadd.f32 %v633, %v1206
        %v1208 = vpop.f32.mrb[0].mxu0
        %v1209 = vadd.f32 %v635, %v1208
        %v1210 = vpop.f32.mrb[0].mxu0
        %v1211 = vadd.f32 %v637, %v1210
        %v1212 = vpop.f32.mrb[0].mxu0
        %v1213 = vadd.f32 %v639, %v1212
        %1214 = vmatprep.mubr.bf16.mxu0 0
        %1215 = vmatmul.mubr.bf16.gmra.mrb[0].mxu0 %v980
        %v1216 = vpop.f32.mrb[0].mxu0
        %v1217 = vadd.f32 %v643, %v1216
        %v1218 = vpop.f32.mrb[0].mxu0
        %v1219 = vadd.f32 %v645, %v1218
        %v1220 = vpop.f32.mrb[0].mxu0
        %v1221 = vpop.f32.mrb[0].mxu0
        %1222 = vmatprep.mubr.bf16.mxu0 0
        %1223 = vmatmul.mubr.bf16.gmra.mrb[0].mxu0 %v357
        %v1224 = vpop.f32.mrb[0].mxu0
        %v1225 = vadd.f32 %v651, %v1224
        %v1226 = vpop.f32.mrb[0].mxu0
        %v1227 = vadd.f32 %v653, %v1226
        %v1228 = vpop.f32.mrb[0].mxu0
        %v1229 = vadd.f32 %v655, %v1228
        %v1230 = vpop.f32.mrb[0].mxu0
        %v1231 = vadd.f32 %v657, %v1230
        %1232 = vmatprep.mubr.bf16.mxu0 0
        %1233 = vmatmul.mubr.bf16.gmra.mrb[0].mxu0 %v360
        %v1234 = vpop.f32.mrb[0].mxu0
        %v1235 = vadd.f32 %v661, %v1234
        %v1236 = vpop.f32.mrb[0].mxu0
        %v1237 = vadd.f32 %v663, %v1236
        %v1238 = vpop.f32.mrb[0].mxu0
        %v1239 = vpop.f32.mrb[0].mxu0
        %1240 = vmatprep.mubr.bf16.mxu0 0
        %1241 = vmatmul.mubr.bf16.gmra.mrb[0].mxu0 %v363
        %v1242 = vpop.f32.mrb[0].mxu0
        %v1243 = vadd.f32 %v669, %v1242
        %v1244 = vpop.f32.mrb[0].mxu0
        %v1245 = vadd.f32 %v671, %v1244
        %v1246 = vpop.f32.mrb[0].mxu0
        %v1247 = vadd.f32 %v673, %v1246
        %v1248 = vpop.f32.mrb[0].mxu0
        %v1249 = vadd.f32 %v675, %v1248
        %1250 = vmatprep.mubr.bf16.mxu0 0
        %1251 = vmatmul.mubr.bf16.gmra.mrb[0].mxu0 %v366
        %v1252 = vpop.f32.mrb[0].mxu0
        %v1253 = vadd.f32 %v679, %v1252
        %v1254 = vpop.f32.mrb[0].mxu0
        %v1255 = vadd.f32 %v681, %v1254
        %v1256 = vpop.f32.mrb[0].mxu0
        %v1257 = vpop.f32.mrb[0].mxu0
        %1258 = vmatprep.mubr.bf16.mxu0 0
        %1259 = vmatmul.mubr.bf16.gmra.mrb[0].mxu0 %v369
        %v1260 = vpop.f32.mrb[0].mxu0
        %v1261 = vadd.f32 %v687, %v1260
        %v1262 = vpop.f32.mrb[0].mxu0
        %v1263 = vadd.f32 %v689, %v1262
        %v1264 = vpop.f32.mrb[0].mxu0
        %v1265 = vadd.f32 %v691, %v1264
        %v1266 = vpop.f32.mrb[0].mxu0
        %v1267 = vadd.f32 %v693, %v1266
        %1268 = vmatprep.mubr.bf16.mxu0 0
        %1269 = vmatmul.mubr.bf16.gmra.mrb[0].mxu0 %v372
        %v1270 = vpop.f32.mrb[0].mxu0
        %v1271 = vadd.f32 %v697, %v1270
        %v1272 = vpop.f32.mrb[0].mxu0
        %v1273 = vadd.f32 %v699, %v1272
        %v1274 = vpop.f32.mrb[0].mxu0
        %v1275 = vpop.f32.mrb[0].mxu0
        %1276 = vmatprep.mubr.bf16.mxu0 0
        %1277 = vmatmul.mubr.bf16.gmra.mrb[0].mxu0 %v375
        %v1278 = vpop.f32.mrb[0].mxu0
        %v1279 = vadd.f32 %v705, %v1278
        %v1280 = vpop.f32.mrb[0].mxu0
        %v1281 = vadd.f32 %v707, %v1280
        %v1282 = vpop.f32.mrb[0].mxu0
        %v1283 = vadd.f32 %v709, %v1282
        %v1284 = vpop.f32.mrb[0].mxu0
        %v1285 = vadd.f32 %v711, %v1284
        %1286 = vmatprep.mubr.bf16.mxu0 0
        %1287 = vmatmul.mubr.bf16.gmra.mrb[0].mxu0 %v378
        %v1288 = vpop.f32.mrb[0].mxu0
        %v1289 = vadd.f32 %v715, %v1288
        %v1290 = vpop.f32.mrb[0].mxu0
        %v1291 = vadd.f32 %v717, %v1290
        %v1292 = vpop.f32.mrb[0].mxu0
        %v1293 = vpop.f32.mrb[0].mxu0
        %1294 = vmatprep.mubr.bf16.mxu0 0
        %1295 = vmatmul.mubr.bf16.gmra.mrb[0].mxu0 %v381
        %v1296 = vpop.f32.mrb[0].mxu0
        %v1297 = vadd.f32 %v723, %v1296
        %v1298 = vpop.f32.mrb[0].mxu0
        %v1299 = vadd.f32 %v725, %v1298
        %v1300 = vpop.f32.mrb[0].mxu0
        %v1301 = vadd.f32 %v727, %v1300
        %v1302 = vpop.f32.mrb[0].mxu0
        %v1303 = vadd.f32 %v729, %v1302
        %1304 = vmatprep.mubr.bf16.mxu0 0
        %1305 = vmatmul.mubr.bf16.gmra.mrb[0].mxu0 %v384
        %v1306 = vpop.f32.mrb[0].mxu0
        %v1307 = vadd.f32 %v733, %v1306
        %v1308 = vpop.f32.mrb[0].mxu0
        %v1309 = vadd.f32 %v735, %v1308
        %v1310 = vpop.f32.mrb[0].mxu0
        %v1311 = vpop.f32.mrb[0].mxu0
        %1312 = vmatprep.mubr.bf16.mxu0 0
        %1313 = vmatmul.mubr.bf16.gmra.mrb[0].mxu0 %v387
        %v1314 = vpop.f32.mrb[0].mxu0
        %v1315 = vadd.f32 %v741, %v1314
        %v1316 = vpop.f32.mrb[0].mxu0
        %v1317 = vadd.f32 %v743, %v1316
        %v1318 = vpop.f32.mrb[0].mxu0
        %v1319 = vadd.f32 %v745, %v1318
        %v1320 = vpop.f32.mrb[0].mxu0
        %v1321 = vadd.f32 %v747, %v1320
        %1322 = vmatprep.mubr.bf16.mxu0 0
        %1323 = vmatmul.mubr.bf16.gmra.mrb[0].mxu0 %v390
        %v1324 = vpop.f32.mrb[0].mxu0
        %v1325 = vadd.f32 %v751, %v1324
        %v1326 = vpop.f32.mrb[0].mxu0
        %v1327 = vadd.f32 %v753, %v1326
        %v1328 = vpop.f32.mrb[0].mxu0
        %v1329 = vpop.f32.mrb[0].mxu0
        %1330 = vmatprep.mubr.bf16.mxu0 0
        %1331 = vmatmul.mubr.bf16.gmra.mrb[0].mxu0 %v393
        %v1332 = vpop.f32.mrb[0].mxu0
        %v1333 = vadd.f32 %v759, %v1332
        %v1334 = vpop.f32.mrb[0].mxu0
        %v1335 = vadd.f32 %v761, %v1334
        %v1336 = vpop.f32.mrb[0].mxu0
        %v1337 = vadd.f32 %v763, %v1336
        %v1338 = vpop.f32.mrb[0].mxu0
        %v1339 = vadd.f32 %v765, %v1338
        %1340 = vmatprep.mubr.bf16.mxu0 0
        %1341 = vmatmul.mubr.bf16.gmra.mrb[0].mxu0 %v396
        %v1342 = vpop.f32.mrb[0].mxu0
        %v1343 = vadd.f32 %v769, %v1342
        %v1344 = vpop.f32.mrb[0].mxu0
        %v1345 = vadd.f32 %v771, %v1344
        %v1346 = vpop.f32.mrb[0].mxu0
        %v1347 = vpop.f32.mrb[0].mxu0
        %1348 = vmatprep.mubr.bf16.mxu0 0
        %1349 = vmatmul.mubr.bf16.gmra.mrb[0].mxu0 %v399
        %v1350 = vpop.f32.mrb[0].mxu0
        %v1351 = vpop.f32.mrb[0].mxu0
        %v1352 = vpop.f32.mrb[0].mxu0
        %v1353 = vpop.f32.mrb[0].mxu0
        %1354 = vdwg.mxu0
        %1355 = vmatprep.subr.bf16.mxu0 0
        %1356 = vmatpush1.bf16.msra.mxu0 %v995
        %1357 = vmatprep.subr.bf16.mxu0 0
        %1358 = vmatpush1.bf16.msra.mxu0 0
        %1359 = vmatprep.subr.bf16.mxu0 0
        %1360 = vmatpush1.bf16.msra.mxu0 0
        %1361 = vmatprep.subr.bf16.mxu0 0
        %1362 = vmatpush1.bf16.msra.mxu0 0
        %1363 = vmatprep.subr.bf16.mxu0 0
        %1364 = vmatpush1.bf16.msra.mxu0 0
        %1365 = vmatprep.subr.bf16.mxu0 0
        %1366 = vmatpush1.bf16.msra.mxu0 0
        %1367 = vmatprep.subr.bf16.mxu0 0
        %1368 = vmatpush1.bf16.msra.mxu0 0
        %1369 = vmatprep.subr.bf16.mxu0 0
        %1370 = vmatpush1.bf16.msra.mxu0 0
        %1371 = vmatprep.subr.bf16.mxu0 0
        %1372 = vmatpush1.bf16.msra.mxu0 0
        %1373 = vmatprep.subr.bf16.mxu0 0
        %1374 = vmatpush1.bf16.msra.mxu0 0
        %1375 = vmatprep.subr.bf16.mxu0 0
        %1376 = vmatpush1.bf16.msra.mxu0 0
        %1377 = vmatprep.subr.bf16.mxu0 0
        %1378 = vmatpush1.bf16.msra.mxu0 0
        %1379 = vmatprep.subr.bf16.mxu0 0
        %1380 = vmatpush1.bf16.msra.mxu0 0
        %1381 = vmatprep.subr.bf16.mxu0 0
        %1382 = vmatpush1.bf16.msra.mxu0 0
        %1383 = vmatprep.subr.bf16.mxu0 0
        %1384 = vmatpush1.bf16.msra.mxu0 0
        %1385 = vmatprep.subr.bf16.mxu0 0
        %1386 = vmatpush1.bf16.msra.mxu0 0
        %1387 = vmatprep.mubr.bf16.mxu0 0
        %1388 = vmatmul.mubr.bf16.gmra.mrb[0].mxu0 %v977
        %v1389 = vpop.f32.mrb[0].mxu0
        %v1390 = vadd.f32 %v816, %v1389
        %v1391 = vpop.f32.mrb[0].mxu0
        %v1392 = vpop.f32.mrb[0].mxu0
        %v1393 = vadd.f32 %v819, %v1392
        %v1394 = vpop.f32.mrb[0].mxu0
        %1395 = vmatprep.mubr.bf16.mxu0 0
        %1396 = vmatmul.mubr.bf16.gmra.mrb[0].mxu0 %v980
        %v1397 = vpop.f32.mrb[0].mxu0
        %v1398 = vadd.f32 %v824, %v1397
        %v1399 = vpop.f32.mrb[0].mxu0
        %v1400 = vpop.f32.mrb[0].mxu0
        %v1401 = vpop.f32.mrb[0].mxu0
        %1402 = vmatprep.mubr.bf16.mxu0 0
        %1403 = vmatmul.mubr.bf16.gmra.mrb[0].mxu0 %v357
        %v1404 = vpop.f32.mrb[0].mxu0
        %v1405 = vadd.f32 %v831, %v1404
        %v1406 = vpop.f32.mrb[0].mxu0
        %v1407 = vpop.f32.mrb[0].mxu0
        %v1408 = vadd.f32 %v834, %v1407
        %v1409 = vpop.f32.mrb[0].mxu0
        %1410 = vmatprep.mubr.bf16.mxu0 0
        %1411 = vmatmul.mubr.bf16.gmra.mrb[0].mxu0 %v360
        %v1412 = vpop.f32.mrb[0].mxu0
        %v1413 = vadd.f32 %v839, %v1412
        %v1414 = vpop.f32.mrb[0].mxu0
        %v1415 = vpop.f32.mrb[0].mxu0
        %v1416 = vpop.f32.mrb[0].mxu0
        %1417 = vmatprep.mubr.bf16.mxu0 0
        %1418 = vmatmul.mubr.bf16.gmra.mrb[0].mxu0 %v363
        %v1419 = vpop.f32.mrb[0].mxu0
        %v1420 = vadd.f32 %v846, %v1419
        %v1421 = vpop.f32.mrb[0].mxu0
        %v1422 = vpop.f32.mrb[0].mxu0
        %v1423 = vadd.f32 %v849, %v1422
        %v1424 = vpop.f32.mrb[0].mxu0
        %1425 = vmatprep.mubr.bf16.mxu0 0
        %1426 = vmatmul.mubr.bf16.gmra.mrb[0].mxu0 %v366
        %v1427 = vpop.f32.mrb[0].mxu0
        %v1428 = vadd.f32 %v854, %v1427
        %v1429 = vpop.f32.mrb[0].mxu0
        %v1430 = vpop.f32.mrb[0].mxu0
        %v1431 = vpop.f32.mrb[0].mxu0
        %1432 = vmatprep.mubr.bf16.mxu0 0
        %1433 = vmatmul.mubr.bf16.gmra.mrb[0].mxu0 %v369
        %v1434 = vpop.f32.mrb[0].mxu0
        %v1435 = vadd.f32 %v861, %v1434
        %v1436 = vpop.f32.mrb[0].mxu0
        %v1437 = vpop.f32.mrb[0].mxu0
        %v1438 = vadd.f32 %v864, %v1437
        %v1439 = vpop.f32.mrb[0].mxu0
        %1440 = vmatprep.mubr.bf16.mxu0 0
        %1441 = vmatmul.mubr.bf16.gmra.mrb[0].mxu0 %v372
        %v1442 = vpop.f32.mrb[0].mxu0
        %v1443 = vadd.f32 %v869, %v1442
        %v1444 = vpop.f32.mrb[0].mxu0
        %v1445 = vpop.f32.mrb[0].mxu0
        %v1446 = vpop.f32.mrb[0].mxu0
        %1447 = vmatprep.mubr.bf16.mxu0 0
        %1448 = vmatmul.mubr.bf16.gmra.mrb[0].mxu0 %v375
        %v1449 = vpop.f32.mrb[0].mxu0
        %v1450 = vadd.f32 %v876, %v1449
        %v1451 = vpop.f32.mrb[0].mxu0
        %v1452 = vpop.f32.mrb[0].mxu0
        %v1453 = vadd.f32 %v879, %v1452
        %v1454 = vpop.f32.mrb[0].mxu0
        %1455 = vmatprep.mubr.bf16.mxu0 0
        %1456 = vmatmul.mubr.bf16.gmra.mrb[0].mxu0 %v378
        %v1457 = vpop.f32.mrb[0].mxu0
        %v1458 = vadd.f32 %v884, %v1457
        %v1459 = vpop.f32.mrb[0].mxu0
        %v1460 = vpop.f32.mrb[0].mxu0
        %v1461 = vpop.f32.mrb[0].mxu0
        %1462 = vmatprep.mubr.bf16.mxu0 0
        %1463 = vmatmul.mubr.bf16.gmra.mrb[0].mxu0 %v381
        %v1464 = vpop.f32.mrb[0].mxu0
        %v1465 = vadd.f32 %v891, %v1464
        %v1466 = vpop.f32.mrb[0].mxu0
        %v1467 = vpop.f32.mrb[0].mxu0
        %v1468 = vadd.f32 %v894, %v1467
        %v1469 = vpop.f32.mrb[0].mxu0
        %1470 = vmatprep.mubr.bf16.mxu0 0
        %1471 = vmatmul.mubr.bf16.gmra.mrb[0].mxu0 %v384
        %v1472 = vpop.f32.mrb[0].mxu0
        %v1473 = vadd.f32 %v899, %v1472
        %v1474 = vpop.f32.mrb[0].mxu0
        %v1475 = vpop.f32.mrb[0].mxu0
        %v1476 = vpop.f32.mrb[0].mxu0
        %1477 = vmatprep.mubr.bf16.mxu0 0
        %1478 = vmatmul.mubr.bf16.gmra.mrb[0].mxu0 %v387
        %v1479 = vpop.f32.mrb[0].mxu0
        %v1480 = vadd.f32 %v906, %v1479
        %v1481 = vpop.f32.mrb[0].mxu0
        %v1482 = vpop.f32.mrb[0].mxu0
        %v1483 = vadd.f32 %v909, %v1482
        %v1484 = vpop.f32.mrb[0].mxu0
        %1485 = vmatprep.mubr.bf16.mxu0 0
        %1486 = vmatmul.mubr.bf16.gmra.mrb[0].mxu0 %v390
        %v1487 = vpop.f32.mrb[0].mxu0
        %v1488 = vadd.f32 %v914, %v1487
        %v1489 = vpop.f32.mrb[0].mxu0
        %v1490 = vpop.f32.mrb[0].mxu0
        %v1491 = vpop.f32.mrb[0].mxu0
        %1492 = vmatprep.mubr.bf16.mxu0 0
        %1493 = vmatmul.mubr.bf16.gmra.mrb[0].mxu0 %v393
        %v1494 = vpop.f32.mrb[0].mxu0
        %v1495 = vadd.f32 %v921, %v1494
        %v1496 = vpop.f32.mrb[0].mxu0
        %v1497 = vpop.f32.mrb[0].mxu0
        %v1498 = vadd.f32 %v924, %v1497
        %v1499 = vpop.f32.mrb[0].mxu0
        %1500 = vmatprep.mubr.bf16.mxu0 0
        %1501 = vmatmul.mubr.bf16.gmra.mrb[0].mxu0 %v396
        %v1502 = vpop.f32.mrb[0].mxu0
        %v1503 = vadd.f32 %v929, %v1502
        %v1504 = vpop.f32.mrb[0].mxu0
        %v1505 = vpop.f32.mrb[0].mxu0
        %v1506 = vpop.f32.mrb[0].mxu0
        %1507 = vmatprep.mubr.bf16.mxu0 0
        %1508 = vmatmul.mubr.bf16.gmra.mrb[0].mxu0 %v399
        %v1509 = vpop.f32.mrb[0].mxu0
        %v1510 = vpop.f32.mrb[0].mxu0
        %v1511 = vpop.f32.mrb[0].mxu0
        %v1512 = vpop.f32.mrb[0].mxu0
        %1513 = vdwg.mxu0
        %s1514 = scalar_lea.vmem %s1, 20
        %v1515 = vld [vmem:[%s1514] sm:$0xff]
        %v1516 = vld [vmem:[%s1514 + $0x8] sm:$0x3]
        %v1521 = vunpack.c.l.b16 %v227
        %v1522 = vunpack.c.l.b16 %v228
        %v1523 = vunpack.c.l.b16 %v229
        %v1524 = vunpack.c.l.b16 %v230
        %v1525 = vpack.c.b16 %v1522, %v1521
        %v1526 = vpack.c.b16 %v1524, %v1523
        %v1529 = vcombine.high %v1515, %v1515
        %v1531 = vunpack.c.l.s4 1983009808
        %v1532 = vunpack.c.0.s8 %v1531
        %v1533 = vlaneseq
        %v1534 = vshrl.u32 %v1533, 7
        %v1535 = vsub.s32 %v1532, %v1534
        %v1536 = vrot.slane %v1515, %v1535
        %v1538 = vunpack.c.l.s4 1983009808
        %v1539 = vunpack.c.0.s8 %v1538
        %v1540 = vlaneseq
        %v1541 = vshrl.u32 %v1540, 7
        %v1542 = vsub.s32 %v1539, %v1541
        %v1543 = vrot.slane %v1529, %v1542
        %v1544 = vcombine.high %v1536, %v1536
        %v1545 = vcombine.high %v1543, %v1543
        %v1547 = vunpack.c.l.s4 1983009808
        %v1548 = vunpack.c.0.s8 %v1547
        %v1549 = vlaneseq
        %v1550 = vshrl.u32 %v1549, 7
        %v1551 = vsub.s32 %v1548, %v1550
        %v1552 = vrot.slane %v1516, %v1551
        %v1554 = vsel %vm355, %v1525, 0
        %v1557 = vsel %vm355, %v1526, 0
        %v1560 = vsel %vm407, %v1536, 0
        %v1563 = vsel %vm407, %v1544, 0
        %v1566 = vsel %vm407, %v1543, 0
        %v1569 = vsel %vm407, %v1545, 0
        %v1572 = vsel %vm407, %v1552, 0
        %1574 = vmatprep.subr.bf16.mxu0 %v1563
        %1575 = vmatpush1.bf16.msra.mxu0 %v1560
        %1576 = vmatprep.subr.bf16.mxu0 0
        %1577 = vmatpush1.bf16.msra.mxu0 0
        %1578 = vmatprep.subr.bf16.mxu0 0
        %1579 = vmatpush1.bf16.msra.mxu0 0
        %1580 = vmatprep.subr.bf16.mxu0 0
        %1581 = vmatpush1.bf16.msra.mxu0 0
        %1582 = vmatprep.subr.bf16.mxu0 0
        %1583 = vmatpush1.bf16.msra.mxu0 0
        %1584 = vmatprep.subr.bf16.mxu0 0
        %1585 = vmatpush1.bf16.msra.mxu0 0
        %1586 = vmatprep.subr.bf16.mxu0 0
        %1587 = vmatpush1.bf16.msra.mxu0 0
        %1588 = vmatprep.subr.bf16.mxu0 0
        %1589 = vmatpush1.bf16.msra.mxu0 0
        %1590 = vmatprep.subr.bf16.mxu0 0
        %1591 = vmatpush1.bf16.msra.mxu0 0
        %1592 = vmatprep.subr.bf16.mxu0 0
        %1593 = vmatpush1.bf16.msra.mxu0 0
        %1594 = vmatprep.subr.bf16.mxu0 0
        %1595 = vmatpush1.bf16.msra.mxu0 0
        %1596 = vmatprep.subr.bf16.mxu0 0
        %1597 = vmatpush1.bf16.msra.mxu0 0
        %1598 = vmatprep.subr.bf16.mxu0 0
        %1599 = vmatpush1.bf16.msra.mxu0 0
        %1600 = vmatprep.subr.bf16.mxu0 0
        %1601 = vmatpush1.bf16.msra.mxu0 0
        %1602 = vmatprep.subr.bf16.mxu0 0
        %1603 = vmatpush1.bf16.msra.mxu0 0
        %1604 = vmatprep.subr.bf16.mxu0 0
        %1605 = vmatpush1.bf16.msra.mxu0 0
        %1606 = vmatprep.mubr.bf16.mxu0 0
        %1607 = vmatmul.mubr.bf16.gmra.mrb[0].mxu0 %v363
        %v1608 = vpop.f32.mrb[0].mxu0
        %v1609 = vadd.f32 0.0, %v1608
        %v1610 = vpop.f32.mrb[0].mxu0
        %v1611 = vadd.f32 0.0, %v1610
        %v1612 = vpop.f32.mrb[0].mxu0
        %v1613 = vadd.f32 0.0, %v1612
        %v1614 = vpop.f32.mrb[0].mxu0
        %v1615 = vadd.f32 0.0, %v1614
        %1616 = vmatprep.mubr.bf16.mxu0 0
        %1617 = vmatmul.mubr.bf16.gmra.mrb[0].mxu0 %v366
        %v1618 = vpop.f32.mrb[0].mxu0
        %v1619 = vpop.f32.mrb[0].mxu0
        %v1620 = vadd.f32 0.0, %v1619
        %v1621 = vpop.f32.mrb[0].mxu0
        %v1622 = vpop.f32.mrb[0].mxu0
        %1623 = vmatprep.mubr.bf16.mxu0 0
        %1624 = vmatmul.mubr.bf16.gmra.mrb[0].mxu0 %v369
        %v1625 = vpop.f32.mrb[0].mxu0
        %v1626 = vadd.f32 0.0, %v1625
        %v1627 = vpop.f32.mrb[0].mxu0
        %v1628 = vadd.f32 0.0, %v1627
        %v1629 = vpop.f32.mrb[0].mxu0
        %v1630 = vadd.f32 0.0, %v1629
        %v1631 = vpop.f32.mrb[0].mxu0
        %v1632 = vadd.f32 0.0, %v1631
        %1633 = vmatprep.mubr.bf16.mxu0 0
        %1634 = vmatmul.mubr.bf16.gmra.mrb[0].mxu0 %v372
        %v1635 = vpop.f32.mrb[0].mxu0
        %v1636 = vpop.f32.mrb[0].mxu0
        %v1637 = vadd.f32 0.0, %v1636
        %v1638 = vpop.f32.mrb[0].mxu0
        %v1639 = vpop.f32.mrb[0].mxu0
        %1640 = vmatprep.mubr.bf16.mxu0 0
        %1641 = vmatmul.mubr.bf16.gmra.mrb[0].mxu0 %v375
        %v1642 = vpop.f32.mrb[0].mxu0
        %v1643 = vadd.f32 0.0, %v1642
        %v1644 = vpop.f32.mrb[0].mxu0
        %v1645 = vadd.f32 0.0, %v1644
        %v1646 = vpop.f32.mrb[0].mxu0
        %v1647 = vadd.f32 0.0, %v1646
        %v1648 = vpop.f32.mrb[0].mxu0
        %v1649 = vadd.f32 0.0, %v1648
        %1650 = vmatprep.mubr.bf16.mxu0 0
        %1651 = vmatmul.mubr.bf16.gmra.mrb[0].mxu0 %v378
        %v1652 = vpop.f32.mrb[0].mxu0
        %v1653 = vpop.f32.mrb[0].mxu0
        %v1654 = vadd.f32 0.0, %v1653
        %v1655 = vpop.f32.mrb[0].mxu0
        %v1656 = vpop.f32.mrb[0].mxu0
        %1657 = vmatprep.mubr.bf16.mxu0 0
        %1658 = vmatmul.mubr.bf16.gmra.mrb[0].mxu0 %v381
        %v1659 = vpop.f32.mrb[0].mxu0
        %v1660 = vadd.f32 0.0, %v1659
        %v1661 = vpop.f32.mrb[0].mxu0
        %v1662 = vadd.f32 0.0, %v1661
        %v1663 = vpop.f32.mrb[0].mxu0
        %v1664 = vadd.f32 0.0, %v1663
        %v1665 = vpop.f32.mrb[0].mxu0
        %v1666 = vadd.f32 0.0, %v1665
        %1667 = vmatprep.mubr.bf16.mxu0 0
        %1668 = vmatmul.mubr.bf16.gmra.mrb[0].mxu0 %v384
        %v1669 = vpop.f32.mrb[0].mxu0
        %v1670 = vpop.f32.mrb[0].mxu0
        %v1671 = vadd.f32 0.0, %v1670
        %v1672 = vpop.f32.mrb[0].mxu0
        %v1673 = vpop.f32.mrb[0].mxu0
        %1674 = vmatprep.mubr.bf16.mxu0 0
        %1675 = vmatmul.mubr.bf16.gmra.mrb[0].mxu0 %v387
        %v1676 = vpop.f32.mrb[0].mxu0
        %v1677 = vadd.f32 0.0, %v1676
        %v1678 = vpop.f32.mrb[0].mxu0
        %v1679 = vadd.f32 0.0, %v1678
        %v1680 = vpop.f32.mrb[0].mxu0
        %v1681 = vadd.f32 0.0, %v1680
        %v1682 = vpop.f32.mrb[0].mxu0
        %v1683 = vadd.f32 0.0, %v1682
        %1684 = vmatprep.mubr.bf16.mxu0 0
        %1685 = vmatmul.mubr.bf16.gmra.mrb[0].mxu0 %v390
        %v1686 = vpop.f32.mrb[0].mxu0
        %v1687 = vpop.f32.mrb[0].mxu0
        %v1688 = vadd.f32 0.0, %v1687
        %v1689 = vpop.f32.mrb[0].mxu0
        %v1690 = vpop.f32.mrb[0].mxu0
        %1691 = vmatprep.mubr.bf16.mxu0 0
        %1692 = vmatmul.mubr.bf16.gmra.mrb[0].mxu0 %v393
        %v1693 = vpop.f32.mrb[0].mxu0
        %v1694 = vadd.f32 0.0, %v1693
        %v1695 = vpop.f32.mrb[0].mxu0
        %v1696 = vadd.f32 0.0, %v1695
        %v1697 = vpop.f32.mrb[0].mxu0
        %v1698 = vadd.f32 0.0, %v1697
        %v1699 = vpop.f32.mrb[0].mxu0
        %v1700 = vadd.f32 0.0, %v1699
        %1701 = vmatprep.mubr.bf16.mxu0 0
        %1702 = vmatmul.mubr.bf16.gmra.mrb[0].mxu0 %v396
        %v1703 = vpop.f32.mrb[0].mxu0
        %v1704 = vpop.f32.mrb[0].mxu0
        %v1705 = vadd.f32 0.0, %v1704
        %v1706 = vpop.f32.mrb[0].mxu0
        %v1707 = vpop.f32.mrb[0].mxu0
        %1708 = vmatprep.mubr.bf16.mxu0 0
        %1709 = vmatmul.mubr.bf16.gmra.mrb[0].mxu0 %v399
        %v1710 = vpop.f32.mrb[0].mxu0
        %v1711 = vadd.f32 0.0, %v1710
        %v1712 = vpop.f32.mrb[0].mxu0
        %v1713 = vadd.f32 0.0, %v1712
        %v1714 = vpop.f32.mrb[0].mxu0
        %v1715 = vadd.f32 0.0, %v1714
        %v1716 = vpop.f32.mrb[0].mxu0
        %v1717 = vadd.f32 0.0, %v1716
        %1718 = vmatprep.mubr.bf16.mxu0 0
        %1719 = vmatmul.mubr.bf16.gmra.mrb[0].mxu0 %v402
        %v1720 = vpop.f32.mrb[0].mxu0
        %v1721 = vpop.f32.mrb[0].mxu0
        %v1722 = vadd.f32 0.0, %v1721
        %v1723 = vpop.f32.mrb[0].mxu0
        %v1724 = vpop.f32.mrb[0].mxu0
        %1725 = vmatprep.mubr.bf16.mxu0 0
        %1726 = vmatmul.mubr.bf16.gmra.mrb[0].mxu0 %v405
        %v1727 = vpop.f32.mrb[0].mxu0
        %v1728 = vadd.f32 0.0, %v1727
        %v1729 = vpop.f32.mrb[0].mxu0
        %v1730 = vadd.f32 0.0, %v1729
        %v1731 = vpop.f32.mrb[0].mxu0
        %v1732 = vadd.f32 0.0, %v1731
        %v1733 = vpop.f32.mrb[0].mxu0
        %v1734 = vadd.f32 0.0, %v1733
        %1735 = vmatprep.mubr.bf16.mxu0 0
        %1736 = vmatmul.mubr.bf16.gmra.mrb[0].mxu0 %v1554
        %v1737 = vpop.f32.mrb[0].mxu0
        %v1738 = vpop.f32.mrb[0].mxu0
        %v1739 = vadd.f32 0.0, %v1738
        %v1740 = vpop.f32.mrb[0].mxu0
        %v1741 = vpop.f32.mrb[0].mxu0
        %1742 = vmatprep.mubr.bf16.mxu0 0
        %1743 = vmatmul.mubr.bf16.gmra.mrb[0].mxu0 %v1557
        %v1744 = vpop.f32.mrb[0].mxu0
        %v1745 = vpop.f32.mrb[0].mxu0
        %v1746 = vpop.f32.mrb[0].mxu0
        %v1747 = vpop.f32.mrb[0].mxu0
        %1748 = vdwg.mxu0
        %1749 = vmatprep.subr.bf16.mxu0 %v1569
        %1750 = vmatpush1.bf16.msra.mxu0 %v1566
        %1751 = vmatprep.subr.bf16.mxu0 0
        %1752 = vmatpush1.bf16.msra.mxu0 0
        %1753 = vmatprep.subr.bf16.mxu0 0
        %1754 = vmatpush1.bf16.msra.mxu0 0
        %1755 = vmatprep.subr.bf16.mxu0 0
        %1756 = vmatpush1.bf16.msra.mxu0 0
        %1757 = vmatprep.subr.bf16.mxu0 0
        %1758 = vmatpush1.bf16.msra.mxu0 0
        %1759 = vmatprep.subr.bf16.mxu0 0
        %1760 = vmatpush1.bf16.msra.mxu0 0
        %1761 = vmatprep.subr.bf16.mxu0 0
        %1762 = vmatpush1.bf16.msra.mxu0 0
        %1763 = vmatprep.subr.bf16.mxu0 0
        %1764 = vmatpush1.bf16.msra.mxu0 0
        %1765 = vmatprep.subr.bf16.mxu0 0
        %1766 = vmatpush1.bf16.msra.mxu0 0
        %1767 = vmatprep.subr.bf16.mxu0 0
        %1768 = vmatpush1.bf16.msra.mxu0 0
        %1769 = vmatprep.subr.bf16.mxu0 0
        %1770 = vmatpush1.bf16.msra.mxu0 0
        %1771 = vmatprep.subr.bf16.mxu0 0
        %1772 = vmatpush1.bf16.msra.mxu0 0
        %1773 = vmatprep.subr.bf16.mxu0 0
        %1774 = vmatpush1.bf16.msra.mxu0 0
        %1775 = vmatprep.subr.bf16.mxu0 0
        %1776 = vmatpush1.bf16.msra.mxu0 0
        %1777 = vmatprep.subr.bf16.mxu0 0
        %1778 = vmatpush1.bf16.msra.mxu0 0
        %1779 = vmatprep.subr.bf16.mxu0 0
        %1780 = vmatpush1.bf16.msra.mxu0 0
        %1781 = vmatprep.mubr.bf16.mxu0 0
        %1782 = vmatmul.mubr.bf16.gmra.mrb[0].mxu0 %v363
        %v1783 = vpop.f32.mrb[0].mxu0
        %v1784 = vadd.f32 0.0, %v1783
        %v1785 = vpop.f32.mrb[0].mxu0
        %v1786 = vadd.f32 0.0, %v1785
        %v1787 = vpop.f32.mrb[0].mxu0
        %v1788 = vadd.f32 0.0, %v1787
        %v1789 = vpop.f32.mrb[0].mxu0
        %v1790 = vadd.f32 0.0, %v1789
        %1791 = vmatprep.mubr.bf16.mxu0 0
        %1792 = vmatmul.mubr.bf16.gmra.mrb[0].mxu0 %v366
        %v1793 = vpop.f32.mrb[0].mxu0
        %v1794 = vadd.f32 0.0, %v1793
        %v1795 = vpop.f32.mrb[0].mxu0
        %v1796 = vadd.f32 0.0, %v1795
        %v1797 = vpop.f32.mrb[0].mxu0
        %v1798 = vpop.f32.mrb[0].mxu0
        %1799 = vmatprep.mubr.bf16.mxu0 0
        %1800 = vmatmul.mubr.bf16.gmra.mrb[0].mxu0 %v369
        %v1801 = vpop.f32.mrb[0].mxu0
        %v1802 = vadd.f32 0.0, %v1801
        %v1803 = vpop.f32.mrb[0].mxu0
        %v1804 = vadd.f32 0.0, %v1803
        %v1805 = vpop.f32.mrb[0].mxu0
        %v1806 = vadd.f32 0.0, %v1805
        %v1807 = vpop.f32.mrb[0].mxu0
        %v1808 = vadd.f32 0.0, %v1807
        %1809 = vmatprep.mubr.bf16.mxu0 0
        %1810 = vmatmul.mubr.bf16.gmra.mrb[0].mxu0 %v372
        %v1811 = vpop.f32.mrb[0].mxu0
        %v1812 = vadd.f32 0.0, %v1811
        %v1813 = vpop.f32.mrb[0].mxu0
        %v1814 = vadd.f32 0.0, %v1813
        %v1815 = vpop.f32.mrb[0].mxu0
        %v1816 = vpop.f32.mrb[0].mxu0
        %1817 = vmatprep.mubr.bf16.mxu0 0
        %1818 = vmatmul.mubr.bf16.gmra.mrb[0].mxu0 %v375
        %v1819 = vpop.f32.mrb[0].mxu0
        %v1820 = vadd.f32 0.0, %v1819
        %v1821 = vpop.f32.mrb[0].mxu0
        %v1822 = vadd.f32 0.0, %v1821
        %v1823 = vpop.f32.mrb[0].mxu0
        %v1824 = vadd.f32 0.0, %v1823
        %v1825 = vpop.f32.mrb[0].mxu0
        %v1826 = vadd.f32 0.0, %v1825
        %1827 = vmatprep.mubr.bf16.mxu0 0
        %1828 = vmatmul.mubr.bf16.gmra.mrb[0].mxu0 %v378
        %v1829 = vpop.f32.mrb[0].mxu0
        %v1830 = vadd.f32 0.0, %v1829
        %v1831 = vpop.f32.mrb[0].mxu0
        %v1832 = vadd.f32 0.0, %v1831
        %v1833 = vpop.f32.mrb[0].mxu0
        %v1834 = vpop.f32.mrb[0].mxu0
        %1835 = vmatprep.mubr.bf16.mxu0 0
        %1836 = vmatmul.mubr.bf16.gmra.mrb[0].mxu0 %v381
        %v1837 = vpop.f32.mrb[0].mxu0
        %v1838 = vadd.f32 0.0, %v1837
        %v1839 = vpop.f32.mrb[0].mxu0
        %v1840 = vadd.f32 0.0, %v1839
        %v1841 = vpop.f32.mrb[0].mxu0
        %v1842 = vadd.f32 0.0, %v1841
        %v1843 = vpop.f32.mrb[0].mxu0
        %v1844 = vadd.f32 0.0, %v1843
        %1845 = vmatprep.mubr.bf16.mxu0 0
        %1846 = vmatmul.mubr.bf16.gmra.mrb[0].mxu0 %v384
        %v1847 = vpop.f32.mrb[0].mxu0
        %v1848 = vadd.f32 0.0, %v1847
        %v1849 = vpop.f32.mrb[0].mxu0
        %v1850 = vadd.f32 0.0, %v1849
        %v1851 = vpop.f32.mrb[0].mxu0
        %v1852 = vpop.f32.mrb[0].mxu0
        %1853 = vmatprep.mubr.bf16.mxu0 0
        %1854 = vmatmul.mubr.bf16.gmra.mrb[0].mxu0 %v387
        %v1855 = vpop.f32.mrb[0].mxu0
        %v1856 = vadd.f32 0.0, %v1855
        %v1857 = vpop.f32.mrb[0].mxu0
        %v1858 = vadd.f32 0.0, %v1857
        %v1859 = vpop.f32.mrb[0].mxu0
        %v1860 = vadd.f32 0.0, %v1859
        %v1861 = vpop.f32.mrb[0].mxu0
        %v1862 = vadd.f32 0.0, %v1861
        %1863 = vmatprep.mubr.bf16.mxu0 0
        %1864 = vmatmul.mubr.bf16.gmra.mrb[0].mxu0 %v390
        %v1865 = vpop.f32.mrb[0].mxu0
        %v1866 = vadd.f32 0.0, %v1865
        %v1867 = vpop.f32.mrb[0].mxu0
        %v1868 = vadd.f32 0.0, %v1867
        %v1869 = vpop.f32.mrb[0].mxu0
        %v1870 = vpop.f32.mrb[0].mxu0
        %1871 = vmatprep.mubr.bf16.mxu0 0
        %1872 = vmatmul.mubr.bf16.gmra.mrb[0].mxu0 %v393
        %v1873 = vpop.f32.mrb[0].mxu0
        %v1874 = vadd.f32 0.0, %v1873
        %v1875 = vpop.f32.mrb[0].mxu0
        %v1876 = vadd.f32 0.0, %v1875
        %v1877 = vpop.f32.mrb[0].mxu0
        %v1878 = vadd.f32 0.0, %v1877
        %v1879 = vpop.f32.mrb[0].mxu0
        %v1880 = vadd.f32 0.0, %v1879
        %1881 = vmatprep.mubr.bf16.mxu0 0
        %1882 = vmatmul.mubr.bf16.gmra.mrb[0].mxu0 %v396
        %v1883 = vpop.f32.mrb[0].mxu0
        %v1884 = vadd.f32 0.0, %v1883
        %v1885 = vpop.f32.mrb[0].mxu0
        %v1886 = vadd.f32 0.0, %v1885
        %v1887 = vpop.f32.mrb[0].mxu0
        %v1888 = vpop.f32.mrb[0].mxu0
        %1889 = vmatprep.mubr.bf16.mxu0 0
        %1890 = vmatmul.mubr.bf16.gmra.mrb[0].mxu0 %v399
        %v1891 = vpop.f32.mrb[0].mxu0
        %v1892 = vadd.f32 0.0, %v1891
        %v1893 = vpop.f32.mrb[0].mxu0
        %v1894 = vadd.f32 0.0, %v1893
        %v1895 = vpop.f32.mrb[0].mxu0
        %v1896 = vadd.f32 0.0, %v1895
        %v1897 = vpop.f32.mrb[0].mxu0
        %v1898 = vadd.f32 0.0, %v1897
        %1899 = vmatprep.mubr.bf16.mxu0 0
        %1900 = vmatmul.mubr.bf16.gmra.mrb[0].mxu0 %v402
        %v1901 = vpop.f32.mrb[0].mxu0
        %v1902 = vadd.f32 0.0, %v1901
        %v1903 = vpop.f32.mrb[0].mxu0
        %v1904 = vadd.f32 0.0, %v1903
        %v1905 = vpop.f32.mrb[0].mxu0
        %v1906 = vpop.f32.mrb[0].mxu0
        %1907 = vmatprep.mubr.bf16.mxu0 0
        %1908 = vmatmul.mubr.bf16.gmra.mrb[0].mxu0 %v405
        %v1909 = vpop.f32.mrb[0].mxu0
        %v1910 = vadd.f32 0.0, %v1909
        %v1911 = vpop.f32.mrb[0].mxu0
        %v1912 = vadd.f32 0.0, %v1911
        %v1913 = vpop.f32.mrb[0].mxu0
        %v1914 = vadd.f32 0.0, %v1913
        %v1915 = vpop.f32.mrb[0].mxu0
        %v1916 = vadd.f32 0.0, %v1915
        %1917 = vmatprep.mubr.bf16.mxu0 0
        %1918 = vmatmul.mubr.bf16.gmra.mrb[0].mxu0 %v1554
        %v1919 = vpop.f32.mrb[0].mxu0
        %v1920 = vadd.f32 0.0, %v1919
        %v1921 = vpop.f32.mrb[0].mxu0
        %v1922 = vadd.f32 0.0, %v1921
        %v1923 = vpop.f32.mrb[0].mxu0
        %v1924 = vpop.f32.mrb[0].mxu0
        %1925 = vmatprep.mubr.bf16.mxu0 0
        %1926 = vmatmul.mubr.bf16.gmra.mrb[0].mxu0 %v1557
        %v1927 = vpop.f32.mrb[0].mxu0
        %v1928 = vpop.f32.mrb[0].mxu0
        %v1929 = vpop.f32.mrb[0].mxu0
        %v1930 = vpop.f32.mrb[0].mxu0
        %1931 = vdwg.mxu0
        %1932 = vmatprep.subr.bf16.mxu0 0
        %1933 = vmatpush1.bf16.msra.mxu0 %v1572
        %1934 = vmatprep.subr.bf16.mxu0 0
        %1935 = vmatpush1.bf16.msra.mxu0 0
        %1936 = vmatprep.subr.bf16.mxu0 0
        %1937 = vmatpush1.bf16.msra.mxu0 0
        %1938 = vmatprep.subr.bf16.mxu0 0
        %1939 = vmatpush1.bf16.msra.mxu0 0
        %1940 = vmatprep.subr.bf16.mxu0 0
        %1941 = vmatpush1.bf16.msra.mxu0 0
        %1942 = vmatprep.subr.bf16.mxu0 0
        %1943 = vmatpush1.bf16.msra.mxu0 0
        %1944 = vmatprep.subr.bf16.mxu0 0
        %1945 = vmatpush1.bf16.msra.mxu0 0
        %1946 = vmatprep.subr.bf16.mxu0 0
        %1947 = vmatpush1.bf16.msra.mxu0 0
        %1948 = vmatprep.subr.bf16.mxu0 0
        %1949 = vmatpush1.bf16.msra.mxu0 0
        %1950 = vmatprep.subr.bf16.mxu0 0
        %1951 = vmatpush1.bf16.msra.mxu0 0
        %1952 = vmatprep.subr.bf16.mxu0 0
        %1953 = vmatpush1.bf16.msra.mxu0 0
        %1954 = vmatprep.subr.bf16.mxu0 0
        %1955 = vmatpush1.bf16.msra.mxu0 0
        %1956 = vmatprep.subr.bf16.mxu0 0
        %1957 = vmatpush1.bf16.msra.mxu0 0
        %1958 = vmatprep.subr.bf16.mxu0 0
        %1959 = vmatpush1.bf16.msra.mxu0 0
        %1960 = vmatprep.subr.bf16.mxu0 0
        %1961 = vmatpush1.bf16.msra.mxu0 0
        %1962 = vmatprep.subr.bf16.mxu0 0
        %1963 = vmatpush1.bf16.msra.mxu0 0
        %1964 = vmatprep.mubr.bf16.mxu0 0
        %1965 = vmatmul.mubr.bf16.gmra.mrb[0].mxu0 %v363
        %v1966 = vpop.f32.mrb[0].mxu0
        %v1967 = vadd.f32 0.0, %v1966
        %v1968 = vpop.f32.mrb[0].mxu0
        %v1969 = vpop.f32.mrb[0].mxu0
        %v1970 = vadd.f32 0.0, %v1969
        %v1971 = vpop.f32.mrb[0].mxu0
        %1972 = vmatprep.mubr.bf16.mxu0 0
        %1973 = vmatmul.mubr.bf16.gmra.mrb[0].mxu0 %v366
        %v1974 = vpop.f32.mrb[0].mxu0
        %v1975 = vadd.f32 0.0, %v1974
        %v1976 = vpop.f32.mrb[0].mxu0
        %v1977 = vpop.f32.mrb[0].mxu0
        %v1978 = vpop.f32.mrb[0].mxu0
        %1979 = vmatprep.mubr.bf16.mxu0 0
        %1980 = vmatmul.mubr.bf16.gmra.mrb[0].mxu0 %v369
        %v1981 = vpop.f32.mrb[0].mxu0
        %v1982 = vadd.f32 0.0, %v1981
        %v1983 = vpop.f32.mrb[0].mxu0
        %v1984 = vpop.f32.mrb[0].mxu0
        %v1985 = vadd.f32 0.0, %v1984
        %v1986 = vpop.f32.mrb[0].mxu0
        %1987 = vmatprep.mubr.bf16.mxu0 0
        %1988 = vmatmul.mubr.bf16.gmra.mrb[0].mxu0 %v372
        %v1989 = vpop.f32.mrb[0].mxu0
        %v1990 = vadd.f32 0.0, %v1989
        %v1991 = vpop.f32.mrb[0].mxu0
        %v1992 = vpop.f32.mrb[0].mxu0
        %v1993 = vpop.f32.mrb[0].mxu0
        %1994 = vmatprep.mubr.bf16.mxu0 0
        %1995 = vmatmul.mubr.bf16.gmra.mrb[0].mxu0 %v375
        %v1996 = vpop.f32.mrb[0].mxu0
        %v1997 = vadd.f32 0.0, %v1996
        %v1998 = vpop.f32.mrb[0].mxu0
        %v1999 = vpop.f32.mrb[0].mxu0
        %v2000 = vadd.f32 0.0, %v1999
        %v2001 = vpop.f32.mrb[0].mxu0
        %2002 = vmatprep.mubr.bf16.mxu0 0
        %2003 = vmatmul.mubr.bf16.gmra.mrb[0].mxu0 %v378
        %v2004 = vpop.f32.mrb[0].mxu0
        %v2005 = vadd.f32 0.0, %v2004
        %v2006 = vpop.f32.mrb[0].mxu0
        %v2007 = vpop.f32.mrb[0].mxu0
        %v2008 = vpop.f32.mrb[0].mxu0
        %2009 = vmatprep.mubr.bf16.mxu0 0
        %2010 = vmatmul.mubr.bf16.gmra.mrb[0].mxu0 %v381
        %v2011 = vpop.f32.mrb[0].mxu0
        %v2012 = vadd.f32 0.0, %v2011
        %v2013 = vpop.f32.mrb[0].mxu0
        %v2014 = vpop.f32.mrb[0].mxu0
        %v2015 = vadd.f32 0.0, %v2014
        %v2016 = vpop.f32.mrb[0].mxu0
        %2017 = vmatprep.mubr.bf16.mxu0 0
        %2018 = vmatmul.mubr.bf16.gmra.mrb[0].mxu0 %v384
        %v2019 = vpop.f32.mrb[0].mxu0
        %v2020 = vadd.f32 0.0, %v2019
        %v2021 = vpop.f32.mrb[0].mxu0
        %v2022 = vpop.f32.mrb[0].mxu0
        %v2023 = vpop.f32.mrb[0].mxu0
        %2024 = vmatprep.mubr.bf16.mxu0 0
        %2025 = vmatmul.mubr.bf16.gmra.mrb[0].mxu0 %v387
        %v2026 = vpop.f32.mrb[0].mxu0
        %v2027 = vadd.f32 0.0, %v2026
        %v2028 = vpop.f32.mrb[0].mxu0
        %v2029 = vpop.f32.mrb[0].mxu0
        %v2030 = vadd.f32 0.0, %v2029
        %v2031 = vpop.f32.mrb[0].mxu0
        %2032 = vmatprep.mubr.bf16.mxu0 0
        %2033 = vmatmul.mubr.bf16.gmra.mrb[0].mxu0 %v390
        %v2034 = vpop.f32.mrb[0].mxu0
        %v2035 = vadd.f32 0.0, %v2034
        %v2036 = vpop.f32.mrb[0].mxu0
        %v2037 = vpop.f32.mrb[0].mxu0
        %v2038 = vpop.f32.mrb[0].mxu0
        %2039 = vmatprep.mubr.bf16.mxu0 0
        %2040 = vmatmul.mubr.bf16.gmra.mrb[0].mxu0 %v393
        %v2041 = vpop.f32.mrb[0].mxu0
        %v2042 = vadd.f32 0.0, %v2041
        %v2043 = vpop.f32.mrb[0].mxu0
        %v2044 = vpop.f32.mrb[0].mxu0
        %v2045 = vadd.f32 0.0, %v2044
        %v2046 = vpop.f32.mrb[0].mxu0
        %2047 = vmatprep.mubr.bf16.mxu0 0
        %2048 = vmatmul.mubr.bf16.gmra.mrb[0].mxu0 %v396
        %v2049 = vpop.f32.mrb[0].mxu0
        %v2050 = vadd.f32 0.0, %v2049
        %v2051 = vpop.f32.mrb[0].mxu0
        %v2052 = vpop.f32.mrb[0].mxu0
        %v2053 = vpop.f32.mrb[0].mxu0
        %2054 = vmatprep.mubr.bf16.mxu0 0
        %2055 = vmatmul.mubr.bf16.gmra.mrb[0].mxu0 %v399
        %v2056 = vpop.f32.mrb[0].mxu0
        %v2057 = vadd.f32 0.0, %v2056
        %v2058 = vpop.f32.mrb[0].mxu0
        %v2059 = vpop.f32.mrb[0].mxu0
        %v2060 = vadd.f32 0.0, %v2059
        %v2061 = vpop.f32.mrb[0].mxu0
        %2062 = vmatprep.mubr.bf16.mxu0 0
        %2063 = vmatmul.mubr.bf16.gmra.mrb[0].mxu0 %v402
        %v2064 = vpop.f32.mrb[0].mxu0
        %v2065 = vadd.f32 0.0, %v2064
        %v2066 = vpop.f32.mrb[0].mxu0
        %v2067 = vpop.f32.mrb[0].mxu0
        %v2068 = vpop.f32.mrb[0].mxu0
        %2069 = vmatprep.mubr.bf16.mxu0 0
        %2070 = vmatmul.mubr.bf16.gmra.mrb[0].mxu0 %v405
        %v2071 = vpop.f32.mrb[0].mxu0
        %v2072 = vadd.f32 0.0, %v2071
        %v2073 = vpop.f32.mrb[0].mxu0
        %v2074 = vpop.f32.mrb[0].mxu0
        %v2075 = vadd.f32 0.0, %v2074
        %v2076 = vpop.f32.mrb[0].mxu0
        %2077 = vmatprep.mubr.bf16.mxu0 0
        %2078 = vmatmul.mubr.bf16.gmra.mrb[0].mxu0 %v1554
        %v2079 = vpop.f32.mrb[0].mxu0
        %v2080 = vadd.f32 0.0, %v2079
        %v2081 = vpop.f32.mrb[0].mxu0
        %v2082 = vpop.f32.mrb[0].mxu0
        %v2083 = vpop.f32.mrb[0].mxu0
        %2084 = vmatprep.mubr.bf16.mxu0 0
        %2085 = vmatmul.mubr.bf16.gmra.mrb[0].mxu0 %v1557
        %v2086 = vpop.f32.mrb[0].mxu0
        %v2087 = vpop.f32.mrb[0].mxu0
        %v2088 = vpop.f32.mrb[0].mxu0
        %v2089 = vpop.f32.mrb[0].mxu0
        %2090 = vdwg.mxu0
        %v2091 = vadd.f32 %v1032, %v1609
        %v2092 = vadd.f32 %v1034, %v1611
        %v2093 = vadd.f32 %v1207, %v1784
        %v2094 = vadd.f32 %v1209, %v1786
        %v2095 = vadd.f32 %v1390, %v1967
        %v2096 = vadd.f32 %v1036, %v1613
        %v2097 = vadd.f32 %v1038, %v1615
        %v2098 = vadd.f32 %v1211, %v1788
        %v2099 = vadd.f32 %v1213, %v1790
        %v2100 = vadd.f32 %v1393, %v1970
        %v2101 = vadd.f32 %v1043, %v1620
        %v2102 = vadd.f32 %v1217, %v1794
        %v2103 = vadd.f32 %v1219, %v1796
        %v2104 = vadd.f32 %v1398, %v1975
        %v2105 = vadd.f32 %v1049, %v1626
        %v2106 = vadd.f32 %v1051, %v1628
        %v2107 = vadd.f32 %v1225, %v1802
        %v2108 = vadd.f32 %v1227, %v1804
        %v2109 = vadd.f32 %v1405, %v1982
        %v2110 = vadd.f32 %v1053, %v1630
        %v2111 = vadd.f32 %v1055, %v1632
        %v2112 = vadd.f32 %v1229, %v1806
        %v2113 = vadd.f32 %v1231, %v1808
        %v2114 = vadd.f32 %v1408, %v1985
        %v2115 = vadd.f32 %v1060, %v1637
        %v2116 = vadd.f32 %v1235, %v1812
        %v2117 = vadd.f32 %v1237, %v1814
        %v2118 = vadd.f32 %v1413, %v1990
        %v2119 = vadd.f32 %v1066, %v1643
        %v2120 = vadd.f32 %v1068, %v1645
        %v2121 = vadd.f32 %v1243, %v1820
        %v2122 = vadd.f32 %v1245, %v1822
        %v2123 = vadd.f32 %v1420, %v1997
        %v2124 = vadd.f32 %v1070, %v1647
        %v2125 = vadd.f32 %v1072, %v1649
        %v2126 = vadd.f32 %v1247, %v1824
        %v2127 = vadd.f32 %v1249, %v1826
        %v2128 = vadd.f32 %v1423, %v2000
        %v2129 = vadd.f32 %v1077, %v1654
        %v2130 = vadd.f32 %v1253, %v1830
        %v2131 = vadd.f32 %v1255, %v1832
        %v2132 = vadd.f32 %v1428, %v2005
        %v2133 = vadd.f32 %v1083, %v1660
        %v2134 = vadd.f32 %v1085, %v1662
        %v2135 = vadd.f32 %v1261, %v1838
        %v2136 = vadd.f32 %v1263, %v1840
        %v2137 = vadd.f32 %v1435, %v2012
        %v2138 = vadd.f32 %v1087, %v1664
        %v2139 = vadd.f32 %v1089, %v1666
        %v2140 = vadd.f32 %v1265, %v1842
        %v2141 = vadd.f32 %v1267, %v1844
        %v2142 = vadd.f32 %v1438, %v2015
        %v2143 = vadd.f32 %v1094, %v1671
        %v2144 = vadd.f32 %v1271, %v1848
        %v2145 = vadd.f32 %v1273, %v1850
        %v2146 = vadd.f32 %v1443, %v2020
        %v2147 = vadd.f32 %v1100, %v1677
        %v2148 = vadd.f32 %v1102, %v1679
        %v2149 = vadd.f32 %v1279, %v1856
        %v2150 = vadd.f32 %v1281, %v1858
        %v2151 = vadd.f32 %v1450, %v2027
        %v2152 = vadd.f32 %v1104, %v1681
        %v2153 = vadd.f32 %v1106, %v1683
        %v2154 = vadd.f32 %v1283, %v1860
        %v2155 = vadd.f32 %v1285, %v1862
        %v2156 = vadd.f32 %v1453, %v2030
        %v2157 = vadd.f32 %v1111, %v1688
        %v2158 = vadd.f32 %v1289, %v1866
        %v2159 = vadd.f32 %v1291, %v1868
        %v2160 = vadd.f32 %v1458, %v2035
        %v2161 = vadd.f32 %v1117, %v1694
        %v2162 = vadd.f32 %v1119, %v1696
        %v2163 = vadd.f32 %v1297, %v1874
        %v2164 = vadd.f32 %v1299, %v1876
        %v2165 = vadd.f32 %v1465, %v2042
        %v2166 = vadd.f32 %v1121, %v1698
        %v2167 = vadd.f32 %v1123, %v1700
        %v2168 = vadd.f32 %v1301, %v1878
        %v2169 = vadd.f32 %v1303, %v1880
        %v2170 = vadd.f32 %v1468, %v2045
        %v2171 = vadd.f32 %v1128, %v1705
        %v2172 = vadd.f32 %v1307, %v1884
        %v2173 = vadd.f32 %v1309, %v1886
        %v2174 = vadd.f32 %v1473, %v2050
        %v2175 = vadd.f32 %v1134, %v1711
        %v2176 = vadd.f32 %v1136, %v1713
        %v2177 = vadd.f32 %v1315, %v1892
        %v2178 = vadd.f32 %v1317, %v1894
        %v2179 = vadd.f32 %v1480, %v2057
        %v2180 = vadd.f32 %v1138, %v1715
        %v2181 = vadd.f32 %v1140, %v1717
        %v2182 = vadd.f32 %v1319, %v1896
        %v2183 = vadd.f32 %v1321, %v1898
        %v2184 = vadd.f32 %v1483, %v2060
        %v2185 = vadd.f32 %v1145, %v1722
        %v2186 = vadd.f32 %v1325, %v1902
        %v2187 = vadd.f32 %v1327, %v1904
        %v2188 = vadd.f32 %v1488, %v2065
        %v2189 = vadd.f32 %v1151, %v1728
        %v2190 = vadd.f32 %v1153, %v1730
        %v2191 = vadd.f32 %v1333, %v1910
        %v2192 = vadd.f32 %v1335, %v1912
        %v2193 = vadd.f32 %v1495, %v2072
        %v2194 = vadd.f32 %v1155, %v1732
        %v2195 = vadd.f32 %v1157, %v1734
        %v2196 = vadd.f32 %v1337, %v1914
        %v2197 = vadd.f32 %v1339, %v1916
        %v2198 = vadd.f32 %v1498, %v2075
        %v2199 = vadd.f32 %v1162, %v1739
        %v2200 = vadd.f32 %v1343, %v1920
        %v2201 = vadd.f32 %v1345, %v1922
        %v2202 = vadd.f32 %v1503, %v2080
        %s2203 = scalar_lea.vmem %s1, 30
        %v2204 = vld [vmem:[%s2203] sm:$0xff]
        %v2205 = vld [vmem:[%s2203 + $0x8] sm:$0x3]
        %v2210 = vunpack.c.l.b16 %v231
        %v2211 = vunpack.c.l.b16 %v232
        %v2212 = vunpack.c.l.b16 %v233
        %v2213 = vunpack.c.l.b16 %v234
        %v2214 = vpack.c.b16 %v2211, %v2210
        %v2215 = vpack.c.b16 %v2213, %v2212
        %v2218 = vcombine.high %v2204, %v2204
        %v2220 = vunpack.c.l.s4 1983009808
        %v2221 = vunpack.c.0.s8 %v2220
        %v2222 = vlaneseq
        %v2223 = vshrl.u32 %v2222, 7
        %v2224 = vsub.s32 %v2221, %v2223
        %v2225 = vrot.slane %v2204, %v2224
        %v2227 = vunpack.c.l.s4 1983009808
        %v2228 = vunpack.c.0.s8 %v2227
        %v2229 = vlaneseq
        %v2230 = vshrl.u32 %v2229, 7
        %v2231 = vsub.s32 %v2228, %v2230
        %v2232 = vrot.slane %v2218, %v2231
        %v2233 = vcombine.high %v2225, %v2225
        %v2234 = vcombine.high %v2232, %v2232
        %v2236 = vunpack.c.l.s4 1983009808
        %v2237 = vunpack.c.0.s8 %v2236
        %v2238 = vlaneseq
        %v2239 = vshrl.u32 %v2238, 7
        %v2240 = vsub.s32 %v2237, %v2239
        %v2241 = vrot.slane %v2205, %v2240
        %v2243 = vsel %vm355, %v2214, 0
        %v2246 = vsel %vm355, %v2215, 0
        %v2249 = vsel %vm407, %v2225, 0
        %v2252 = vsel %vm407, %v2233, 0
        %v2255 = vsel %vm407, %v2232, 0
        %v2258 = vsel %vm407, %v2234, 0
        %v2261 = vsel %vm407, %v2241, 0
        %2263 = vmatprep.subr.bf16.mxu0 %v2252
        %2264 = vmatpush1.bf16.msra.mxu0 %v2249
        %2265 = vmatprep.subr.bf16.mxu0 0
        %2266 = vmatpush1.bf16.msra.mxu0 0
        %2267 = vmatprep.subr.bf16.mxu0 0
        %2268 = vmatpush1.bf16.msra.mxu0 0
        %2269 = vmatprep.subr.bf16.mxu0 0
        %2270 = vmatpush1.bf16.msra.mxu0 0
        %2271 = vmatprep.subr.bf16.mxu0 0
        %2272 = vmatpush1.bf16.msra.mxu0 0
        %2273 = vmatprep.subr.bf16.mxu0 0
        %2274 = vmatpush1.bf16.msra.mxu0 0
        %2275 = vmatprep.subr.bf16.mxu0 0
        %2276 = vmatpush1.bf16.msra.mxu0 0
        %2277 = vmatprep.subr.bf16.mxu0 0
        %2278 = vmatpush1.bf16.msra.mxu0 0
        %2279 = vmatprep.subr.bf16.mxu0 0
        %2280 = vmatpush1.bf16.msra.mxu0 0
        %2281 = vmatprep.subr.bf16.mxu0 0
        %2282 = vmatpush1.bf16.msra.mxu0 0
        %2283 = vmatprep.subr.bf16.mxu0 0
        %2284 = vmatpush1.bf16.msra.mxu0 0
        %2285 = vmatprep.subr.bf16.mxu0 0
        %2286 = vmatpush1.bf16.msra.mxu0 0
        %2287 = vmatprep.subr.bf16.mxu0 0
        %2288 = vmatpush1.bf16.msra.mxu0 0
        %2289 = vmatprep.subr.bf16.mxu0 0
        %2290 = vmatpush1.bf16.msra.mxu0 0
        %2291 = vmatprep.subr.bf16.mxu0 0
        %2292 = vmatpush1.bf16.msra.mxu0 0
        %2293 = vmatprep.subr.bf16.mxu0 0
        %2294 = vmatpush1.bf16.msra.mxu0 0
        %2295 = vmatprep.mubr.bf16.mxu0 0
        %2296 = vmatmul.mubr.bf16.gmra.mrb[0].mxu0 %v369
        %v2297 = vpop.f32.mrb[0].mxu0
        %v2298 = vadd.f32 0.0, %v2297
        %v2299 = vpop.f32.mrb[0].mxu0
        %v2300 = vadd.f32 0.0, %v2299
        %v2301 = vpop.f32.mrb[0].mxu0
        %v2302 = vadd.f32 0.0, %v2301
        %v2303 = vpop.f32.mrb[0].mxu0
        %v2304 = vadd.f32 0.0, %v2303
        %2305 = vmatprep.mubr.bf16.mxu0 0
        %2306 = vmatmul.mubr.bf16.gmra.mrb[0].mxu0 %v372
        %v2307 = vpop.f32.mrb[0].mxu0
        %v2308 = vpop.f32.mrb[0].mxu0
        %v2309 = vadd.f32 0.0, %v2308
        %v2310 = vpop.f32.mrb[0].mxu0
        %v2311 = vpop.f32.mrb[0].mxu0
        %2312 = vmatprep.mubr.bf16.mxu0 0
        %2313 = vmatmul.mubr.bf16.gmra.mrb[0].mxu0 %v375
        %v2314 = vpop.f32.mrb[0].mxu0
        %v2315 = vadd.f32 0.0, %v2314
        %v2316 = vpop.f32.mrb[0].mxu0
        %v2317 = vadd.f32 0.0, %v2316
        %v2318 = vpop.f32.mrb[0].mxu0
        %v2319 = vadd.f32 0.0, %v2318
        %v2320 = vpop.f32.mrb[0].mxu0
        %v2321 = vadd.f32 0.0, %v2320
        %2322 = vmatprep.mubr.bf16.mxu0 0
        %2323 = vmatmul.mubr.bf16.gmra.mrb[0].mxu0 %v378
        %v2324 = vpop.f32.mrb[0].mxu0
        %v2325 = vpop.f32.mrb[0].mxu0
        %v2326 = vadd.f32 0.0, %v2325
        %v2327 = vpop.f32.mrb[0].mxu0
        %v2328 = vpop.f32.mrb[0].mxu0
        %2329 = vmatprep.mubr.bf16.mxu0 0
        %2330 = vmatmul.mubr.bf16.gmra.mrb[0].mxu0 %v381
        %v2331 = vpop.f32.mrb[0].mxu0
        %v2332 = vadd.f32 0.0, %v2331
        %v2333 = vpop.f32.mrb[0].mxu0
        %v2334 = vadd.f32 0.0, %v2333
        %v2335 = vpop.f32.mrb[0].mxu0
        %v2336 = vadd.f32 0.0, %v2335
        %v2337 = vpop.f32.mrb[0].mxu0
        %v2338 = vadd.f32 0.0, %v2337
        %2339 = vmatprep.mubr.bf16.mxu0 0
        %2340 = vmatmul.mubr.bf16.gmra.mrb[0].mxu0 %v384
        %v2341 = vpop.f32.mrb[0].mxu0
        %v2342 = vpop.f32.mrb[0].mxu0
        %v2343 = vadd.f32 0.0, %v2342
        %v2344 = vpop.f32.mrb[0].mxu0
        %v2345 = vpop.f32.mrb[0].mxu0
        %2346 = vmatprep.mubr.bf16.mxu0 0
        %2347 = vmatmul.mubr.bf16.gmra.mrb[0].mxu0 %v387
        %v2348 = vpop.f32.mrb[0].mxu0
        %v2349 = vadd.f32 0.0, %v2348
        %v2350 = vpop.f32.mrb[0].mxu0
        %v2351 = vadd.f32 0.0, %v2350
        %v2352 = vpop.f32.mrb[0].mxu0
        %v2353 = vadd.f32 0.0, %v2352
        %v2354 = vpop.f32.mrb[0].mxu0
        %v2355 = vadd.f32 0.0, %v2354
        %2356 = vmatprep.mubr.bf16.mxu0 0
        %2357 = vmatmul.mubr.bf16.gmra.mrb[0].mxu0 %v390
        %v2358 = vpop.f32.mrb[0].mxu0
        %v2359 = vpop.f32.mrb[0].mxu0
        %v2360 = vadd.f32 0.0, %v2359
        %v2361 = vpop.f32.mrb[0].mxu0
        %v2362 = vpop.f32.mrb[0].mxu0
        %2363 = vmatprep.mubr.bf16.mxu0 0
        %2364 = vmatmul.mubr.bf16.gmra.mrb[0].mxu0 %v393
        %v2365 = vpop.f32.mrb[0].mxu0
        %v2366 = vadd.f32 0.0, %v2365
        %v2367 = vpop.f32.mrb[0].mxu0
        %v2368 = vadd.f32 0.0, %v2367
        %v2369 = vpop.f32.mrb[0].mxu0
        %v2370 = vadd.f32 0.0, %v2369
        %v2371 = vpop.f32.mrb[0].mxu0
        %v2372 = vadd.f32 0.0, %v2371
        %2373 = vmatprep.mubr.bf16.mxu0 0
        %2374 = vmatmul.mubr.bf16.gmra.mrb[0].mxu0 %v396
        %v2375 = vpop.f32.mrb[0].mxu0
        %v2376 = vpop.f32.mrb[0].mxu0
        %v2377 = vadd.f32 0.0, %v2376
        %v2378 = vpop.f32.mrb[0].mxu0
        %v2379 = vpop.f32.mrb[0].mxu0
        %2380 = vmatprep.mubr.bf16.mxu0 0
        %2381 = vmatmul.mubr.bf16.gmra.mrb[0].mxu0 %v399
        %v2382 = vpop.f32.mrb[0].mxu0
        %v2383 = vadd.f32 0.0, %v2382
        %v2384 = vpop.f32.mrb[0].mxu0
        %v2385 = vadd.f32 0.0, %v2384
        %v2386 = vpop.f32.mrb[0].mxu0
        %v2387 = vadd.f32 0.0, %v2386
        %v2388 = vpop.f32.mrb[0].mxu0
        %v2389 = vadd.f32 0.0, %v2388
        %2390 = vmatprep.mubr.bf16.mxu0 0
        %2391 = vmatmul.mubr.bf16.gmra.mrb[0].mxu0 %v402
        %v2392 = vpop.f32.mrb[0].mxu0
        %v2393 = vpop.f32.mrb[0].mxu0
        %v2394 = vadd.f32 0.0, %v2393
        %v2395 = vpop.f32.mrb[0].mxu0
        %v2396 = vpop.f32.mrb[0].mxu0
        %2397 = vmatprep.mubr.bf16.mxu0 0
        %2398 = vmatmul.mubr.bf16.gmra.mrb[0].mxu0 %v405
        %v2399 = vpop.f32.mrb[0].mxu0
        %v2400 = vadd.f32 0.0, %v2399
        %v2401 = vpop.f32.mrb[0].mxu0
        %v2402 = vadd.f32 0.0, %v2401
        %v2403 = vpop.f32.mrb[0].mxu0
        %v2404 = vadd.f32 0.0, %v2403
        %v2405 = vpop.f32.mrb[0].mxu0
        %v2406 = vadd.f32 0.0, %v2405
        %2407 = vmatprep.mubr.bf16.mxu0 0
        %2408 = vmatmul.mubr.bf16.gmra.mrb[0].mxu0 %v1554
        %v2409 = vpop.f32.mrb[0].mxu0
        %v2410 = vpop.f32.mrb[0].mxu0
        %v2411 = vadd.f32 0.0, %v2410
        %v2412 = vpop.f32.mrb[0].mxu0
        %v2413 = vpop.f32.mrb[0].mxu0
        %2414 = vmatprep.mubr.bf16.mxu0 0
        %2415 = vmatmul.mubr.bf16.gmra.mrb[0].mxu0 %v1557
        %v2416 = vpop.f32.mrb[0].mxu0
        %v2417 = vadd.f32 0.0, %v2416
        %v2418 = vpop.f32.mrb[0].mxu0
        %v2419 = vadd.f32 0.0, %v2418
        %v2420 = vpop.f32.mrb[0].mxu0
        %v2421 = vadd.f32 0.0, %v2420
        %v2422 = vpop.f32.mrb[0].mxu0
        %v2423 = vadd.f32 0.0, %v2422
        %2424 = vmatprep.mubr.bf16.mxu0 0
        %2425 = vmatmul.mubr.bf16.gmra.mrb[0].mxu0 %v2243
        %v2426 = vpop.f32.mrb[0].mxu0
        %v2427 = vpop.f32.mrb[0].mxu0
        %v2428 = vadd.f32 0.0, %v2427
        %v2429 = vpop.f32.mrb[0].mxu0
        %v2430 = vpop.f32.mrb[0].mxu0
        %2431 = vmatprep.mubr.bf16.mxu0 0
        %2432 = vmatmul.mubr.bf16.gmra.mrb[0].mxu0 %v2246
        %v2433 = vpop.f32.mrb[0].mxu0
        %v2434 = vpop.f32.mrb[0].mxu0
        %v2435 = vpop.f32.mrb[0].mxu0
        %v2436 = vpop.f32.mrb[0].mxu0
        %2437 = vdwg.mxu0
        %2438 = vmatprep.subr.bf16.mxu0 %v2258
        %2439 = vmatpush1.bf16.msra.mxu0 %v2255
        %2440 = vmatprep.subr.bf16.mxu0 0
        %2441 = vmatpush1.bf16.msra.mxu0 0
        %2442 = vmatprep.subr.bf16.mxu0 0
        %2443 = vmatpush1.bf16.msra.mxu0 0
        %2444 = vmatprep.subr.bf16.mxu0 0
        %2445 = vmatpush1.bf16.msra.mxu0 0
        %2446 = vmatprep.subr.bf16.mxu0 0
        %2447 = vmatpush1.bf16.msra.mxu0 0
        %2448 = vmatprep.subr.bf16.mxu0 0
        %2449 = vmatpush1.bf16.msra.mxu0 0
        %2450 = vmatprep.subr.bf16.mxu0 0
        %2451 = vmatpush1.bf16.msra.mxu0 0
        %2452 = vmatprep.subr.bf16.mxu0 0
        %2453 = vmatpush1.bf16.msra.mxu0 0
        %2454 = vmatprep.subr.bf16.mxu0 0
        %2455 = vmatpush1.bf16.msra.mxu0 0
        %2456 = vmatprep.subr.bf16.mxu0 0
        %2457 = vmatpush1.bf16.msra.mxu0 0
        %2458 = vmatprep.subr.bf16.mxu0 0
        %2459 = vmatpush1.bf16.msra.mxu0 0
        %2460 = vmatprep.subr.bf16.mxu0 0
        %2461 = vmatpush1.bf16.msra.mxu0 0
        %2462 = vmatprep.subr.bf16.mxu0 0
        %2463 = vmatpush1.bf16.msra.mxu0 0
        %2464 = vmatprep.subr.bf16.mxu0 0
        %2465 = vmatpush1.bf16.msra.mxu0 0
        %2466 = vmatprep.subr.bf16.mxu0 0
        %2467 = vmatpush1.bf16.msra.mxu0 0
        %2468 = vmatprep.subr.bf16.mxu0 0
        %2469 = vmatpush1.bf16.msra.mxu0 0
        %2470 = vmatprep.mubr.bf16.mxu0 0
        %2471 = vmatmul.mubr.bf16.gmra.mrb[0].mxu0 %v369
        %v2472 = vpop.f32.mrb[0].mxu0
        %v2473 = vadd.f32 0.0, %v2472
        %v2474 = vpop.f32.mrb[0].mxu0
        %v2475 = vadd.f32 0.0, %v2474
        %v2476 = vpop.f32.mrb[0].mxu0
        %v2477 = vadd.f32 0.0, %v2476
        %v2478 = vpop.f32.mrb[0].mxu0
        %v2479 = vadd.f32 0.0, %v2478
        %2480 = vmatprep.mubr.bf16.mxu0 0
        %2481 = vmatmul.mubr.bf16.gmra.mrb[0].mxu0 %v372
        %v2482 = vpop.f32.mrb[0].mxu0
        %v2483 = vadd.f32 0.0, %v2482
        %v2484 = vpop.f32.mrb[0].mxu0
        %v2485 = vadd.f32 0.0, %v2484
        %v2486 = vpop.f32.mrb[0].mxu0
        %v2487 = vpop.f32.mrb[0].mxu0
        %2488 = vmatprep.mubr.bf16.mxu0 0
        %2489 = vmatmul.mubr.bf16.gmra.mrb[0].mxu0 %v375
        %v2490 = vpop.f32.mrb[0].mxu0
        %v2491 = vadd.f32 0.0, %v2490
        %v2492 = vpop.f32.mrb[0].mxu0
        %v2493 = vadd.f32 0.0, %v2492
        %v2494 = vpop.f32.mrb[0].mxu0
        %v2495 = vadd.f32 0.0, %v2494
        %v2496 = vpop.f32.mrb[0].mxu0
        %v2497 = vadd.f32 0.0, %v2496
        %2498 = vmatprep.mubr.bf16.mxu0 0
        %2499 = vmatmul.mubr.bf16.gmra.mrb[0].mxu0 %v378
        %v2500 = vpop.f32.mrb[0].mxu0
        %v2501 = vadd.f32 0.0, %v2500
        %v2502 = vpop.f32.mrb[0].mxu0
        %v2503 = vadd.f32 0.0, %v2502
        %v2504 = vpop.f32.mrb[0].mxu0
        %v2505 = vpop.f32.mrb[0].mxu0
        %2506 = vmatprep.mubr.bf16.mxu0 0
        %2507 = vmatmul.mubr.bf16.gmra.mrb[0].mxu0 %v381
        %v2508 = vpop.f32.mrb[0].mxu0
        %v2509 = vadd.f32 0.0, %v2508
        %v2510 = vpop.f32.mrb[0].mxu0
        %v2511 = vadd.f32 0.0, %v2510
        %v2512 = vpop.f32.mrb[0].mxu0
        %v2513 = vadd.f32 0.0, %v2512
        %v2514 = vpop.f32.mrb[0].mxu0
        %v2515 = vadd.f32 0.0, %v2514
        %2516 = vmatprep.mubr.bf16.mxu0 0
        %2517 = vmatmul.mubr.bf16.gmra.mrb[0].mxu0 %v384
        %v2518 = vpop.f32.mrb[0].mxu0
        %v2519 = vadd.f32 0.0, %v2518
        %v2520 = vpop.f32.mrb[0].mxu0
        %v2521 = vadd.f32 0.0, %v2520
        %v2522 = vpop.f32.mrb[0].mxu0
        %v2523 = vpop.f32.mrb[0].mxu0
        %2524 = vmatprep.mubr.bf16.mxu0 0
        %2525 = vmatmul.mubr.bf16.gmra.mrb[0].mxu0 %v387
        %v2526 = vpop.f32.mrb[0].mxu0
        %v2527 = vadd.f32 0.0, %v2526
        %v2528 = vpop.f32.mrb[0].mxu0
        %v2529 = vadd.f32 0.0, %v2528
        %v2530 = vpop.f32.mrb[0].mxu0
        %v2531 = vadd.f32 0.0, %v2530
        %v2532 = vpop.f32.mrb[0].mxu0
        %v2533 = vadd.f32 0.0, %v2532
        %2534 = vmatprep.mubr.bf16.mxu0 0
        %2535 = vmatmul.mubr.bf16.gmra.mrb[0].mxu0 %v390
        %v2536 = vpop.f32.mrb[0].mxu0
        %v2537 = vadd.f32 0.0, %v2536
        %v2538 = vpop.f32.mrb[0].mxu0
        %v2539 = vadd.f32 0.0, %v2538
        %v2540 = vpop.f32.mrb[0].mxu0
        %v2541 = vpop.f32.mrb[0].mxu0
        %2542 = vmatprep.mubr.bf16.mxu0 0
        %2543 = vmatmul.mubr.bf16.gmra.mrb[0].mxu0 %v393
        %v2544 = vpop.f32.mrb[0].mxu0
        %v2545 = vadd.f32 0.0, %v2544
        %v2546 = vpop.f32.mrb[0].mxu0
        %v2547 = vadd.f32 0.0, %v2546
        %v2548 = vpop.f32.mrb[0].mxu0
        %v2549 = vadd.f32 0.0, %v2548
        %v2550 = vpop.f32.mrb[0].mxu0
        %v2551 = vadd.f32 0.0, %v2550
        %2552 = vmatprep.mubr.bf16.mxu0 0
        %2553 = vmatmul.mubr.bf16.gmra.mrb[0].mxu0 %v396
        %v2554 = vpop.f32.mrb[0].mxu0
        %v2555 = vadd.f32 0.0, %v2554
        %v2556 = vpop.f32.mrb[0].mxu0
        %v2557 = vadd.f32 0.0, %v2556
        %v2558 = vpop.f32.mrb[0].mxu0
        %v2559 = vpop.f32.mrb[0].mxu0
        %2560 = vmatprep.mubr.bf16.mxu0 0
        %2561 = vmatmul.mubr.bf16.gmra.mrb[0].mxu0 %v399
        %v2562 = vpop.f32.mrb[0].mxu0
        %v2563 = vadd.f32 0.0, %v2562
        %v2564 = vpop.f32.mrb[0].mxu0
        %v2565 = vadd.f32 0.0, %v2564
        %v2566 = vpop.f32.mrb[0].mxu0
        %v2567 = vadd.f32 0.0, %v2566
        %v2568 = vpop.f32.mrb[0].mxu0
        %v2569 = vadd.f32 0.0, %v2568
        %2570 = vmatprep.mubr.bf16.mxu0 0
        %2571 = vmatmul.mubr.bf16.gmra.mrb[0].mxu0 %v402
        %v2572 = vpop.f32.mrb[0].mxu0
        %v2573 = vadd.f32 0.0, %v2572
        %v2574 = vpop.f32.mrb[0].mxu0
        %v2575 = vadd.f32 0.0, %v2574
        %v2576 = vpop.f32.mrb[0].mxu0
        %v2577 = vpop.f32.mrb[0].mxu0
        %2578 = vmatprep.mubr.bf16.mxu0 0
        %2579 = vmatmul.mubr.bf16.gmra.mrb[0].mxu0 %v405
        %v2580 = vpop.f32.mrb[0].mxu0
        %v2581 = vadd.f32 0.0, %v2580
        %v2582 = vpop.f32.mrb[0].mxu0
        %v2583 = vadd.f32 0.0, %v2582
        %v2584 = vpop.f32.mrb[0].mxu0
        %v2585 = vadd.f32 0.0, %v2584
        %v2586 = vpop.f32.mrb[0].mxu0
        %v2587 = vadd.f32 0.0, %v2586
        %2588 = vmatprep.mubr.bf16.mxu0 0
        %2589 = vmatmul.mubr.bf16.gmra.mrb[0].mxu0 %v1554
        %v2590 = vpop.f32.mrb[0].mxu0
        %v2591 = vadd.f32 0.0, %v2590
        %v2592 = vpop.f32.mrb[0].mxu0
        %v2593 = vadd.f32 0.0, %v2592
        %v2594 = vpop.f32.mrb[0].mxu0
        %v2595 = vpop.f32.mrb[0].mxu0
        %2596 = vmatprep.mubr.bf16.mxu0 0
        %2597 = vmatmul.mubr.bf16.gmra.mrb[0].mxu0 %v1557
        %v2598 = vpop.f32.mrb[0].mxu0
        %v2599 = vadd.f32 0.0, %v2598
        %v2600 = vpop.f32.mrb[0].mxu0
        %v2601 = vadd.f32 0.0, %v2600
        %v2602 = vpop.f32.mrb[0].mxu0
        %v2603 = vadd.f32 0.0, %v2602
        %v2604 = vpop.f32.mrb[0].mxu0
        %v2605 = vadd.f32 0.0, %v2604
        %2606 = vmatprep.mubr.bf16.mxu0 0
        %2607 = vmatmul.mubr.bf16.gmra.mrb[0].mxu0 %v2243
        %v2608 = vpop.f32.mrb[0].mxu0
        %v2609 = vadd.f32 0.0, %v2608
        %v2610 = vpop.f32.mrb[0].mxu0
        %v2611 = vadd.f32 0.0, %v2610
        %v2612 = vpop.f32.mrb[0].mxu0
        %v2613 = vpop.f32.mrb[0].mxu0
        %2614 = vmatprep.mubr.bf16.mxu0 0
        %2615 = vmatmul.mubr.bf16.gmra.mrb[0].mxu0 %v2246
        %v2616 = vpop.f32.mrb[0].mxu0
        %v2617 = vpop.f32.mrb[0].mxu0
        %v2618 = vpop.f32.mrb[0].mxu0
        %v2619 = vpop.f32.mrb[0].mxu0
        %2620 = vdwg.mxu0
        %2621 = vmatprep.subr.bf16.mxu0 0
        %2622 = vmatpush1.bf16.msra.mxu0 %v2261
        %2623 = vmatprep.subr.bf16.mxu0 0
        %2624 = vmatpush1.bf16.msra.mxu0 0
        %2625 = vmatprep.subr.bf16.mxu0 0
        %2626 = vmatpush1.bf16.msra.mxu0 0
        %2627 = vmatprep.subr.bf16.mxu0 0
        %2628 = vmatpush1.bf16.msra.mxu0 0
        %2629 = vmatprep.subr.bf16.mxu0 0
        %2630 = vmatpush1.bf16.msra.mxu0 0
        %2631 = vmatprep.subr.bf16.mxu0 0
        %2632 = vmatpush1.bf16.msra.mxu0 0
        %2633 = vmatprep.subr.bf16.mxu0 0
        %2634 = vmatpush1.bf16.msra.mxu0 0
        %2635 = vmatprep.subr.bf16.mxu0 0
        %2636 = vmatpush1.bf16.msra.mxu0 0
        %2637 = vmatprep.subr.bf16.mxu0 0
        %2638 = vmatpush1.bf16.msra.mxu0 0
        %2639 = vmatprep.subr.bf16.mxu0 0
        %2640 = vmatpush1.bf16.msra.mxu0 0
        %2641 = vmatprep.subr.bf16.mxu0 0
        %2642 = vmatpush1.bf16.msra.mxu0 0
        %2643 = vmatprep.subr.bf16.mxu0 0
        %2644 = vmatpush1.bf16.msra.mxu0 0
        %2645 = vmatprep.subr.bf16.mxu0 0
        %2646 = vmatpush1.bf16.msra.mxu0 0
        %2647 = vmatprep.subr.bf16.mxu0 0
        %2648 = vmatpush1.bf16.msra.mxu0 0
        %2649 = vmatprep.subr.bf16.mxu0 0
        %2650 = vmatpush1.bf16.msra.mxu0 0
        %2651 = vmatprep.subr.bf16.mxu0 0
        %2652 = vmatpush1.bf16.msra.mxu0 0
        %2653 = vmatprep.mubr.bf16.mxu0 0
        %2654 = vmatmul.mubr.bf16.gmra.mrb[0].mxu0 %v369
        %v2655 = vpop.f32.mrb[0].mxu0
        %v2656 = vadd.f32 0.0, %v2655
        %v2657 = vpop.f32.mrb[0].mxu0
        %v2658 = vpop.f32.mrb[0].mxu0
        %v2659 = vadd.f32 0.0, %v2658
        %v2660 = vpop.f32.mrb[0].mxu0
        %2661 = vmatprep.mubr.bf16.mxu0 0
        %2662 = vmatmul.mubr.bf16.gmra.mrb[0].mxu0 %v372
        %v2663 = vpop.f32.mrb[0].mxu0
        %v2664 = vadd.f32 0.0, %v2663
        %v2665 = vpop.f32.mrb[0].mxu0
        %v2666 = vpop.f32.mrb[0].mxu0
        %v2667 = vpop.f32.mrb[0].mxu0
        %2668 = vmatprep.mubr.bf16.mxu0 0
        %2669 = vmatmul.mubr.bf16.gmra.mrb[0].mxu0 %v375
        %v2670 = vpop.f32.mrb[0].mxu0
        %v2671 = vadd.f32 0.0, %v2670
        %v2672 = vpop.f32.mrb[0].mxu0
        %v2673 = vpop.f32.mrb[0].mxu0
        %v2674 = vadd.f32 0.0, %v2673
        %v2675 = vpop.f32.mrb[0].mxu0
        %2676 = vmatprep.mubr.bf16.mxu0 0
        %2677 = vmatmul.mubr.bf16.gmra.mrb[0].mxu0 %v378
        %v2678 = vpop.f32.mrb[0].mxu0
        %v2679 = vadd.f32 0.0, %v2678
        %v2680 = vpop.f32.mrb[0].mxu0
        %v2681 = vpop.f32.mrb[0].mxu0
        %v2682 = vpop.f32.mrb[0].mxu0
        %2683 = vmatprep.mubr.bf16.mxu0 0
        %2684 = vmatmul.mubr.bf16.gmra.mrb[0].mxu0 %v381
        %v2685 = vpop.f32.mrb[0].mxu0
        %v2686 = vadd.f32 0.0, %v2685
        %v2687 = vpop.f32.mrb[0].mxu0
        %v2688 = vpop.f32.mrb[0].mxu0
        %v2689 = vadd.f32 0.0, %v2688
        %v2690 = vpop.f32.mrb[0].mxu0
        %2691 = vmatprep.mubr.bf16.mxu0 0
        %2692 = vmatmul.mubr.bf16.gmra.mrb[0].mxu0 %v384
        %v2693 = vpop.f32.mrb[0].mxu0
        %v2694 = vadd.f32 0.0, %v2693
        %v2695 = vpop.f32.mrb[0].mxu0
        %v2696 = vpop.f32.mrb[0].mxu0
        %v2697 = vpop.f32.mrb[0].mxu0
        %2698 = vmatprep.mubr.bf16.mxu0 0
        %2699 = vmatmul.mubr.bf16.gmra.mrb[0].mxu0 %v387
        %v2700 = vpop.f32.mrb[0].mxu0
        %v2701 = vadd.f32 0.0, %v2700
        %v2702 = vpop.f32.mrb[0].mxu0
        %v2703 = vpop.f32.mrb[0].mxu0
        %v2704 = vadd.f32 0.0, %v2703
        %v2705 = vpop.f32.mrb[0].mxu0
        %2706 = vmatprep.mubr.bf16.mxu0 0
        %2707 = vmatmul.mubr.bf16.gmra.mrb[0].mxu0 %v390
        %v2708 = vpop.f32.mrb[0].mxu0
        %v2709 = vadd.f32 0.0, %v2708
        %v2710 = vpop.f32.mrb[0].mxu0
        %v2711 = vpop.f32.mrb[0].mxu0
        %v2712 = vpop.f32.mrb[0].mxu0
        %2713 = vmatprep.mubr.bf16.mxu0 0
        %2714 = vmatmul.mubr.bf16.gmra.mrb[0].mxu0 %v393
        %v2715 = vpop.f32.mrb[0].mxu0
        %v2716 = vadd.f32 0.0, %v2715
        %v2717 = vpop.f32.mrb[0].mxu0
        %v2718 = vpop.f32.mrb[0].mxu0
        %v2719 = vadd.f32 0.0, %v2718
        %v2720 = vpop.f32.mrb[0].mxu0
        %2721 = vmatprep.mubr.bf16.mxu0 0
        %2722 = vmatmul.mubr.bf16.gmra.mrb[0].mxu0 %v396
        %v2723 = vpop.f32.mrb[0].mxu0
        %v2724 = vadd.f32 0.0, %v2723
        %v2725 = vpop.f32.mrb[0].mxu0
        %v2726 = vpop.f32.mrb[0].mxu0
        %v2727 = vpop.f32.mrb[0].mxu0
        %2728 = vmatprep.mubr.bf16.mxu0 0
        %2729 = vmatmul.mubr.bf16.gmra.mrb[0].mxu0 %v399
        %v2730 = vpop.f32.mrb[0].mxu0
        %v2731 = vadd.f32 0.0, %v2730
        %v2732 = vpop.f32.mrb[0].mxu0
        %v2733 = vpop.f32.mrb[0].mxu0
        %v2734 = vadd.f32 0.0, %v2733
        %v2735 = vpop.f32.mrb[0].mxu0
        %2736 = vmatprep.mubr.bf16.mxu0 0
        %2737 = vmatmul.mubr.bf16.gmra.mrb[0].mxu0 %v402
        %v2738 = vpop.f32.mrb[0].mxu0
        %v2739 = vadd.f32 0.0, %v2738
        %v2740 = vpop.f32.mrb[0].mxu0
        %v2741 = vpop.f32.mrb[0].mxu0
        %v2742 = vpop.f32.mrb[0].mxu0
        %2743 = vmatprep.mubr.bf16.mxu0 0
        %2744 = vmatmul.mubr.bf16.gmra.mrb[0].mxu0 %v405
        %v2745 = vpop.f32.mrb[0].mxu0
        %v2746 = vadd.f32 0.0, %v2745
        %v2747 = vpop.f32.mrb[0].mxu0
        %v2748 = vpop.f32.mrb[0].mxu0
        %v2749 = vadd.f32 0.0, %v2748
        %v2750 = vpop.f32.mrb[0].mxu0
        %2751 = vmatprep.mubr.bf16.mxu0 0
        %2752 = vmatmul.mubr.bf16.gmra.mrb[0].mxu0 %v1554
        %v2753 = vpop.f32.mrb[0].mxu0
        %v2754 = vadd.f32 0.0, %v2753
        %v2755 = vpop.f32.mrb[0].mxu0
        %v2756 = vpop.f32.mrb[0].mxu0
        %v2757 = vpop.f32.mrb[0].mxu0
        %2758 = vmatprep.mubr.bf16.mxu0 0
        %2759 = vmatmul.mubr.bf16.gmra.mrb[0].mxu0 %v1557
        %v2760 = vpop.f32.mrb[0].mxu0
        %v2761 = vadd.f32 0.0, %v2760
        %v2762 = vpop.f32.mrb[0].mxu0
        %v2763 = vpop.f32.mrb[0].mxu0
        %v2764 = vadd.f32 0.0, %v2763
        %v2765 = vpop.f32.mrb[0].mxu0
        %2766 = vmatprep.mubr.bf16.mxu0 0
        %2767 = vmatmul.mubr.bf16.gmra.mrb[0].mxu0 %v2243
        %v2768 = vpop.f32.mrb[0].mxu0
        %v2769 = vadd.f32 0.0, %v2768
        %v2770 = vpop.f32.mrb[0].mxu0
        %v2771 = vpop.f32.mrb[0].mxu0
        %v2772 = vpop.f32.mrb[0].mxu0
        %2773 = vmatprep.mubr.bf16.mxu0 0
        %2774 = vmatmul.mubr.bf16.gmra.mrb[0].mxu0 %v2246
        %v2775 = vpop.f32.mrb[0].mxu0
        %v2776 = vpop.f32.mrb[0].mxu0
        %v2777 = vpop.f32.mrb[0].mxu0
        %v2778 = vpop.f32.mrb[0].mxu0
        %2779 = vdwg.mxu0
        %v2780 = vadd.f32 %v2091, %v2298
        %v2781 = vadd.f32 %v2092, %v2300
        %v2782 = vadd.f32 %v2093, %v2473
        %v2783 = vadd.f32 %v2094, %v2475
        %v2784 = vadd.f32 %v2095, %v2656
        %v2785 = vadd.f32 %v2096, %v2302
        %v2786 = vadd.f32 %v2097, %v2304
        %v2787 = vadd.f32 %v2098, %v2477
        %v2788 = vadd.f32 %v2099, %v2479
        %v2789 = vadd.f32 %v2100, %v2659
        %v2790 = vadd.f32 %v2101, %v2309
        %v2791 = vadd.f32 %v2102, %v2483
        %v2792 = vadd.f32 %v2103, %v2485
        %v2793 = vadd.f32 %v2104, %v2664
        %v2794 = vadd.f32 %v2105, %v2315
        %v2795 = vadd.f32 %v2106, %v2317
        %v2796 = vadd.f32 %v2107, %v2491
        %v2797 = vadd.f32 %v2108, %v2493
        %v2798 = vadd.f32 %v2109, %v2671
        %v2799 = vadd.f32 %v2110, %v2319
        %v2800 = vadd.f32 %v2111, %v2321
        %v2801 = vadd.f32 %v2112, %v2495
        %v2802 = vadd.f32 %v2113, %v2497
        %v2803 = vadd.f32 %v2114, %v2674
        %v2804 = vadd.f32 %v2115, %v2326
        %v2805 = vadd.f32 %v2116, %v2501
        %v2806 = vadd.f32 %v2117, %v2503
        %v2807 = vadd.f32 %v2118, %v2679
        %v2808 = vadd.f32 %v2119, %v2332
        %v2809 = vadd.f32 %v2120, %v2334
        %v2810 = vadd.f32 %v2121, %v2509
        %v2811 = vadd.f32 %v2122, %v2511
        %v2812 = vadd.f32 %v2123, %v2686
        %v2813 = vadd.f32 %v2124, %v2336
        %v2814 = vadd.f32 %v2125, %v2338
        %v2815 = vadd.f32 %v2126, %v2513
        %v2816 = vadd.f32 %v2127, %v2515
        %v2817 = vadd.f32 %v2128, %v2689
        %v2818 = vadd.f32 %v2129, %v2343
        %v2819 = vadd.f32 %v2130, %v2519
        %v2820 = vadd.f32 %v2131, %v2521
        %v2821 = vadd.f32 %v2132, %v2694
        %v2822 = vadd.f32 %v2133, %v2349
        %v2823 = vadd.f32 %v2134, %v2351
        %v2824 = vadd.f32 %v2135, %v2527
        %v2825 = vadd.f32 %v2136, %v2529
        %v2826 = vadd.f32 %v2137, %v2701
        %v2827 = vadd.f32 %v2138, %v2353
        %v2828 = vadd.f32 %v2139, %v2355
        %v2829 = vadd.f32 %v2140, %v2531
        %v2830 = vadd.f32 %v2141, %v2533
        %v2831 = vadd.f32 %v2142, %v2704
        %v2832 = vadd.f32 %v2143, %v2360
        %v2833 = vadd.f32 %v2144, %v2537
        %v2834 = vadd.f32 %v2145, %v2539
        %v2835 = vadd.f32 %v2146, %v2709
        %v2836 = vadd.f32 %v2147, %v2366
        %v2837 = vadd.f32 %v2148, %v2368
        %v2838 = vadd.f32 %v2149, %v2545
        %v2839 = vadd.f32 %v2150, %v2547
        %v2840 = vadd.f32 %v2151, %v2716
        %v2841 = vadd.f32 %v2152, %v2370
        %v2842 = vadd.f32 %v2153, %v2372
        %v2843 = vadd.f32 %v2154, %v2549
        %v2844 = vadd.f32 %v2155, %v2551
        %v2845 = vadd.f32 %v2156, %v2719
        %v2846 = vadd.f32 %v2157, %v2377
        %v2847 = vadd.f32 %v2158, %v2555
        %v2848 = vadd.f32 %v2159, %v2557
        %v2849 = vadd.f32 %v2160, %v2724
        %v2850 = vadd.f32 %v2161, %v2383
        %v2851 = vadd.f32 %v2162, %v2385
        %v2852 = vadd.f32 %v2163, %v2563
        %v2853 = vadd.f32 %v2164, %v2565
        %v2854 = vadd.f32 %v2165, %v2731
        %v2855 = vadd.f32 %v2166, %v2387
        %v2856 = vadd.f32 %v2167, %v2389
        %v2857 = vadd.f32 %v2168, %v2567
        %v2858 = vadd.f32 %v2169, %v2569
        %v2859 = vadd.f32 %v2170, %v2734
        %v2860 = vadd.f32 %v2171, %v2394
        %v2861 = vadd.f32 %v2172, %v2573
        %v2862 = vadd.f32 %v2173, %v2575
        %v2863 = vadd.f32 %v2174, %v2739
        %v2864 = vadd.f32 %v2175, %v2400
        %v2865 = vadd.f32 %v2176, %v2402
        %v2866 = vadd.f32 %v2177, %v2581
        %v2867 = vadd.f32 %v2178, %v2583
        %v2868 = vadd.f32 %v2179, %v2746
        %v2869 = vadd.f32 %v2180, %v2404
        %v2870 = vadd.f32 %v2181, %v2406
        %v2871 = vadd.f32 %v2182, %v2585
        %v2872 = vadd.f32 %v2183, %v2587
        %v2873 = vadd.f32 %v2184, %v2749
        %v2874 = vadd.f32 %v2185, %v2411
        %v2875 = vadd.f32 %v2186, %v2591
        %v2876 = vadd.f32 %v2187, %v2593
        %v2877 = vadd.f32 %v2188, %v2754
        %v2878 = vadd.f32 %v2189, %v2417
        %v2879 = vadd.f32 %v2190, %v2419
        %v2880 = vadd.f32 %v2191, %v2599
        %v2881 = vadd.f32 %v2192, %v2601
        %v2882 = vadd.f32 %v2193, %v2761
        %v2883 = vadd.f32 %v2194, %v2421
        %v2884 = vadd.f32 %v2195, %v2423
        %v2885 = vadd.f32 %v2196, %v2603
        %v2886 = vadd.f32 %v2197, %v2605
        %v2887 = vadd.f32 %v2198, %v2764
        %v2888 = vadd.f32 %v2199, %v2428
        %v2889 = vadd.f32 %v2200, %v2609
        %v2890 = vadd.f32 %v2201, %v2611
        %v2891 = vadd.f32 %v2202, %v2769
        %s2892 = scalar_lea.vmem %s1, 40
        %v2893 = vld [vmem:[%s2892] sm:$0xff]
        %v2894 = vld [vmem:[%s2892 + $0x8] sm:$0x3]
        %v2899 = vunpack.c.l.b16 %v235
        %v2900 = vunpack.c.l.b16 %v236
        %v2901 = vunpack.c.l.b16 %v237
        %v2902 = vunpack.c.l.b16 %v238
        %v2903 = vpack.c.b16 %v2900, %v2899
        %v2904 = vpack.c.b16 %v2902, %v2901
        %v2907 = vcombine.high %v2893, %v2893
        %v2909 = vunpack.c.l.s4 1983009808
        %v2910 = vunpack.c.0.s8 %v2909
        %v2911 = vlaneseq
        %v2912 = vshrl.u32 %v2911, 7
        %v2913 = vsub.s32 %v2910, %v2912
        %v2914 = vrot.slane %v2893, %v2913
        %v2916 = vunpack.c.l.s4 1983009808
        %v2917 = vunpack.c.0.s8 %v2916
        %v2918 = vlaneseq
        %v2919 = vshrl.u32 %v2918, 7
        %v2920 = vsub.s32 %v2917, %v2919
        %v2921 = vrot.slane %v2907, %v2920
        %v2922 = vcombine.high %v2914, %v2914
        %v2923 = vcombine.high %v2921, %v2921
        %v2925 = vunpack.c.l.s4 1983009808
        %v2926 = vunpack.c.0.s8 %v2925
        %v2927 = vlaneseq
        %v2928 = vshrl.u32 %v2927, 7
        %v2929 = vsub.s32 %v2926, %v2928
        %v2930 = vrot.slane %v2894, %v2929
        %v2932 = vsel %vm355, %v2903, 0
        %v2935 = vsel %vm355, %v2904, 0
        %v2938 = vsel %vm407, %v2914, 0
        %v2941 = vsel %vm407, %v2922, 0
        %v2944 = vsel %vm407, %v2921, 0
        %v2947 = vsel %vm407, %v2923, 0
        %v2950 = vsel %vm407, %v2930, 0
        %2952 = vmatprep.subr.bf16.mxu0 %v2941
        %2953 = vmatpush1.bf16.msra.mxu0 %v2938
        %2954 = vmatprep.subr.bf16.mxu0 0
        %2955 = vmatpush1.bf16.msra.mxu0 0
        %2956 = vmatprep.subr.bf16.mxu0 0
        %2957 = vmatpush1.bf16.msra.mxu0 0
        %2958 = vmatprep.subr.bf16.mxu0 0
        %2959 = vmatpush1.bf16.msra.mxu0 0
        %2960 = vmatprep.subr.bf16.mxu0 0
        %2961 = vmatpush1.bf16.msra.mxu0 0
        %2962 = vmatprep.subr.bf16.mxu0 0
        %2963 = vmatpush1.bf16.msra.mxu0 0
        %2964 = vmatprep.subr.bf16.mxu0 0
        %2965 = vmatpush1.bf16.msra.mxu0 0
        %2966 = vmatprep.subr.bf16.mxu0 0
        %2967 = vmatpush1.bf16.msra.mxu0 0
        %2968 = vmatprep.subr.bf16.mxu0 0
        %2969 = vmatpush1.bf16.msra.mxu0 0
        %2970 = vmatprep.subr.bf16.mxu0 0
        %2971 = vmatpush1.bf16.msra.mxu0 0
        %2972 = vmatprep.subr.bf16.mxu0 0
        %2973 = vmatpush1.bf16.msra.mxu0 0
        %2974 = vmatprep.subr.bf16.mxu0 0
        %2975 = vmatpush1.bf16.msra.mxu0 0
        %2976 = vmatprep.subr.bf16.mxu0 0
        %2977 = vmatpush1.bf16.msra.mxu0 0
        %2978 = vmatprep.subr.bf16.mxu0 0
        %2979 = vmatpush1.bf16.msra.mxu0 0
        %2980 = vmatprep.subr.bf16.mxu0 0
        %2981 = vmatpush1.bf16.msra.mxu0 0
        %2982 = vmatprep.subr.bf16.mxu0 0
        %2983 = vmatpush1.bf16.msra.mxu0 0
        %2984 = vmatprep.mubr.bf16.mxu0 0
        %2985 = vmatmul.mubr.bf16.gmra.mrb[0].mxu0 %v375
        %v2986 = vpop.f32.mrb[0].mxu0
        %v2987 = vadd.f32 0.0, %v2986
        %v2988 = vpop.f32.mrb[0].mxu0
        %v2989 = vadd.f32 0.0, %v2988
        %v2990 = vpop.f32.mrb[0].mxu0
        %v2991 = vadd.f32 0.0, %v2990
        %v2992 = vpop.f32.mrb[0].mxu0
        %v2993 = vadd.f32 0.0, %v2992
        %2994 = vmatprep.mubr.bf16.mxu0 0
        %2995 = vmatmul.mubr.bf16.gmra.mrb[0].mxu0 %v378
        %v2996 = vpop.f32.mrb[0].mxu0
        %v2997 = vpop.f32.mrb[0].mxu0
        %v2998 = vadd.f32 0.0, %v2997
        %v2999 = vpop.f32.mrb[0].mxu0
        %v3000 = vpop.f32.mrb[0].mxu0
        %3001 = vmatprep.mubr.bf16.mxu0 0
        %3002 = vmatmul.mubr.bf16.gmra.mrb[0].mxu0 %v381
        %v3003 = vpop.f32.mrb[0].mxu0
        %v3004 = vadd.f32 0.0, %v3003
        %v3005 = vpop.f32.mrb[0].mxu0
        %v3006 = vadd.f32 0.0, %v3005
        %v3007 = vpop.f32.mrb[0].mxu0
        %v3008 = vadd.f32 0.0, %v3007
        %v3009 = vpop.f32.mrb[0].mxu0
        %v3010 = vadd.f32 0.0, %v3009
        %3011 = vmatprep.mubr.bf16.mxu0 0
        %3012 = vmatmul.mubr.bf16.gmra.mrb[0].mxu0 %v384
        %v3013 = vpop.f32.mrb[0].mxu0
        %v3014 = vpop.f32.mrb[0].mxu0
        %v3015 = vadd.f32 0.0, %v3014
        %v3016 = vpop.f32.mrb[0].mxu0
        %v3017 = vpop.f32.mrb[0].mxu0
        %3018 = vmatprep.mubr.bf16.mxu0 0
        %3019 = vmatmul.mubr.bf16.gmra.mrb[0].mxu0 %v387
        %v3020 = vpop.f32.mrb[0].mxu0
        %v3021 = vadd.f32 0.0, %v3020
        %v3022 = vpop.f32.mrb[0].mxu0
        %v3023 = vadd.f32 0.0, %v3022
        %v3024 = vpop.f32.mrb[0].mxu0
        %v3025 = vadd.f32 0.0, %v3024
        %v3026 = vpop.f32.mrb[0].mxu0
        %v3027 = vadd.f32 0.0, %v3026
        %3028 = vmatprep.mubr.bf16.mxu0 0
        %3029 = vmatmul.mubr.bf16.gmra.mrb[0].mxu0 %v390
        %v3030 = vpop.f32.mrb[0].mxu0
        %v3031 = vpop.f32.mrb[0].mxu0
        %v3032 = vadd.f32 0.0, %v3031
        %v3033 = vpop.f32.mrb[0].mxu0
        %v3034 = vpop.f32.mrb[0].mxu0
        %3035 = vmatprep.mubr.bf16.mxu0 0
        %3036 = vmatmul.mubr.bf16.gmra.mrb[0].mxu0 %v393
        %v3037 = vpop.f32.mrb[0].mxu0
        %v3038 = vadd.f32 0.0, %v3037
        %v3039 = vpop.f32.mrb[0].mxu0
        %v3040 = vadd.f32 0.0, %v3039
        %v3041 = vpop.f32.mrb[0].mxu0
        %v3042 = vadd.f32 0.0, %v3041
        %v3043 = vpop.f32.mrb[0].mxu0
        %v3044 = vadd.f32 0.0, %v3043
        %3045 = vmatprep.mubr.bf16.mxu0 0
        %3046 = vmatmul.mubr.bf16.gmra.mrb[0].mxu0 %v396
        %v3047 = vpop.f32.mrb[0].mxu0
        %v3048 = vpop.f32.mrb[0].mxu0
        %v3049 = vadd.f32 0.0, %v3048
        %v3050 = vpop.f32.mrb[0].mxu0
        %v3051 = vpop.f32.mrb[0].mxu0
        %3052 = vmatprep.mubr.bf16.mxu0 0
        %3053 = vmatmul.mubr.bf16.gmra.mrb[0].mxu0 %v399
        %v3054 = vpop.f32.mrb[0].mxu0
        %v3055 = vadd.f32 0.0, %v3054
        %v3056 = vpop.f32.mrb[0].mxu0
        %v3057 = vadd.f32 0.0, %v3056
        %v3058 = vpop.f32.mrb[0].mxu0
        %v3059 = vadd.f32 0.0, %v3058
        %v3060 = vpop.f32.mrb[0].mxu0
        %v3061 = vadd.f32 0.0, %v3060
        %3062 = vmatprep.mubr.bf16.mxu0 0
        %3063 = vmatmul.mubr.bf16.gmra.mrb[0].mxu0 %v402
        %v3064 = vpop.f32.mrb[0].mxu0
        %v3065 = vpop.f32.mrb[0].mxu0
        %v3066 = vadd.f32 0.0, %v3065
        %v3067 = vpop.f32.mrb[0].mxu0
        %v3068 = vpop.f32.mrb[0].mxu0
        %3069 = vmatprep.mubr.bf16.mxu0 0
        %3070 = vmatmul.mubr.bf16.gmra.mrb[0].mxu0 %v405
        %v3071 = vpop.f32.mrb[0].mxu0
        %v3072 = vadd.f32 0.0, %v3071
        %v3073 = vpop.f32.mrb[0].mxu0
        %v3074 = vadd.f32 0.0, %v3073
        %v3075 = vpop.f32.mrb[0].mxu0
        %v3076 = vadd.f32 0.0, %v3075
        %v3077 = vpop.f32.mrb[0].mxu0
        %v3078 = vadd.f32 0.0, %v3077
        %3079 = vmatprep.mubr.bf16.mxu0 0
        %3080 = vmatmul.mubr.bf16.gmra.mrb[0].mxu0 %v1554
        %v3081 = vpop.f32.mrb[0].mxu0
        %v3082 = vpop.f32.mrb[0].mxu0
        %v3083 = vadd.f32 0.0, %v3082
        %v3084 = vpop.f32.mrb[0].mxu0
        %v3085 = vpop.f32.mrb[0].mxu0
        %3086 = vmatprep.mubr.bf16.mxu0 0
        %3087 = vmatmul.mubr.bf16.gmra.mrb[0].mxu0 %v1557
        %v3088 = vpop.f32.mrb[0].mxu0
        %v3089 = vadd.f32 0.0, %v3088
        %v3090 = vpop.f32.mrb[0].mxu0
        %v3091 = vadd.f32 0.0, %v3090
        %v3092 = vpop.f32.mrb[0].mxu0
        %v3093 = vadd.f32 0.0, %v3092
        %v3094 = vpop.f32.mrb[0].mxu0
        %v3095 = vadd.f32 0.0, %v3094
        %3096 = vmatprep.mubr.bf16.mxu0 0
        %3097 = vmatmul.mubr.bf16.gmra.mrb[0].mxu0 %v2243
        %v3098 = vpop.f32.mrb[0].mxu0
        %v3099 = vpop.f32.mrb[0].mxu0
        %v3100 = vadd.f32 0.0, %v3099
        %v3101 = vpop.f32.mrb[0].mxu0
        %v3102 = vpop.f32.mrb[0].mxu0
        %3103 = vmatprep.mubr.bf16.mxu0 0
        %3104 = vmatmul.mubr.bf16.gmra.mrb[0].mxu0 %v2246
        %v3105 = vpop.f32.mrb[0].mxu0
        %v3106 = vadd.f32 0.0, %v3105
        %v3107 = vpop.f32.mrb[0].mxu0
        %v3108 = vadd.f32 0.0, %v3107
        %v3109 = vpop.f32.mrb[0].mxu0
        %v3110 = vadd.f32 0.0, %v3109
        %v3111 = vpop.f32.mrb[0].mxu0
        %v3112 = vadd.f32 0.0, %v3111
        %3113 = vmatprep.mubr.bf16.mxu0 0
        %3114 = vmatmul.mubr.bf16.gmra.mrb[0].mxu0 %v2932
        %v3115 = vpop.f32.mrb[0].mxu0
        %v3116 = vpop.f32.mrb[0].mxu0
        %v3117 = vadd.f32 0.0, %v3116
        %v3118 = vpop.f32.mrb[0].mxu0
        %v3119 = vpop.f32.mrb[0].mxu0
        %3120 = vmatprep.mubr.bf16.mxu0 0
        %3121 = vmatmul.mubr.bf16.gmra.mrb[0].mxu0 %v2935
        %v3122 = vpop.f32.mrb[0].mxu0
        %v3123 = vpop.f32.mrb[0].mxu0
        %v3124 = vpop.f32.mrb[0].mxu0
        %v3125 = vpop.f32.mrb[0].mxu0
        %3126 = vdwg.mxu0
        %3127 = vmatprep.subr.bf16.mxu0 %v2947
        %3128 = vmatpush1.bf16.msra.mxu0 %v2944
        %3129 = vmatprep.subr.bf16.mxu0 0
        %3130 = vmatpush1.bf16.msra.mxu0 0
        %3131 = vmatprep.subr.bf16.mxu0 0
        %3132 = vmatpush1.bf16.msra.mxu0 0
        %3133 = vmatprep.subr.bf16.mxu0 0
        %3134 = vmatpush1.bf16.msra.mxu0 0
        %3135 = vmatprep.subr.bf16.mxu0 0
        %3136 = vmatpush1.bf16.msra.mxu0 0
        %3137 = vmatprep.subr.bf16.mxu0 0
        %3138 = vmatpush1.bf16.msra.mxu0 0
        %3139 = vmatprep.subr.bf16.mxu0 0
        %3140 = vmatpush1.bf16.msra.mxu0 0
        %3141 = vmatprep.subr.bf16.mxu0 0
        %3142 = vmatpush1.bf16.msra.mxu0 0
        %3143 = vmatprep.subr.bf16.mxu0 0
        %3144 = vmatpush1.bf16.msra.mxu0 0
        %3145 = vmatprep.subr.bf16.mxu0 0
        %3146 = vmatpush1.bf16.msra.mxu0 0
        %3147 = vmatprep.subr.bf16.mxu0 0
        %3148 = vmatpush1.bf16.msra.mxu0 0
        %3149 = vmatprep.subr.bf16.mxu0 0
        %3150 = vmatpush1.bf16.msra.mxu0 0
        %3151 = vmatprep.subr.bf16.mxu0 0
        %3152 = vmatpush1.bf16.msra.mxu0 0
        %3153 = vmatprep.subr.bf16.mxu0 0
        %3154 = vmatpush1.bf16.msra.mxu0 0
        %3155 = vmatprep.subr.bf16.mxu0 0
        %3156 = vmatpush1.bf16.msra.mxu0 0
        %3157 = vmatprep.subr.bf16.mxu0 0
        %3158 = vmatpush1.bf16.msra.mxu0 0
        %3159 = vmatprep.mubr.bf16.mxu0 0
        %3160 = vmatmul.mubr.bf16.gmra.mrb[0].mxu0 %v375
        %v3161 = vpop.f32.mrb[0].mxu0
        %v3162 = vadd.f32 0.0, %v3161
        %v3163 = vpop.f32.mrb[0].mxu0
        %v3164 = vadd.f32 0.0, %v3163
        %v3165 = vpop.f32.mrb[0].mxu0
        %v3166 = vadd.f32 0.0, %v3165
        %v3167 = vpop.f32.mrb[0].mxu0
        %v3168 = vadd.f32 0.0, %v3167
        %3169 = vmatprep.mubr.bf16.mxu0 0
        %3170 = vmatmul.mubr.bf16.gmra.mrb[0].mxu0 %v378
        %v3171 = vpop.f32.mrb[0].mxu0
        %v3172 = vadd.f32 0.0, %v3171
        %v3173 = vpop.f32.mrb[0].mxu0
        %v3174 = vadd.f32 0.0, %v3173
        %v3175 = vpop.f32.mrb[0].mxu0
        %v3176 = vpop.f32.mrb[0].mxu0
        %3177 = vmatprep.mubr.bf16.mxu0 0
        %3178 = vmatmul.mubr.bf16.gmra.mrb[0].mxu0 %v381
        %v3179 = vpop.f32.mrb[0].mxu0
        %v3180 = vadd.f32 0.0, %v3179
        %v3181 = vpop.f32.mrb[0].mxu0
        %v3182 = vadd.f32 0.0, %v3181
        %v3183 = vpop.f32.mrb[0].mxu0
        %v3184 = vadd.f32 0.0, %v3183
        %v3185 = vpop.f32.mrb[0].mxu0
        %v3186 = vadd.f32 0.0, %v3185
        %3187 = vmatprep.mubr.bf16.mxu0 0
        %3188 = vmatmul.mubr.bf16.gmra.mrb[0].mxu0 %v384
        %v3189 = vpop.f32.mrb[0].mxu0
        %v3190 = vadd.f32 0.0, %v3189
        %v3191 = vpop.f32.mrb[0].mxu0
        %v3192 = vadd.f32 0.0, %v3191
        %v3193 = vpop.f32.mrb[0].mxu0
        %v3194 = vpop.f32.mrb[0].mxu0
        %3195 = vmatprep.mubr.bf16.mxu0 0
        %3196 = vmatmul.mubr.bf16.gmra.mrb[0].mxu0 %v387
        %v3197 = vpop.f32.mrb[0].mxu0
        %v3198 = vadd.f32 0.0, %v3197
        %v3199 = vpop.f32.mrb[0].mxu0
        %v3200 = vadd.f32 0.0, %v3199
        %v3201 = vpop.f32.mrb[0].mxu0
        %v3202 = vadd.f32 0.0, %v3201
        %v3203 = vpop.f32.mrb[0].mxu0
        %v3204 = vadd.f32 0.0, %v3203
        %3205 = vmatprep.mubr.bf16.mxu0 0
        %3206 = vmatmul.mubr.bf16.gmra.mrb[0].mxu0 %v390
        %v3207 = vpop.f32.mrb[0].mxu0
        %v3208 = vadd.f32 0.0, %v3207
        %v3209 = vpop.f32.mrb[0].mxu0
        %v3210 = vadd.f32 0.0, %v3209
        %v3211 = vpop.f32.mrb[0].mxu0
        %v3212 = vpop.f32.mrb[0].mxu0
        %3213 = vmatprep.mubr.bf16.mxu0 0
        %3214 = vmatmul.mubr.bf16.gmra.mrb[0].mxu0 %v393
        %v3215 = vpop.f32.mrb[0].mxu0
        %v3216 = vadd.f32 0.0, %v3215
        %v3217 = vpop.f32.mrb[0].mxu0
        %v3218 = vadd.f32 0.0, %v3217
        %v3219 = vpop.f32.mrb[0].mxu0
        %v3220 = vadd.f32 0.0, %v3219
        %v3221 = vpop.f32.mrb[0].mxu0
        %v3222 = vadd.f32 0.0, %v3221
        %3223 = vmatprep.mubr.bf16.mxu0 0
        %3224 = vmatmul.mubr.bf16.gmra.mrb[0].mxu0 %v396
        %v3225 = vpop.f32.mrb[0].mxu0
        %v3226 = vadd.f32 0.0, %v3225
        %v3227 = vpop.f32.mrb[0].mxu0
        %v3228 = vadd.f32 0.0, %v3227
        %v3229 = vpop.f32.mrb[0].mxu0
        %v3230 = vpop.f32.mrb[0].mxu0
        %3231 = vmatprep.mubr.bf16.mxu0 0
        %3232 = vmatmul.mubr.bf16.gmra.mrb[0].mxu0 %v399
        %v3233 = vpop.f32.mrb[0].mxu0
        %v3234 = vadd.f32 0.0, %v3233
        %v3235 = vpop.f32.mrb[0].mxu0
        %v3236 = vadd.f32 0.0, %v3235
        %v3237 = vpop.f32.mrb[0].mxu0
        %v3238 = vadd.f32 0.0, %v3237
        %v3239 = vpop.f32.mrb[0].mxu0
        %v3240 = vadd.f32 0.0, %v3239
        %3241 = vmatprep.mubr.bf16.mxu0 0
        %3242 = vmatmul.mubr.bf16.gmra.mrb[0].mxu0 %v402
        %v3243 = vpop.f32.mrb[0].mxu0
        %v3244 = vadd.f32 0.0, %v3243
        %v3245 = vpop.f32.mrb[0].mxu0
        %v3246 = vadd.f32 0.0, %v3245
        %v3247 = vpop.f32.mrb[0].mxu0
        %v3248 = vpop.f32.mrb[0].mxu0
        %3249 = vmatprep.mubr.bf16.mxu0 0
        %3250 = vmatmul.mubr.bf16.gmra.mrb[0].mxu0 %v405
        %v3251 = vpop.f32.mrb[0].mxu0
        %v3252 = vadd.f32 0.0, %v3251
        %v3253 = vpop.f32.mrb[0].mxu0
        %v3254 = vadd.f32 0.0, %v3253
        %v3255 = vpop.f32.mrb[0].mxu0
        %v3256 = vadd.f32 0.0, %v3255
        %v3257 = vpop.f32.mrb[0].mxu0
        %v3258 = vadd.f32 0.0, %v3257
        %3259 = vmatprep.mubr.bf16.mxu0 0
        %3260 = vmatmul.mubr.bf16.gmra.mrb[0].mxu0 %v1554
        %v3261 = vpop.f32.mrb[0].mxu0
        %v3262 = vadd.f32 0.0, %v3261
        %v3263 = vpop.f32.mrb[0].mxu0
        %v3264 = vadd.f32 0.0, %v3263
        %v3265 = vpop.f32.mrb[0].mxu0
        %v3266 = vpop.f32.mrb[0].mxu0
        %3267 = vmatprep.mubr.bf16.mxu0 0
        %3268 = vmatmul.mubr.bf16.gmra.mrb[0].mxu0 %v1557
        %v3269 = vpop.f32.mrb[0].mxu0
        %v3270 = vadd.f32 0.0, %v3269
        %v3271 = vpop.f32.mrb[0].mxu0
        %v3272 = vadd.f32 0.0, %v3271
        %v3273 = vpop.f32.mrb[0].mxu0
        %v3274 = vadd.f32 0.0, %v3273
        %v3275 = vpop.f32.mrb[0].mxu0
        %v3276 = vadd.f32 0.0, %v3275
        %3277 = vmatprep.mubr.bf16.mxu0 0
        %3278 = vmatmul.mubr.bf16.gmra.mrb[0].mxu0 %v2243
        %v3279 = vpop.f32.mrb[0].mxu0
        %v3280 = vadd.f32 0.0, %v3279
        %v3281 = vpop.f32.mrb[0].mxu0
        %v3282 = vadd.f32 0.0, %v3281
        %v3283 = vpop.f32.mrb[0].mxu0
        %v3284 = vpop.f32.mrb[0].mxu0
        %3285 = vmatprep.mubr.bf16.mxu0 0
        %3286 = vmatmul.mubr.bf16.gmra.mrb[0].mxu0 %v2246
        %v3287 = vpop.f32.mrb[0].mxu0
        %v3288 = vadd.f32 0.0, %v3287
        %v3289 = vpop.f32.mrb[0].mxu0
        %v3290 = vadd.f32 0.0, %v3289
        %v3291 = vpop.f32.mrb[0].mxu0
        %v3292 = vadd.f32 0.0, %v3291
        %v3293 = vpop.f32.mrb[0].mxu0
        %v3294 = vadd.f32 0.0, %v3293
        %3295 = vmatprep.mubr.bf16.mxu0 0
        %3296 = vmatmul.mubr.bf16.gmra.mrb[0].mxu0 %v2932
        %v3297 = vpop.f32.mrb[0].mxu0
        %v3298 = vadd.f32 0.0, %v3297
        %v3299 = vpop.f32.mrb[0].mxu0
        %v3300 = vadd.f32 0.0, %v3299
        %v3301 = vpop.f32.mrb[0].mxu0
        %v3302 = vpop.f32.mrb[0].mxu0
        %3303 = vmatprep.mubr.bf16.mxu0 0
        %3304 = vmatmul.mubr.bf16.gmra.mrb[0].mxu0 %v2935
        %v3305 = vpop.f32.mrb[0].mxu0
        %v3306 = vpop.f32.mrb[0].mxu0
        %v3307 = vpop.f32.mrb[0].mxu0
        %v3308 = vpop.f32.mrb[0].mxu0
        %3309 = vdwg.mxu0
        %3310 = vmatprep.subr.bf16.mxu0 0
        %3311 = vmatpush1.bf16.msra.mxu0 %v2950
        %3312 = vmatprep.subr.bf16.mxu0 0
        %3313 = vmatpush1.bf16.msra.mxu0 0
        %3314 = vmatprep.subr.bf16.mxu0 0
        %3315 = vmatpush1.bf16.msra.mxu0 0
        %3316 = vmatprep.subr.bf16.mxu0 0
        %3317 = vmatpush1.bf16.msra.mxu0 0
        %3318 = vmatprep.subr.bf16.mxu0 0
        %3319 = vmatpush1.bf16.msra.mxu0 0
        %3320 = vmatprep.subr.bf16.mxu0 0
        %3321 = vmatpush1.bf16.msra.mxu0 0
        %3322 = vmatprep.subr.bf16.mxu0 0
        %3323 = vmatpush1.bf16.msra.mxu0 0
        %3324 = vmatprep.subr.bf16.mxu0 0
        %3325 = vmatpush1.bf16.msra.mxu0 0
        %3326 = vmatprep.subr.bf16.mxu0 0
        %3327 = vmatpush1.bf16.msra.mxu0 0
        %3328 = vmatprep.subr.bf16.mxu0 0
        %3329 = vmatpush1.bf16.msra.mxu0 0
        %3330 = vmatprep.subr.bf16.mxu0 0
        %3331 = vmatpush1.bf16.msra.mxu0 0
        %3332 = vmatprep.subr.bf16.mxu0 0
        %3333 = vmatpush1.bf16.msra.mxu0 0
        %3334 = vmatprep.subr.bf16.mxu0 0
        %3335 = vmatpush1.bf16.msra.mxu0 0
        %3336 = vmatprep.subr.bf16.mxu0 0
        %3337 = vmatpush1.bf16.msra.mxu0 0
        %3338 = vmatprep.subr.bf16.mxu0 0
        %3339 = vmatpush1.bf16.msra.mxu0 0
        %3340 = vmatprep.subr.bf16.mxu0 0
        %3341 = vmatpush1.bf16.msra.mxu0 0
        %3342 = vmatprep.mubr.bf16.mxu0 0
        %3343 = vmatmul.mubr.bf16.gmra.mrb[0].mxu0 %v375
        %v3344 = vpop.f32.mrb[0].mxu0
        %v3345 = vadd.f32 0.0, %v3344
        %v3346 = vpop.f32.mrb[0].mxu0
        %v3347 = vpop.f32.mrb[0].mxu0
        %v3348 = vadd.f32 0.0, %v3347
        %v3349 = vpop.f32.mrb[0].mxu0
        %3350 = vmatprep.mubr.bf16.mxu0 0
        %3351 = vmatmul.mubr.bf16.gmra.mrb[0].mxu0 %v378
        %v3352 = vpop.f32.mrb[0].mxu0
        %v3353 = vadd.f32 0.0, %v3352
        %v3354 = vpop.f32.mrb[0].mxu0
        %v3355 = vpop.f32.mrb[0].mxu0
        %v3356 = vpop.f32.mrb[0].mxu0
        %3357 = vmatprep.mubr.bf16.mxu0 0
        %3358 = vmatmul.mubr.bf16.gmra.mrb[0].mxu0 %v381
        %v3359 = vpop.f32.mrb[0].mxu0
        %v3360 = vadd.f32 0.0, %v3359
        %v3361 = vpop.f32.mrb[0].mxu0
        %v3362 = vpop.f32.mrb[0].mxu0
        %v3363 = vadd.f32 0.0, %v3362
        %v3364 = vpop.f32.mrb[0].mxu0
        %3365 = vmatprep.mubr.bf16.mxu0 0
        %3366 = vmatmul.mubr.bf16.gmra.mrb[0].mxu0 %v384
        %v3367 = vpop.f32.mrb[0].mxu0
        %v3368 = vadd.f32 0.0, %v3367
        %v3369 = vpop.f32.mrb[0].mxu0
        %v3370 = vpop.f32.mrb[0].mxu0
        %v3371 = vpop.f32.mrb[0].mxu0
        %3372 = vmatprep.mubr.bf16.mxu0 0
        %3373 = vmatmul.mubr.bf16.gmra.mrb[0].mxu0 %v387
        %v3374 = vpop.f32.mrb[0].mxu0
        %v3375 = vadd.f32 0.0, %v3374
        %v3376 = vpop.f32.mrb[0].mxu0
        %v3377 = vpop.f32.mrb[0].mxu0
        %v3378 = vadd.f32 0.0, %v3377
        %v3379 = vpop.f32.mrb[0].mxu0
        %3380 = vmatprep.mubr.bf16.mxu0 0
        %3381 = vmatmul.mubr.bf16.gmra.mrb[0].mxu0 %v390
        %v3382 = vpop.f32.mrb[0].mxu0
        %v3383 = vadd.f32 0.0, %v3382
        %v3384 = vpop.f32.mrb[0].mxu0
        %v3385 = vpop.f32.mrb[0].mxu0
        %v3386 = vpop.f32.mrb[0].mxu0
        %3387 = vmatprep.mubr.bf16.mxu0 0
        %3388 = vmatmul.mubr.bf16.gmra.mrb[0].mxu0 %v393
        %v3389 = vpop.f32.mrb[0].mxu0
        %v3390 = vadd.f32 0.0, %v3389
        %v3391 = vpop.f32.mrb[0].mxu0
        %v3392 = vpop.f32.mrb[0].mxu0
        %v3393 = vadd.f32 0.0, %v3392
        %v3394 = vpop.f32.mrb[0].mxu0
        %3395 = vmatprep.mubr.bf16.mxu0 0
        %3396 = vmatmul.mubr.bf16.gmra.mrb[0].mxu0 %v396
        %v3397 = vpop.f32.mrb[0].mxu0
        %v3398 = vadd.f32 0.0, %v3397
        %v3399 = vpop.f32.mrb[0].mxu0
        %v3400 = vpop.f32.mrb[0].mxu0
        %v3401 = vpop.f32.mrb[0].mxu0
        %3402 = vmatprep.mubr.bf16.mxu0 0
        %3403 = vmatmul.mubr.bf16.gmra.mrb[0].mxu0 %v399
        %v3404 = vpop.f32.mrb[0].mxu0
        %v3405 = vadd.f32 0.0, %v3404
        %v3406 = vpop.f32.mrb[0].mxu0
        %v3407 = vpop.f32.mrb[0].mxu0
        %v3408 = vadd.f32 0.0, %v3407
        %v3409 = vpop.f32.mrb[0].mxu0
        %3410 = vmatprep.mubr.bf16.mxu0 0
        %3411 = vmatmul.mubr.bf16.gmra.mrb[0].mxu0 %v402
        %v3412 = vpop.f32.mrb[0].mxu0
        %v3413 = vadd.f32 0.0, %v3412
        %v3414 = vpop.f32.mrb[0].mxu0
        %v3415 = vpop.f32.mrb[0].mxu0
        %v3416 = vpop.f32.mrb[0].mxu0
        %3417 = vmatprep.mubr.bf16.mxu0 0
        %3418 = vmatmul.mubr.bf16.gmra.mrb[0].mxu0 %v405
        %v3419 = vpop.f32.mrb[0].mxu0
        %v3420 = vadd.f32 0.0, %v3419
        %v3421 = vpop.f32.mrb[0].mxu0
        %v3422 = vpop.f32.mrb[0].mxu0
        %v3423 = vadd.f32 0.0, %v3422
        %v3424 = vpop.f32.mrb[0].mxu0
        %3425 = vmatprep.mubr.bf16.mxu0 0
        %3426 = vmatmul.mubr.bf16.gmra.mrb[0].mxu0 %v1554
        %v3427 = vpop.f32.mrb[0].mxu0
        %v3428 = vadd.f32 0.0, %v3427
        %v3429 = vpop.f32.mrb[0].mxu0
        %v3430 = vpop.f32.mrb[0].mxu0
        %v3431 = vpop.f32.mrb[0].mxu0
        %3432 = vmatprep.mubr.bf16.mxu0 0
        %3433 = vmatmul.mubr.bf16.gmra.mrb[0].mxu0 %v1557
        %v3434 = vpop.f32.mrb[0].mxu0
        %v3435 = vadd.f32 0.0, %v3434
        %v3436 = vpop.f32.mrb[0].mxu0
        %v3437 = vpop.f32.mrb[0].mxu0
        %v3438 = vadd.f32 0.0, %v3437
        %v3439 = vpop.f32.mrb[0].mxu0
        %3440 = vmatprep.mubr.bf16.mxu0 0
        %3441 = vmatmul.mubr.bf16.gmra.mrb[0].mxu0 %v2243
        %v3442 = vpop.f32.mrb[0].mxu0
        %v3443 = vadd.f32 0.0, %v3442
        %v3444 = vpop.f32.mrb[0].mxu0
        %v3445 = vpop.f32.mrb[0].mxu0
        %v3446 = vpop.f32.mrb[0].mxu0
        %3447 = vmatprep.mubr.bf16.mxu0 0
        %3448 = vmatmul.mubr.bf16.gmra.mrb[0].mxu0 %v2246
        %v3449 = vpop.f32.mrb[0].mxu0
        %v3450 = vadd.f32 0.0, %v3449
        %v3451 = vpop.f32.mrb[0].mxu0
        %v3452 = vpop.f32.mrb[0].mxu0
        %v3453 = vadd.f32 0.0, %v3452
        %v3454 = vpop.f32.mrb[0].mxu0
        %3455 = vmatprep.mubr.bf16.mxu0 0
        %3456 = vmatmul.mubr.bf16.gmra.mrb[0].mxu0 %v2932
        %v3457 = vpop.f32.mrb[0].mxu0
        %v3458 = vadd.f32 0.0, %v3457
        %v3459 = vpop.f32.mrb[0].mxu0
        %v3460 = vpop.f32.mrb[0].mxu0
        %v3461 = vpop.f32.mrb[0].mxu0
        %3462 = vmatprep.mubr.bf16.mxu0 0
        %3463 = vmatmul.mubr.bf16.gmra.mrb[0].mxu0 %v2935
        %v3464 = vpop.f32.mrb[0].mxu0
        %v3465 = vpop.f32.mrb[0].mxu0
        %v3466 = vpop.f32.mrb[0].mxu0
        %v3467 = vpop.f32.mrb[0].mxu0
        %3468 = vdwg.mxu0
        %v3469 = vadd.f32 %v2780, %v2987
        %v3470 = vadd.f32 %v2781, %v2989
        %v3471 = vadd.f32 %v2782, %v3162
        %v3472 = vadd.f32 %v2783, %v3164
        %v3473 = vadd.f32 %v2784, %v3345
        %v3474 = vadd.f32 %v2785, %v2991
        %v3475 = vadd.f32 %v2786, %v2993
        %v3476 = vadd.f32 %v2787, %v3166
        %v3477 = vadd.f32 %v2788, %v3168
        %v3478 = vadd.f32 %v2789, %v3348
        %v3479 = vadd.f32 %v2790, %v2998
        %v3480 = vadd.f32 %v2791, %v3172
        %v3481 = vadd.f32 %v2792, %v3174
        %v3482 = vadd.f32 %v2793, %v3353
        %v3483 = vadd.f32 %v2794, %v3004
        %v3484 = vadd.f32 %v2795, %v3006
        %v3485 = vadd.f32 %v2796, %v3180
        %v3486 = vadd.f32 %v2797, %v3182
        %v3487 = vadd.f32 %v2798, %v3360
        %v3488 = vadd.f32 %v2799, %v3008
        %v3489 = vadd.f32 %v2800, %v3010
        %v3490 = vadd.f32 %v2801, %v3184
        %v3491 = vadd.f32 %v2802, %v3186
        %v3492 = vadd.f32 %v2803, %v3363
        %v3493 = vadd.f32 %v2804, %v3015
        %v3494 = vadd.f32 %v2805, %v3190
        %v3495 = vadd.f32 %v2806, %v3192
        %v3496 = vadd.f32 %v2807, %v3368
        %v3497 = vadd.f32 %v2808, %v3021
        %v3498 = vadd.f32 %v2809, %v3023
        %v3499 = vadd.f32 %v2810, %v3198
        %v3500 = vadd.f32 %v2811, %v3200
        %v3501 = vadd.f32 %v2812, %v3375
        %v3502 = vadd.f32 %v2813, %v3025
        %v3503 = vadd.f32 %v2814, %v3027
        %v3504 = vadd.f32 %v2815, %v3202
        %v3505 = vadd.f32 %v2816, %v3204
        %v3506 = vadd.f32 %v2817, %v3378
        %v3507 = vadd.f32 %v2818, %v3032
        %v3508 = vadd.f32 %v2819, %v3208
        %v3509 = vadd.f32 %v2820, %v3210
        %v3510 = vadd.f32 %v2821, %v3383
        %v3511 = vadd.f32 %v2822, %v3038
        %v3512 = vadd.f32 %v2823, %v3040
        %v3513 = vadd.f32 %v2824, %v3216
        %v3514 = vadd.f32 %v2825, %v3218
        %v3515 = vadd.f32 %v2826, %v3390
        %v3516 = vadd.f32 %v2827, %v3042
        %v3517 = vadd.f32 %v2828, %v3044
        %v3518 = vadd.f32 %v2829, %v3220
        %v3519 = vadd.f32 %v2830, %v3222
        %v3520 = vadd.f32 %v2831, %v3393
        %v3521 = vadd.f32 %v2832, %v3049
        %v3522 = vadd.f32 %v2833, %v3226
        %v3523 = vadd.f32 %v2834, %v3228
        %v3524 = vadd.f32 %v2835, %v3398
        %v3525 = vadd.f32 %v2836, %v3055
        %v3526 = vadd.f32 %v2837, %v3057
        %v3527 = vadd.f32 %v2838, %v3234
        %v3528 = vadd.f32 %v2839, %v3236
        %v3529 = vadd.f32 %v2840, %v3405
        %v3530 = vadd.f32 %v2841, %v3059
        %v3531 = vadd.f32 %v2842, %v3061
        %v3532 = vadd.f32 %v2843, %v3238
        %v3533 = vadd.f32 %v2844, %v3240
        %v3534 = vadd.f32 %v2845, %v3408
        %v3535 = vadd.f32 %v2846, %v3066
        %v3536 = vadd.f32 %v2847, %v3244
        %v3537 = vadd.f32 %v2848, %v3246
        %v3538 = vadd.f32 %v2849, %v3413
        %v3539 = vadd.f32 %v2850, %v3072
        %v3540 = vadd.f32 %v2851, %v3074
        %v3541 = vadd.f32 %v2852, %v3252
        %v3542 = vadd.f32 %v2853, %v3254
        %v3543 = vadd.f32 %v2854, %v3420
        %v3544 = vadd.f32 %v2855, %v3076
        %v3545 = vadd.f32 %v2856, %v3078
        %v3546 = vadd.f32 %v2857, %v3256
        %v3547 = vadd.f32 %v2858, %v3258
        %v3548 = vadd.f32 %v2859, %v3423
        %v3549 = vadd.f32 %v2860, %v3083
        %v3550 = vadd.f32 %v2861, %v3262
        %v3551 = vadd.f32 %v2862, %v3264
        %v3552 = vadd.f32 %v2863, %v3428
        %v3553 = vadd.f32 %v2864, %v3089
        %v3554 = vadd.f32 %v2865, %v3091
        %v3555 = vadd.f32 %v2866, %v3270
        %v3556 = vadd.f32 %v2867, %v3272
        %v3557 = vadd.f32 %v2868, %v3435
        %v3558 = vadd.f32 %v2869, %v3093
        %v3559 = vadd.f32 %v2870, %v3095
        %v3560 = vadd.f32 %v2871, %v3274
        %v3561 = vadd.f32 %v2872, %v3276
        %v3562 = vadd.f32 %v2873, %v3438
        %v3563 = vadd.f32 %v2874, %v3100
        %v3564 = vadd.f32 %v2875, %v3280
        %v3565 = vadd.f32 %v2876, %v3282
        %v3566 = vadd.f32 %v2877, %v3443
        %v3567 = vadd.f32 %v2878, %v3106
        %v3568 = vadd.f32 %v2879, %v3108
        %v3569 = vadd.f32 %v2880, %v3288
        %v3570 = vadd.f32 %v2881, %v3290
        %v3571 = vadd.f32 %v2882, %v3450
        %v3572 = vadd.f32 %v2883, %v3110
        %v3573 = vadd.f32 %v2884, %v3112
        %v3574 = vadd.f32 %v2885, %v3292
        %v3575 = vadd.f32 %v2886, %v3294
        %v3576 = vadd.f32 %v2887, %v3453
        %v3577 = vadd.f32 %v2888, %v3117
        %v3578 = vadd.f32 %v2889, %v3298
        %v3579 = vadd.f32 %v2890, %v3300
        %v3580 = vadd.f32 %v2891, %v3458
        %vm3605 = vcmask 1046528
        %v3606 = vrot.slane %v3470, 1
        %v3607 = vrot.slane %v3475, 1
        %v3608 = vsel %vm3605, %v3606, %v3607
        %v3609 = vrot.slane %v3479, 1
        %v3610 = vsel %vm3605, %v3607, %v3609
        %v3611 = vrot.slane %v3484, 1
        %v3612 = vrot.slane %v3489, 1
        %v3613 = vsel %vm3605, %v3611, %v3612
        %v3614 = vrot.slane %v3493, 1
        %v3615 = vsel %vm3605, %v3612, %v3614
        %v3616 = vrot.slane %v3498, 1
        %v3617 = vrot.slane %v3503, 1
        %v3618 = vsel %vm3605, %v3616, %v3617
        %v3619 = vrot.slane %v3507, 1
        %v3620 = vsel %vm3605, %v3617, %v3619
        %v3621 = vrot.slane %v3512, 1
        %v3622 = vrot.slane %v3517, 1
        %v3623 = vsel %vm3605, %v3621, %v3622
        %v3624 = vrot.slane %v3521, 1
        %v3625 = vsel %vm3605, %v3622, %v3624
        %v3626 = vrot.slane %v3526, 1
        %v3627 = vrot.slane %v3531, 1
        %v3628 = vsel %vm3605, %v3626, %v3627
        %v3629 = vrot.slane %v3535, 1
        %v3630 = vsel %vm3605, %v3627, %v3629
        %v3631 = vrot.slane %v3540, 1
        %v3632 = vrot.slane %v3545, 1
        %v3633 = vsel %vm3605, %v3631, %v3632
        %v3634 = vrot.slane %v3549, 1
        %v3635 = vsel %vm3605, %v3632, %v3634
        %v3636 = vrot.slane %v3554, 1
        %v3637 = vrot.slane %v3559, 1
        %v3638 = vsel %vm3605, %v3636, %v3637
        %v3639 = vrot.slane %v3563, 1
        %v3640 = vsel %vm3605, %v3637, %v3639
        %v3641 = vrot.slane %v3568, 1
        %v3642 = vrot.slane %v3573, 1
        %v3643 = vsel %vm3605, %v3641, %v3642
        %v3644 = vrot.slane %v3577, 1
        %v3645 = vsel %vm3605, %v3642, %v3644
        %v3662 = vadd.f32 %v3469, %v3608
        %v3663 = vadd.f32 %v3474, %v3610
        %v3664 = vadd.f32 %v3483, %v3613
        %v3665 = vadd.f32 %v3488, %v3615
        %v3666 = vadd.f32 %v3497, %v3618
        %v3667 = vadd.f32 %v3502, %v3620
        %v3668 = vadd.f32 %v3511, %v3623
        %v3669 = vadd.f32 %v3516, %v3625
        %v3670 = vadd.f32 %v3525, %v3628
        %v3671 = vadd.f32 %v3530, %v3630
        %v3672 = vadd.f32 %v3539, %v3633
        %v3673 = vadd.f32 %v3544, %v3635
        %v3674 = vadd.f32 %v3553, %v3638
        %v3675 = vadd.f32 %v3558, %v3640
        %v3676 = vadd.f32 %v3567, %v3643
        %v3677 = vadd.f32 %v3572, %v3645
        %vm3702 = vcmask 1045504
        %v3703 = vrot.slane %v3471, 2
        %v3704 = vrot.slane %v3476, 2
        %v3705 = vsel %vm3702, %v3703, %v3704
        %v3706 = vrot.slane %v3480, 2
        %v3707 = vsel %vm3702, %v3704, %v3706
        %v3708 = vrot.slane %v3485, 2
        %v3709 = vrot.slane %v3490, 2
        %v3710 = vsel %vm3702, %v3708, %v3709
        %v3711 = vrot.slane %v3494, 2
        %v3712 = vsel %vm3702, %v3709, %v3711
        %v3713 = vrot.slane %v3499, 2
        %v3714 = vrot.slane %v3504, 2
        %v3715 = vsel %vm3702, %v3713, %v3714
        %v3716 = vrot.slane %v3508, 2
        %v3717 = vsel %vm3702, %v3714, %v3716
        %v3718 = vrot.slane %v3513, 2
        %v3719 = vrot.slane %v3518, 2
        %v3720 = vsel %vm3702, %v3718, %v3719
        %v3721 = vrot.slane %v3522, 2
        %v3722 = vsel %vm3702, %v3719, %v3721
        %v3723 = vrot.slane %v3527, 2
        %v3724 = vrot.slane %v3532, 2
        %v3725 = vsel %vm3702, %v3723, %v3724
        %v3726 = vrot.slane %v3536, 2
        %v3727 = vsel %vm3702, %v3724, %v3726
        %v3728 = vrot.slane %v3541, 2
        %v3729 = vrot.slane %v3546, 2
        %v3730 = vsel %vm3702, %v3728, %v3729
        %v3731 = vrot.slane %v3550, 2
        %v3732 = vsel %vm3702, %v3729, %v3731
        %v3733 = vrot.slane %v3555, 2
        %v3734 = vrot.slane %v3560, 2
        %v3735 = vsel %vm3702, %v3733, %v3734
        %v3736 = vrot.slane %v3564, 2
        %v3737 = vsel %vm3702, %v3734, %v3736
        %v3738 = vrot.slane %v3569, 2
        %v3739 = vrot.slane %v3574, 2
        %v3740 = vsel %vm3702, %v3738, %v3739
        %v3741 = vrot.slane %v3578, 2
        %v3742 = vsel %vm3702, %v3739, %v3741
        %v3759 = vadd.f32 %v3662, %v3705
        %v3760 = vadd.f32 %v3663, %v3707
        %v3761 = vadd.f32 %v3664, %v3710
        %v3762 = vadd.f32 %v3665, %v3712
        %v3763 = vadd.f32 %v3666, %v3715
        %v3764 = vadd.f32 %v3667, %v3717
        %v3765 = vadd.f32 %v3668, %v3720
        %v3766 = vadd.f32 %v3669, %v3722
        %v3767 = vadd.f32 %v3670, %v3725
        %v3768 = vadd.f32 %v3671, %v3727
        %v3769 = vadd.f32 %v3672, %v3730
        %v3770 = vadd.f32 %v3673, %v3732
        %v3771 = vadd.f32 %v3674, %v3735
        %v3772 = vadd.f32 %v3675, %v3737
        %v3773 = vadd.f32 %v3676, %v3740
        %v3774 = vadd.f32 %v3677, %v3742
        %vm3799 = vcmask 1044480
        %v3800 = vrot.slane %v3472, 3
        %v3801 = vrot.slane %v3477, 3
        %v3802 = vsel %vm3799, %v3800, %v3801
        %v3803 = vrot.slane %v3481, 3
        %v3804 = vsel %vm3799, %v3801, %v3803
        %v3805 = vrot.slane %v3486, 3
        %v3806 = vrot.slane %v3491, 3
        %v3807 = vsel %vm3799, %v3805, %v3806
        %v3808 = vrot.slane %v3495, 3
        %v3809 = vsel %vm3799, %v3806, %v3808
        %v3810 = vrot.slane %v3500, 3
        %v3811 = vrot.slane %v3505, 3
        %v3812 = vsel %vm3799, %v3810, %v3811
        %v3813 = vrot.slane %v3509, 3
        %v3814 = vsel %vm3799, %v3811, %v3813
        %v3815 = vrot.slane %v3514, 3
        %v3816 = vrot.slane %v3519, 3
        %v3817 = vsel %vm3799, %v3815, %v3816
        %v3818 = vrot.slane %v3523, 3
        %v3819 = vsel %vm3799, %v3816, %v3818
        %v3820 = vrot.slane %v3528, 3
        %v3821 = vrot.slane %v3533, 3
        %v3822 = vsel %vm3799, %v3820, %v3821
        %v3823 = vrot.slane %v3537, 3
        %v3824 = vsel %vm3799, %v3821, %v3823
        %v3825 = vrot.slane %v3542, 3
        %v3826 = vrot.slane %v3547, 3
        %v3827 = vsel %vm3799, %v3825, %v3826
        %v3828 = vrot.slane %v3551, 3
        %v3829 = vsel %vm3799, %v3826, %v3828
        %v3830 = vrot.slane %v3556, 3
        %v3831 = vrot.slane %v3561, 3
        %v3832 = vsel %vm3799, %v3830, %v3831
        %v3833 = vrot.slane %v3565, 3
        %v3834 = vsel %vm3799, %v3831, %v3833
        %v3835 = vrot.slane %v3570, 3
        %v3836 = vrot.slane %v3575, 3
        %v3837 = vsel %vm3799, %v3835, %v3836
        %v3838 = vrot.slane %v3579, 3
        %v3839 = vsel %vm3799, %v3836, %v3838
        %v3856 = vadd.f32 %v3759, %v3802
        %v3857 = vadd.f32 %v3760, %v3804
        %v3858 = vadd.f32 %v3761, %v3807
        %v3859 = vadd.f32 %v3762, %v3809
        %v3860 = vadd.f32 %v3763, %v3812
        %v3861 = vadd.f32 %v3764, %v3814
        %v3862 = vadd.f32 %v3765, %v3817
        %v3863 = vadd.f32 %v3766, %v3819
        %v3864 = vadd.f32 %v3767, %v3822
        %v3865 = vadd.f32 %v3768, %v3824
        %v3866 = vadd.f32 %v3769, %v3827
        %v3867 = vadd.f32 %v3770, %v3829
        %v3868 = vadd.f32 %v3771, %v3832
        %v3869 = vadd.f32 %v3772, %v3834
        %v3870 = vadd.f32 %v3773, %v3837
        %v3871 = vadd.f32 %v3774, %v3839
        %vm3896 = vcmask 1043456
        %v3897 = vrot.slane %v3473, 4
        %v3898 = vrot.slane %v3478, 4
        %v3899 = vsel %vm3896, %v3897, %v3898
        %v3900 = vrot.slane %v3482, 4
        %v3901 = vsel %vm3896, %v3898, %v3900
        %v3902 = vrot.slane %v3487, 4
        %v3903 = vrot.slane %v3492, 4
        %v3904 = vsel %vm3896, %v3902, %v3903
        %v3905 = vrot.slane %v3496, 4
        %v3906 = vsel %vm3896, %v3903, %v3905
        %v3907 = vrot.slane %v3501, 4
        %v3908 = vrot.slane %v3506, 4
        %v3909 = vsel %vm3896, %v3907, %v3908
        %v3910 = vrot.slane %v3510, 4
        %v3911 = vsel %vm3896, %v3908, %v3910
        %v3912 = vrot.slane %v3515, 4
        %v3913 = vrot.slane %v3520, 4
        %v3914 = vsel %vm3896, %v3912, %v3913
        %v3915 = vrot.slane %v3524, 4
        %v3916 = vsel %vm3896, %v3913, %v3915
        %v3917 = vrot.slane %v3529, 4
        %v3918 = vrot.slane %v3534, 4
        %v3919 = vsel %vm3896, %v3917, %v3918
        %v3920 = vrot.slane %v3538, 4
        %v3921 = vsel %vm3896, %v3918, %v3920
        %v3922 = vrot.slane %v3543, 4
        %v3923 = vrot.slane %v3548, 4
        %v3924 = vsel %vm3896, %v3922, %v3923
        %v3925 = vrot.slane %v3552, 4
        %v3926 = vsel %vm3896, %v3923, %v3925
        %v3927 = vrot.slane %v3557, 4
        %v3928 = vrot.slane %v3562, 4
        %v3929 = vsel %vm3896, %v3927, %v3928
        %v3930 = vrot.slane %v3566, 4
        %v3931 = vsel %vm3896, %v3928, %v3930
        %v3932 = vrot.slane %v3571, 4
        %v3933 = vrot.slane %v3576, 4
        %v3934 = vsel %vm3896, %v3932, %v3933
        %v3935 = vrot.slane %v3580, 4
        %v3936 = vsel %vm3896, %v3933, %v3935
        %v3953 = vadd.f32 %v3856, %v3899
        %v3954 = vadd.f32 %v3857, %v3901
        %v3955 = vadd.f32 %v3858, %v3904
        %v3956 = vadd.f32 %v3859, %v3906
        %v3957 = vadd.f32 %v3860, %v3909
        %v3958 = vadd.f32 %v3861, %v3911
        %v3959 = vadd.f32 %v3862, %v3914
        %v3960 = vadd.f32 %v3863, %v3916
        %v3961 = vadd.f32 %v3864, %v3919
        %v3962 = vadd.f32 %v3865, %v3921
        %v3963 = vadd.f32 %v3866, %v3924
        %v3964 = vadd.f32 %v3867, %v3926
        %v3965 = vadd.f32 %v3868, %v3929
        %v3966 = vadd.f32 %v3869, %v3931
        %v3967 = vadd.f32 %v3870, %v3934
        %v3968 = vadd.f32 %v3871, %v3936
        %v3969 = vld [vmem:[%s2] sm:$0x1]
        %v3971 = vlaneseq
        %v3972 = vshrl.u32 %v3971, 7
        %v3973 = vsub.s32 0, %v3972
        %v3974 = vrot.slane %v3969, %v3973
        %v3976 = vadd.f32 %v3953, %v3974
        %v3977 = vadd.f32 %v3954, %v3974
        %v3978 = vadd.f32 %v3955, %v3974
        %v3979 = vadd.f32 %v3956, %v3974
        %v3980 = vadd.f32 %v3957, %v3974
        %v3981 = vadd.f32 %v3958, %v3974
        %v3982 = vadd.f32 %v3959, %v3974
        %v3983 = vadd.f32 %v3960, %v3974
        %v3984 = vadd.f32 %v3961, %v3974
        %v3985 = vadd.f32 %v3962, %v3974
        %v3986 = vadd.f32 %v3963, %v3974
        %v3987 = vadd.f32 %v3964, %v3974
        %v3988 = vadd.f32 %v3965, %v3974
        %v3989 = vadd.f32 %v3966, %v3974
        %v3990 = vadd.f32 %v3967, %v3974
        %v3991 = vadd.f32 %v3968, %v3974
        %v3992 = vxor.u32 %v3976, 2147483648
        %v3993 = vxor.u32 %v3977, 2147483648
        %v3994 = vxor.u32 %v3978, 2147483648
        %v3995 = vxor.u32 %v3979, 2147483648
        %v3996 = vxor.u32 %v3980, 2147483648
        %v3997 = vxor.u32 %v3981, 2147483648
        %v3998 = vxor.u32 %v3982, 2147483648
        %v3999 = vxor.u32 %v3983, 2147483648
        %v4000 = vxor.u32 %v3984, 2147483648
        %v4001 = vxor.u32 %v3985, 2147483648
        %v4002 = vxor.u32 %v3986, 2147483648
        %v4003 = vxor.u32 %v3987, 2147483648
        %v4004 = vxor.u32 %v3988, 2147483648
        %v4005 = vxor.u32 %v3989, 2147483648
        %v4006 = vxor.u32 %v3990, 2147483648
        %v4007 = vxor.u32 %v3991, 2147483648
        %v4008 = vmul.f32 %v3992, 1.442695
        %v4009 = vpow.pop %v4008
        %v4010 = vmul.f32 %v3993, 1.442695
        %v4011 = vpow.pop %v4010
        %v4012 = vmul.f32 %v3994, 1.442695
        %v4013 = vpow.pop %v4012
        %v4014 = vmul.f32 %v3995, 1.442695
        %v4015 = vpow.pop %v4014
        %v4016 = vmul.f32 %v3996, 1.442695
        %v4017 = vpow.pop %v4016
        %v4018 = vmul.f32 %v3997, 1.442695
        %v4019 = vpow.pop %v4018
        %v4020 = vmul.f32 %v3998, 1.442695
        %v4021 = vpow.pop %v4020
        %v4022 = vmul.f32 %v3999, 1.442695
        %v4023 = vpow.pop %v4022
        %v4024 = vmul.f32 %v4000, 1.442695
        %v4025 = vpow.pop %v4024
        %v4026 = vmul.f32 %v4001, 1.442695
        %v4027 = vpow.pop %v4026
        %v4028 = vmul.f32 %v4002, 1.442695
        %v4029 = vpow.pop %v4028
        %v4030 = vmul.f32 %v4003, 1.442695
        %v4031 = vpow.pop %v4030
        %v4032 = vmul.f32 %v4004, 1.442695
        %v4033 = vpow.pop %v4032
        %v4034 = vmul.f32 %v4005, 1.442695
        %v4035 = vpow.pop %v4034
        %v4036 = vmul.f32 %v4006, 1.442695
        %v4037 = vpow.pop %v4036
        %v4038 = vmul.f32 %v4007, 1.442695
        %v4039 = vpow.pop %v4038
        %v4040 = vadd.f32 %v4009, 1.0
        %v4041 = vadd.f32 %v4011, 1.0
        %v4042 = vadd.f32 %v4013, 1.0
        %v4043 = vadd.f32 %v4015, 1.0
        %v4044 = vadd.f32 %v4017, 1.0
        %v4045 = vadd.f32 %v4019, 1.0
        %v4046 = vadd.f32 %v4021, 1.0
        %v4047 = vadd.f32 %v4023, 1.0
        %v4048 = vadd.f32 %v4025, 1.0
        %v4049 = vadd.f32 %v4027, 1.0
        %v4050 = vadd.f32 %v4029, 1.0
        %v4051 = vadd.f32 %v4031, 1.0
        %v4052 = vadd.f32 %v4033, 1.0
        %v4053 = vadd.f32 %v4035, 1.0
        %v4054 = vadd.f32 %v4037, 1.0
        %v4055 = vadd.f32 %v4039, 1.0
        %v4056 = vrcp.pop %v4040
        %v4057 = vmul.f32 1.0, %v4056
        %v4058 = vrcp.pop %v4041
        %v4059 = vmul.f32 1.0, %v4058
        %v4060 = vrcp.pop %v4042
        %v4061 = vmul.f32 1.0, %v4060
        %v4062 = vrcp.pop %v4043
        %v4063 = vmul.f32 1.0, %v4062
        %v4064 = vrcp.pop %v4044
        %v4065 = vmul.f32 1.0, %v4064
        %v4066 = vrcp.pop %v4045
        %v4067 = vmul.f32 1.0, %v4066
        %v4068 = vrcp.pop %v4046
        %v4069 = vmul.f32 1.0, %v4068
        %v4070 = vrcp.pop %v4047
        %v4071 = vmul.f32 1.0, %v4070
        %v4072 = vrcp.pop %v4048
        %v4073 = vmul.f32 1.0, %v4072
        %v4074 = vrcp.pop %v4049
        %v4075 = vmul.f32 1.0, %v4074
        %v4076 = vrcp.pop %v4050
        %v4077 = vmul.f32 1.0, %v4076
        %v4078 = vrcp.pop %v4051
        %v4079 = vmul.f32 1.0, %v4078
        %v4080 = vrcp.pop %v4052
        %v4081 = vmul.f32 1.0, %v4080
        %v4082 = vrcp.pop %v4053
        %v4083 = vmul.f32 1.0, %v4082
        %v4084 = vrcp.pop %v4054
        %v4085 = vmul.f32 1.0, %v4084
        %v4086 = vrcp.pop %v4055
        %v4087 = vmul.f32 1.0, %v4086
        %v4088 = vmul.f32 %v3976, %v4057
        %v4089 = vmul.f32 %v3977, %v4059
        %v4090 = vmul.f32 %v3978, %v4061
        %v4091 = vmul.f32 %v3979, %v4063
        %v4092 = vmul.f32 %v3980, %v4065
        %v4093 = vmul.f32 %v3981, %v4067
        %v4094 = vmul.f32 %v3982, %v4069
        %v4095 = vmul.f32 %v3983, %v4071
        %v4096 = vmul.f32 %v3984, %v4073
        %v4097 = vmul.f32 %v3985, %v4075
        %v4098 = vmul.f32 %v3986, %v4077
        %v4099 = vmul.f32 %v3987, %v4079
        %v4100 = vmul.f32 %v3988, %v4081
        %v4101 = vmul.f32 %v3989, %v4083
        %v4102 = vmul.f32 %v3990, %v4085
        %v4103 = vmul.f32 %v3991, %v4087
        %4104 = vst [vmem:[%s177] sm:$0xff] %v4088
        %4105 = vst [vmem:[%s177 + $0x8] sm:$0xff] %v4089
        %4106 = vst [vmem:[%s177 + $0x10] sm:$0xff] %v4090
        %4107 = vst [vmem:[%s177 + $0x18] sm:$0xff] %v4091
        %4108 = vst [vmem:[%s177 + $0x20] sm:$0xff] %v4092
        %4109 = vst [vmem:[%s177 + $0x28] sm:$0xff] %v4093
        %4110 = vst [vmem:[%s177 + $0x30] sm:$0xff] %v4094
        %4111 = vst [vmem:[%s177 + $0x38] sm:$0xff] %v4095
        %4112 = vst [vmem:[%s177 + $0x40] sm:$0xff] %v4096
        %4113 = vst [vmem:[%s177 + $0x48] sm:$0xff] %v4097
        %4114 = vst [vmem:[%s177 + $0x50] sm:$0xff] %v4098
        %4115 = vst [vmem:[%s177 + $0x58] sm:$0xff] %v4099
        %4116 = vst [vmem:[%s177 + $0x60] sm:$0xff] %v4100
        %4117 = vst [vmem:[%s177 + $0x68] sm:$0xff] %v4101
        %4118 = vst [vmem:[%s177 + $0x70] sm:$0xff] %v4102
        %4119 = vst [vmem:[%s177 + $0x78] sm:$0xff] %v4103
        %s4120 = sand.u32 %s107, 1
        %s4121 = scalar_lea.sflag [#allocation3], %s4120
        %s4122 = sand.u32 %s107, 1
        %s4123 = smul.addr %s4122, 128
        %s4124 = scalar_lea.vmem [#allocation2], %s4123
        // Predicated region
        $region33: #{tpu_custom_call.1} parent=31 // pred_check
          %p4125 = pneg %p117
        $region34: #{tpu_custom_call.1} parent=31 // pred_check_branch
          %4127 = sbr.rel (%p4125) target = $region36
        $region35: #{tpu_custom_call.1} parent=31 // pred_region
          %s4128 = smul.u32 8, %s22
          %s4130 = ssub.s32 2048, 2048
          %4131 = vsyncadd %s4121, %s4130
          %s4132 = smul.addr %s4128, 2
          %s4133 = smul.addr %s21, 32
          %s4134 = sadd.s32 %s4132, %s4133
          %s4135 = smul.addr %s4134, 128
          %s4136 = scalar_lea.hbm %s3, %s4135
          %s4137 = sshll.u32 %s4124, 4
          %s4138 = int_to_ptr.vmem [resolvable:$true] %s4137
          %4143 = dma.vmem_to_hbm [thread:$0]  %s4138, 2048, %s4136, %s4121, 128, 128, 8
        $region36: #{tpu_custom_call.1} parent=31 // pred_fallthru
          _
      $region32: #{tpu_custom_call.1} parent=5 // pred_fallthru
        _
      %p4144 = scmp.le.s32.totalorder 2, %s12
      // Predicated region
      $region37: #{tpu_custom_call.1} parent=5 // pred_check
        %p4145 = pneg %p4144
      $region38: #{tpu_custom_call.1} parent=5 // pred_check_branch
        %4147 = sbr.rel (%p4145) target = $region40
      $region39: #{tpu_custom_call.1} parent=5 // pred_region
        %s4148 = ssub.s32 %s12, 2
        // Predicated region
        $region41: #{tpu_custom_call.1} parent=39 // pred_check
          %p4149 = pneg %p123
        $region42: #{tpu_custom_call.1} parent=39 // pred_check_branch
          %4151 = sbr.rel (%p4149) target = $region44
        $region43: #{tpu_custom_call.1} parent=39 // pred_region
          %s4152 = sand.u32 %s108, 1
          %s4153 = scalar_lea.sflag [#allocation3], %s4152
          %s4154 = sand.u32 %s108, 1
          %s4155 = smul.addr %s4154, 128
          %s4156 = scalar_lea.vmem [#allocation2], %s4155
          %4157 = dma.done %s4153, 2048
        $region44: #{tpu_custom_call.1} parent=39 // pred_fallthru
          _
      $region40: #{tpu_custom_call.1} parent=5 // pred_fallthru
        _
    $region6: #{tpu_custom_call.1} parent=1 // loop_footer
      %s16 = sadd.s32 1, %s12
    $region7: #{tpu_custom_call.1} parent=1 // loop_footer_branch
      %11 = sbr.rel target = $region3
    $region8: #{tpu_custom_call.1} parent=1 // loop_exit
      _
    %4158 = vsyncpa [#allocation3], 1
    %s4159 = scalar_lea.sflag [#allocation3], 1
    %4160 = vsyncpa %s4159, 1

</llo_original>
